<compile_context>
chip_gen: v7x
topology: tpu7x:2x2x1
jax: 0.10.0
libtpu: 0.0.40
codegen_flags: <defaults>
</compile_context>

<pallas_src>
import jax
import jax.numpy as jnp
from jax.experimental import pallas as pl
from jax.experimental.pallas import tpu as pltpu

# ---------------- configuration (small, consistent with the module) ----------
WORLD_DIM = 3                 # input_ch / world_dim
LEVEL_RES = (4, 8)            # lotd_grower.level_res
LEVEL_N_FEATS = (2, 2)        # lotd_grower.level_n_feats  (lod_types = Dense)
Z_DIM = 8                     # lotd_grower.z_dim
OUT_FEATURES = sum(LEVEL_N_FEATS)
N_PARAMS = sum((r ** WORLD_DIM) * f for r, f in zip(LEVEL_RES, LEVEL_N_FEATS))


# ---------------------------- Pallas kernel ----------------------------------
def _lotd_dense_kernel(x_ref, a0_ref, a1_ref, o_ref):
    """One batch element, one tile of N query points (lane-dense layouts).

    x_ref : (1, 3, tN)         coords in [-1, 1]; points on the lane axis
    a0_ref: (1, F0*R0, R0^2)   level-0 grid table, A[f*R + ix, iy*R + iz]
    a1_ref: (1, F1*R1, R1^2)   level-1 grid table, same layout
    o_ref : (1, F0+F1, tN)     features on sublanes, points on lanes
    """
    x = x_ref[0].astype(jnp.float32) * 0.5 + 0.5            # (3, tN) in [0, 1]

    # One hoisted iota column shared by both (unrolled) levels.  The (R^2, 1) /
    # (R, 1) constants broadcast against the (1, tN) coord rows, so the hat
    # weights are built directly in flat (R^2, tN) form (no (R,R,tN) reshape).
    max_rr = max(r * r for r in LEVEL_RES)
    flat_col = jax.lax.broadcasted_iota(jnp.int32, (max_rr, 1), 0)

    feat_rows = []
    for a_ref, R, F in ((a0_ref, LEVEL_RES[0], LEVEL_N_FEATS[0]),
                        (a1_ref, LEVEL_RES[1], LEVEL_N_FEATS[1])):
        pos = jnp.clip(x * (R - 1), 0.0, float(R - 1))      # (3, tN)

        kf = flat_col[: R * R].astype(jnp.float32)          # (R^2, 1)
        iy_c = jnp.floor(kf * (1.0 / R))                    # exact for R in {4, 8}
        iz_c = kf - iy_c * R
        ix_c = flat_col[:R].astype(jnp.float32)             # (R, 1)

        # Hat (tent) weights == floor/frac trilinear weights (exactly two
        # nonzeros per point, including the coord == +1 edge).
        wx = jnp.maximum(1.0 - jnp.abs(pos[0:1, :] - ix_c), 0.0)   # (R, tN)
        wy = jnp.maximum(1.0 - jnp.abs(pos[1:2, :] - iy_c), 0.0)   # (R^2, tN)
        wz = jnp.maximum(1.0 - jnp.abs(pos[2:3, :] - iz_c), 0.0)   # (R^2, tN)
        wyz = wy * wz                                              # (R^2, tN)

        # MXU contracts (iy, iz): (F*R, R^2) @ (R^2, tN) -> (F*R, tN).
        # Keep f32 MXU inputs: plenty of MXU slack, and bf16 breaks tolerance.
        A = a_ref[0].astype(jnp.float32)
        U = jnp.dot(A, wyz, preferred_element_type=jnp.float32)

        # ix contraction: per-feature contiguous (R, tN) block times wx, then a
        # sublane reduction (XLU slot) instead of a VALU multiply-add chain.
        for f in range(F):
            blk = U[f * R:(f + 1) * R, :] * wx
            feat_rows.append(jnp.sum(blk, axis=0, keepdims=True))  # (1, tN)

    # Single stacked store of all output feature rows for this tile.
    o_ref[0, :, :] = jnp.concatenate(feat_rows, axis=0).astype(o_ref.dtype)


# ------------------------------ wrappers --------------------------------------
def lotd_batched_forward_t(coords_t, grids, *, tile_n=2048, out_dtype=jnp.float32):
    """Lane-dense entry point: coords_t [B, 3, N] -> features [B, F_total, N].

    Prefer this over lotd_batched_forward: it avoids two full HBM-round-trip
    transposes, and [B, F, N] is exactly the layout a following Pallas MLP /
    matmul kernel wants (features on sublanes, points on lanes).
    """
    B, D, N = coords_t.shape
    assert D == WORLD_DIM

    # Large tiles amortize the ~0.35us per-grid-step overhead, but keep
    # B * n_tiles >= 2 so both v7x TensorCores receive grid steps.
    if B == 1:
        tile_n = min(tile_n, max(128, pl.cdiv(pl.cdiv(N, 2), 128) * 128))
    n_tiles = pl.cdiv(N, tile_n)
    Np = n_tiles * tile_n
    if Np != N:
        # Padded tail maps to a valid 0.5 query; its outputs are sliced off.
        coords_t = jnp.pad(coords_t, ((0, 0), (0, 0), (0, Np - N)))

    # Grid tables in the kernel layout A[b, f*R + ix, iy*R + iz]: f-major rows
    # make the ix contraction a contiguous sublane-block reduction.
    a_tabs = []
    for g, R, F in zip(grids, LEVEL_RES, LEVEL_N_FEATS):
        a = g.reshape(B, R, R, R, F)              # (b, ix, iy, iz, f)
        a = jnp.transpose(a, (0, 4, 1, 2, 3))     # (b, f, ix, iy, iz)
        a_tabs.append(a.reshape(B, F * R, R * R).astype(jnp.float32))
    a0, a1 = a_tabs

    # Per-step VMEM grows ~0.5 KiB/point; only very large tiles need to raise
    # v5e's 16 MiB default scoped-VMEM limit (v6e/v7x defaults are fine).
    vmem_limit = 64 * 1024 * 1024 if tile_n >= 16384 else None

    out_t = pl.pallas_call(
        _lotd_dense_kernel,
        out_shape=jax.ShapeDtypeStruct((B, OUT_FEATURES, Np), out_dtype),
        grid=(B, n_tiles),   # b outer, n inner: tables stay VMEM-resident per b
        in_specs=[
            pl.BlockSpec((1, WORLD_DIM, tile_n), lambda b, n: (b, 0, n)),
            pl.BlockSpec((1, a0.shape[1], a0.shape[2]), lambda b, n: (b, 0, 0)),
            pl.BlockSpec((1, a1.shape[1], a1.shape[2]), lambda b, n: (b, 0, 0)),
        ],
        out_specs=pl.BlockSpec((1, OUT_FEATURES, tile_n), lambda b, n: (b, 0, n)),
        compiler_params=pltpu.CompilerParams(
            dimension_semantics=("parallel", "parallel"),
            vmem_limit_bytes=vmem_limit),
    )(coords_t, a0, a1)

    return out_t[:, :, :N]


def lotd_batched_forward(coords, grids, *, tile_n=2048, out_dtype=jnp.float32):
    """Module-layout wrapper: coords [B, N, 3] in [-1,1] -> [B, N, F_total].

    NOTE: the two transposes here are full HBM read+write passes comparable to
    everything the kernel touches; downstream consumers should instead call
    lotd_batched_forward_t and stay in the [B, 3, N] / [B, F, N] layout.
    """
    coords_t = jnp.transpose(coords, (0, 2, 1))
    out_t = lotd_batched_forward_t(coords_t, grids, tile_n=tile_n,
                                   out_dtype=out_dtype)
    return jnp.transpose(out_t, (0, 2, 1))


# ------------------------ grower (param setup, plain JAX) ---------------------
def make_grower_params(key):
    k1, k2 = jax.random.split(key)
    w = jax.random.normal(k1, (Z_DIM, N_PARAMS), jnp.float32) * 0.1
    b = jax.random.normal(k2, (N_PARAMS,), jnp.float32) * 0.01
    return w, b


def grow(z, grower_params):
    """z: [B, z_dim] -> per-level dense grids ([B, R^3, F], ...)."""
    w, b = grower_params
    lod_params = z.astype(jnp.float32) @ w + b          # [B, N_PARAMS]
    grids, off = [], 0
    B = z.shape[0]
    for r, f in zip(LEVEL_RES, LEVEL_N_FEATS):
        n = (r ** WORLD_DIM) * f
        grids.append(lod_params[:, off:off + n].reshape(B, r ** WORLD_DIM, f))
        off += n
    return tuple(grids)


# ------------------------------ pure-JAX reference ---------------------------
def ref_forward(coords, grids):
    x = coords * 0.5 + 0.5
    outs = []
    for grid, R in zip(grids, LEVEL_RES):
        pos = jnp.clip(x * (R - 1), 0.0, R - 1)
        i0 = jnp.clip(jnp.floor(pos), 0, R - 2).astype(jnp.int32)
        frac = pos - i0
        acc = 0.0
        for corner in range(8):
            dx, dy, dz = (corner >> 2) & 1, (corner >> 1) & 1, corner & 1
            idx = ((i0[..., 0] + dx) * R + (i0[..., 1] + dy)) * R + (i0[..., 2] + dz)
            w = ((frac[..., 0] if dx else 1 - frac[..., 0]) *
                 (frac[..., 1] if dy else 1 - frac[..., 1]) *
                 (frac[..., 2] if dz else 1 - frac[..., 2]))
            feats = jnp.take_along_axis(grid, idx[..., None], axis=1)  # (B,N,F)
            acc = acc + w[..., None] * feats
        outs.append(acc)
    return jnp.concatenate(outs, axis=-1)


# ------------------------------------ main ------------------------------------
if __name__ == "__main__":
    key = jax.random.PRNGKey(0)
    k_z, k_x, k_g = jax.random.split(key, 3)

    B, N = 2, 1000                               # ragged N exercises padding
    z = jax.random.normal(k_z, (B, Z_DIM), jnp.float32)
    coords = jax.random.uniform(k_x, (B, N, WORLD_DIM), jnp.float32,
                                minval=-1.0, maxval=1.0)

    grower_params = make_grower_params(k_g)
    grids = grow(z, grower_params)               # LoTDBatched.grow(z)

    out = lotd_batched_forward(coords, grids)    # LoTDBatched.forward(input)
    out = jax.block_until_ready(out)

    ref = ref_forward(coords, grids)
    assert out.shape == (B, N, OUT_FEATURES)
    assert jnp.allclose(out, ref, atol=5e-5, rtol=5e-5), (
        float(jnp.max(jnp.abs(out - ref))))

    print("KERNEL_OK")
</pallas_src>

<mosaic_0001>
module attributes {stable_mosaic.version = 11 : i64} {
  func.func @_lotd_dense_kernel(%arg0: i32, %arg1: i32, %arg2: memref<1x3x2048xf32, #tpu.memory_space<vmem>>, %arg3: memref<1x8x16xf32, #tpu.memory_space<vmem>>, %arg4: memref<1x16x64xf32, #tpu.memory_space<vmem>>, %arg5: memref<1x4x2048xf32, #tpu.memory_space<vmem>>) attributes {dimension_semantics = [#tpu.dimension_semantics<parallel>, #tpu.dimension_semantics<parallel>], iteration_bounds = array<i64: 2, 1>, scalar_prefetch = 0 : i64, scratch_operands = 0 : i64, tpu.core_type = #tpu.core_type<tc>, window_params = [{transform_indices = @transform_0, window_bounds = array<i64: 1, 3, 2048>}, {transform_indices = @transform_1, window_bounds = array<i64: 1, 8, 16>}, {transform_indices = @transform_2, window_bounds = array<i64: 1, 16, 64>}, {transform_indices = @transform_3, window_bounds = array<i64: 1, 4, 2048>}]} {
    %c0 = arith.constant 0 : index
    %c0_0 = arith.constant 0 : index
    %c0_1 = arith.constant 0 : index
    %0 = vector.load %arg2[%c0, %c0_0, %c0_1] : memref<1x3x2048xf32, #tpu.memory_space<vmem>>, vector<1x3x2048xf32>
    %1 = vector.shape_cast %0 : vector<1x3x2048xf32> to vector<3x2048xf32>
    %cst = arith.constant 5.000000e-01 : f32
    %2 = vector.broadcast %cst : f32 to vector<3x2048xf32>
    %3 = arith.mulf %1, %2 : vector<3x2048xf32>
    %cst_2 = arith.constant 5.000000e-01 : f32
    %4 = vector.broadcast %cst_2 : f32 to vector<3x2048xf32>
    %5 = arith.addf %3, %4 : vector<3x2048xf32>
    %6 = tpu.iota {dimensions = array<i32: 0>} : vector<64x1xi32>
    %cst_3 = arith.constant 3.000000e+00 : f32
    %7 = vector.broadcast %cst_3 : f32 to vector<3x2048xf32>
    %8 = arith.mulf %5, %7 : vector<3x2048xf32>
    %cst_4 = arith.constant 0.000000e+00 : f32
    %cst_5 = arith.constant 3.000000e+00 : f32
    %9 = vector.broadcast %cst_4 : f32 to vector<3x2048xf32>
    %10 = arith.maximumf %9, %8 : vector<3x2048xf32>
    %11 = vector.broadcast %cst_5 : f32 to vector<3x2048xf32>
    %12 = arith.minimumf %11, %10 : vector<3x2048xf32>
    %13 = vector.extract_strided_slice %6 {offsets = [0, 0], sizes = [16, 1], strides = [1, 1]} : vector<64x1xi32> to vector<16x1xi32>
    %14 = arith.sitofp %13 : vector<16x1xi32> to vector<16x1xf32>
    %cst_6 = arith.constant 2.500000e-01 : f32
    %15 = vector.broadcast %cst_6 : f32 to vector<16x1xf32>
    %16 = arith.mulf %14, %15 : vector<16x1xf32>
    %17 = math.floor %16 : vector<16x1xf32>
    %cst_7 = arith.constant 4.000000e+00 : f32
    %18 = vector.broadcast %cst_7 : f32 to vector<16x1xf32>
    %19 = arith.mulf %17, %18 : vector<16x1xf32>
    %20 = arith.subf %14, %19 : vector<16x1xf32>
    %21 = vector.extract_strided_slice %6 {offsets = [0, 0], sizes = [4, 1], strides = [1, 1]} : vector<64x1xi32> to vector<4x1xi32>
    %22 = arith.sitofp %21 : vector<4x1xi32> to vector<4x1xf32>
    %23 = vector.extract_strided_slice %12 {offsets = [0, 0], sizes = [1, 2048], strides = [1, 1]} : vector<3x2048xf32> to vector<1x2048xf32>
    %24 = vector.broadcast %23 : vector<1x2048xf32> to vector<4x2048xf32>
    %25 = vector.broadcast %22 : vector<4x1xf32> to vector<4x2048xf32>
    %26 = arith.subf %24, %25 : vector<4x2048xf32>
    %27 = math.absf %26 : vector<4x2048xf32>
    %cst_8 = arith.constant 1.000000e+00 : f32
    %28 = vector.broadcast %cst_8 : f32 to vector<4x2048xf32>
    %29 = arith.subf %28, %27 : vector<4x2048xf32>
    %cst_9 = arith.constant 0.000000e+00 : f32
    %30 = vector.broadcast %cst_9 : f32 to vector<4x2048xf32>
    %31 = arith.maximumf %29, %30 : vector<4x2048xf32>
    %32 = vector.extract_strided_slice %12 {offsets = [1, 0], sizes = [1, 2048], strides = [1, 1]} : vector<3x2048xf32> to vector<1x2048xf32>
    %33 = vector.broadcast %32 : vector<1x2048xf32> to vector<16x2048xf32>
    %34 = vector.broadcast %17 : vector<16x1xf32> to vector<16x2048xf32>
    %35 = arith.subf %33, %34 : vector<16x2048xf32>
    %36 = math.absf %35 : vector<16x2048xf32>
    %cst_10 = arith.constant 1.000000e+00 : f32
    %37 = vector.broadcast %cst_10 : f32 to vector<16x2048xf32>
    %38 = arith.subf %37, %36 : vector<16x2048xf32>
    %cst_11 = arith.constant 0.000000e+00 : f32
    %39 = vector.broadcast %cst_11 : f32 to vector<16x2048xf32>
    %40 = arith.maximumf %38, %39 : vector<16x2048xf32>
    %41 = vector.extract_strided_slice %12 {offsets = [2, 0], sizes = [1, 2048], strides = [1, 1]} : vector<3x2048xf32> to vector<1x2048xf32>
    %42 = vector.broadcast %41 : vector<1x2048xf32> to vector<16x2048xf32>
    %43 = vector.broadcast %20 : vector<16x1xf32> to vector<16x2048xf32>
    %44 = arith.subf %42, %43 : vector<16x2048xf32>
    %45 = math.absf %44 : vector<16x2048xf32>
    %cst_12 = arith.constant 1.000000e+00 : f32
    %46 = vector.broadcast %cst_12 : f32 to vector<16x2048xf32>
    %47 = arith.subf %46, %45 : vector<16x2048xf32>
    %cst_13 = arith.constant 0.000000e+00 : f32
    %48 = vector.broadcast %cst_13 : f32 to vector<16x2048xf32>
    %49 = arith.maximumf %47, %48 : vector<16x2048xf32>
    %50 = arith.mulf %40, %49 : vector<16x2048xf32>
    %c0_14 = arith.constant 0 : index
    %c0_15 = arith.constant 0 : index
    %c0_16 = arith.constant 0 : index
    %51 = vector.load %arg3[%c0_14, %c0_15, %c0_16] : memref<1x8x16xf32, #tpu.memory_space<vmem>>, vector<1x8x16xf32>
    %52 = vector.shape_cast %51 : vector<1x8x16xf32> to vector<8x16xf32>
    %cst_17 = arith.constant dense<0.000000e+00> : vector<8x2048xf32>
    %53 = tpu.matmul %52, %50, %cst_17 {dimension_numbers = #tpu.dot_dimension_numbers<[1], [0], [0], [1], [0, 0, 1, 1], [], []>} : vector<8x16xf32>, vector<16x2048xf32>, vector<8x2048xf32> -> vector<8x2048xf32>
    %54 = vector.extract_strided_slice %53 {offsets = [0, 0], sizes = [4, 2048], strides = [1, 1]} : vector<8x2048xf32> to vector<4x2048xf32>
    %55 = arith.mulf %54, %31 : vector<4x2048xf32>
    %cst_18 = arith.constant dense<0.000000e+00> : vector<2048xf32>
    %56 = vector.multi_reduction <add>, %55, %cst_18 [0] : vector<4x2048xf32> to vector<2048xf32>
    %57 = vector.shape_cast %56 : vector<2048xf32> to vector<1x2048xf32>
    %58 = vector.extract_strided_slice %53 {offsets = [4, 0], sizes = [4, 2048], strides = [1, 1]} : vector<8x2048xf32> to vector<4x2048xf32>
    %59 = arith.mulf %58, %31 : vector<4x2048xf32>
    %cst_19 = arith.constant dense<0.000000e+00> : vector<2048xf32>
    %60 = vector.multi_reduction <add>, %59, %cst_19 [0] : vector<4x2048xf32> to vector<2048xf32>
    %61 = vector.shape_cast %60 : vector<2048xf32> to vector<1x2048xf32>
    %cst_20 = arith.constant 7.000000e+00 : f32
    %62 = vector.broadcast %cst_20 : f32 to vector<3x2048xf32>
    %63 = arith.mulf %5, %62 : vector<3x2048xf32>
    %cst_21 = arith.constant 0.000000e+00 : f32
    %cst_22 = arith.constant 7.000000e+00 : f32
    %64 = vector.broadcast %cst_21 : f32 to vector<3x2048xf32>
    %65 = arith.maximumf %64, %63 : vector<3x2048xf32>
    %66 = vector.broadcast %cst_22 : f32 to vector<3x2048xf32>
    %67 = arith.minimumf %66, %65 : vector<3x2048xf32>
    %68 = arith.sitofp %6 : vector<64x1xi32> to vector<64x1xf32>
    %cst_23 = arith.constant 1.250000e-01 : f32
    %69 = vector.broadcast %cst_23 : f32 to vector<64x1xf32>
    %70 = arith.mulf %68, %69 : vector<64x1xf32>
    %71 = math.floor %70 : vector<64x1xf32>
    %cst_24 = arith.constant 8.000000e+00 : f32
    %72 = vector.broadcast %cst_24 : f32 to vector<64x1xf32>
    %73 = arith.mulf %71, %72 : vector<64x1xf32>
    %74 = arith.subf %68, %73 : vector<64x1xf32>
    %75 = vector.extract_strided_slice %6 {offsets = [0, 0], sizes = [8, 1], strides = [1, 1]} : vector<64x1xi32> to vector<8x1xi32>
    %76 = arith.sitofp %75 : vector<8x1xi32> to vector<8x1xf32>
    %77 = vector.extract_strided_slice %67 {offsets = [0, 0], sizes = [1, 2048], strides = [1, 1]} : vector<3x2048xf32> to vector<1x2048xf32>
    %78 = vector.broadcast %77 : vector<1x2048xf32> to vector<8x2048xf32>
    %79 = vector.broadcast %76 : vector<8x1xf32> to vector<8x2048xf32>
    %80 = arith.subf %78, %79 : vector<8x2048xf32>
    %81 = math.absf %80 : vector<8x2048xf32>
    %cst_25 = arith.constant 1.000000e+00 : f32
    %82 = vector.broadcast %cst_25 : f32 to vector<8x2048xf32>
    %83 = arith.subf %82, %81 : vector<8x2048xf32>
    %cst_26 = arith.constant 0.000000e+00 : f32
    %84 = vector.broadcast %cst_26 : f32 to vector<8x2048xf32>
    %85 = arith.maximumf %83, %84 : vector<8x2048xf32>
    %86 = vector.extract_strided_slice %67 {offsets = [1, 0], sizes = [1, 2048], strides = [1, 1]} : vector<3x2048xf32> to vector<1x2048xf32>
    %87 = vector.broadcast %86 : vector<1x2048xf32> to vector<64x2048xf32>
    %88 = vector.broadcast %71 : vector<64x1xf32> to vector<64x2048xf32>
    %89 = arith.subf %87, %88 : vector<64x2048xf32>
    %90 = math.absf %89 : vector<64x2048xf32>
    %cst_27 = arith.constant 1.000000e+00 : f32
    %91 = vector.broadcast %cst_27 : f32 to vector<64x2048xf32>
    %92 = arith.subf %91, %90 : vector<64x2048xf32>
    %cst_28 = arith.constant 0.000000e+00 : f32
    %93 = vector.broadcast %cst_28 : f32 to vector<64x2048xf32>
    %94 = arith.maximumf %92, %93 : vector<64x2048xf32>
    %95 = vector.extract_strided_slice %67 {offsets = [2, 0], sizes = [1, 2048], strides = [1, 1]} : vector<3x2048xf32> to vector<1x2048xf32>
    %96 = vector.broadcast %95 : vector<1x2048xf32> to vector<64x2048xf32>
    %97 = vector.broadcast %74 : vector<64x1xf32> to vector<64x2048xf32>
    %98 = arith.subf %96, %97 : vector<64x2048xf32>
    %99 = math.absf %98 : vector<64x2048xf32>
    %cst_29 = arith.constant 1.000000e+00 : f32
    %100 = vector.broadcast %cst_29 : f32 to vector<64x2048xf32>
    %101 = arith.subf %100, %99 : vector<64x2048xf32>
    %cst_30 = arith.constant 0.000000e+00 : f32
    %102 = vector.broadcast %cst_30 : f32 to vector<64x2048xf32>
    %103 = arith.maximumf %101, %102 : vector<64x2048xf32>
    %104 = arith.mulf %94, %103 : vector<64x2048xf32>
    %c0_31 = arith.constant 0 : index
    %c0_32 = arith.constant 0 : index
    %c0_33 = arith.constant 0 : index
    %105 = vector.load %arg4[%c0_31, %c0_32, %c0_33] : memref<1x16x64xf32, #tpu.memory_space<vmem>>, vector<1x16x64xf32>
    %106 = vector.shape_cast %105 : vector<1x16x64xf32> to vector<16x64xf32>
    %cst_34 = arith.constant dense<0.000000e+00> : vector<16x2048xf32>
    %107 = tpu.matmul %106, %104, %cst_34 {dimension_numbers = #tpu.dot_dimension_numbers<[1], [0], [0], [1], [0, 0, 1, 1], [], []>} : vector<16x64xf32>, vector<64x2048xf32>, vector<16x2048xf32> -> vector<16x2048xf32>
    %108 = vector.extract_strided_slice %107 {offsets = [0, 0], sizes = [8, 2048], strides = [1, 1]} : vector<16x2048xf32> to vector<8x2048xf32>
    %109 = arith.mulf %108, %85 : vector<8x2048xf32>
    %cst_35 = arith.constant dense<0.000000e+00> : vector<2048xf32>
    %110 = vector.multi_reduction <add>, %109, %cst_35 [0] : vector<8x2048xf32> to vector<2048xf32>
    %111 = vector.shape_cast %110 : vector<2048xf32> to vector<1x2048xf32>
    %112 = vector.extract_strided_slice %107 {offsets = [8, 0], sizes = [8, 2048], strides = [1, 1]} : vector<16x2048xf32> to vector<8x2048xf32>
    %113 = arith.mulf %112, %85 : vector<8x2048xf32>
    %cst_36 = arith.constant dense<0.000000e+00> : vector<2048xf32>
    %114 = vector.multi_reduction <add>, %113, %cst_36 [0] : vector<8x2048xf32> to vector<2048xf32>
    %115 = vector.shape_cast %114 : vector<2048xf32> to vector<1x2048xf32>
    %116 = tpu.concatenate %57, %61, %111, %115 in 0 : vector<1x2048xf32>, vector<1x2048xf32>, vector<1x2048xf32>, vector<1x2048xf32> -> vector<4x2048xf32>
    %c0_37 = arith.constant 0 : index
    %c0_38 = arith.constant 0 : index
    %c0_39 = arith.constant 0 : index
    %117 = vector.load %arg5[%c0_37, %c0_38, %c0_39] : memref<1x4x2048xf32, #tpu.memory_space<vmem>>, vector<1x4x2048xf32>
    %118 = vector.shape_cast %117 : vector<1x4x2048xf32> to vector<4x2048xf32>
    %119 = vector.shape_cast %116 : vector<4x2048xf32> to vector<1x4x2048xf32>
    tpu.vector_store %arg5[%c0_37, %c0_38, %c0_39], %119 {strides = array<i32>} : memref<1x4x2048xf32, #tpu.memory_space<vmem>>, vector<1x4x2048xf32>,
    return
  }
  func.func @transform_0(%arg0: i32, %arg1: i32) -> (i32, i32, i32) {
    %c0_i32 = arith.constant 0 : i32
    %c0_i32_0 = arith.constant 0 : i32
    return %arg0, %c0_i32, %arg1 : i32, i32, i32
  }
  func.func @transform_1(%arg0: i32, %arg1: i32) -> (i32, i32, i32) {
    %c0_i32 = arith.constant 0 : i32
    %c0_i32_0 = arith.constant 0 : i32
    %c0_i32_1 = arith.constant 0 : i32
    return %arg0, %c0_i32, %c0_i32_0 : i32, i32, i32
  }
  func.func @transform_2(%arg0: i32, %arg1: i32) -> (i32, i32, i32) {
    %c0_i32 = arith.constant 0 : i32
    %c0_i32_0 = arith.constant 0 : i32
    %c0_i32_1 = arith.constant 0 : i32
    return %arg0, %c0_i32, %c0_i32_0 : i32, i32, i32
  }
  func.func @transform_3(%arg0: i32, %arg1: i32) -> (i32, i32, i32) {
    %c0_i32 = arith.constant 0 : i32
    %c0_i32_0 = arith.constant 0 : i32
    return %arg0, %c0_i32, %arg1 : i32, i32, i32
  }
}

</mosaic_0001>

<llo_original>
// kernel: tpu_custom_call.1
$region0: #{tpu_custom_call.1}
  #allocation0 [shape = 'u32[]', space=smem, size = 0x4, offset = 0x4, fixed_abs, tag = 'smem constant byte address 0x4 - core index']
  #allocation1 [shape = 'u32[144,128]{1,0:T(1,128)}', space=vmem, size = 0x12000, scoped, tag = 'internal scratch']
  %s0 = inlined_call_operand.vmem [shape: f32[2,3,2048], index: 0, kind: input, shape index: {}]
  %s1 = inlined_call_operand.vmem [shape: f32[2,8,16], index: 1, kind: input, shape index: {}]
  %s2 = inlined_call_operand.vmem [shape: f32[2,16,64], index: 2, kind: input, shape index: {}]
  %s3 = inlined_call_operand.hbm [shape: f32[2,4,2048], index: 3, kind: output, shape index: {}]
  %s4 = sld [smem:[#allocation0]]
  $region45: #{tpu_custom_call.1} parent=0
    _
  %s6 = ssub.s32 1, %s4
  %s7 = scalar_select 0, %s6, %s4
  $region1: #{tpu_custom_call.1} parent=0
    #allocation2 [shape = 'u8[65536]{0}', space=vmem, size = 0x10000, scoped, tag = 'output window, operand 0']
    #allocation3 [shape = 's32[2]{0}', space=sflag, size = 0x8, scoped, tag = 'scoped memory for tpu_custom_call.1']
    %8 = vsyncpa [#allocation3], 0
    %s9 = scalar_lea.sflag [#allocation3], 1
    %10 = vsyncpa %s9, 0
    loop: start=0, step=1, limit=4
    $region2: #{tpu_custom_call.1} parent=1 // loop_pre_header
      _
    $region3: #{tpu_custom_call.1} parent=1 // loop_header
      %s12 = sphi 0, %s16
      %p13 = scmp.ge.s32.totalorder %s12, 4
      %s19 = sphi 0, %s31
      %s20 = sphi 0, %s27
      %s21 = sphi 0, %s19
      %s22 = sphi 0, %s20
      %s23 = sphi 0, %s21
      %s24 = sphi 0, %s22
      %s36 = sphi 0, %s38
      %s39 = sphi 0, %s36
      %s40 = sphi 0, %s39
      %s56 = sphi 0, %s40
      %s62 = sphi 0, %s64
      %s65 = sphi 0, %s62
      %s66 = sphi 0, %s65
      %s82 = sphi 0, %s66
      %s88 = sphi 0, %s90
      %s91 = sphi 0, %s88
      %s92 = sphi 0, %s91
      %s108 = sphi 0, %s92
      %s116 = sphi 0, %s118
      %s119 = sphi 0, %s116
      %s120 = sphi 0, %s119
      %s136 = sphi 0, %s120
    $region4: #{tpu_custom_call.1} parent=1 // loop_header_branch
      %15 = sbr.rel (%p13) target = $region8
    $region5: #{tpu_custom_call.1} parent=1 // loop_body
      %s17 = ssub.s32 %s12, 1
      %s18 = ssub.s32 %s12, 2
      %s25 = sadd.s32 1, %s20
      %p26 = scmp.ge.s32.totalorder %s25, 1
      %s27 = scalar_select %p26, 0, %s25
      %s28 = sadd.s32 1, %s19
      %s29 = scalar_select %p26, %s28, %s19
      %p30 = scmp.ge.s32.totalorder %s29, 2
      %s31 = scalar_select %p30, 0, %s29
      %s32 = ssub.s32 %s19, %s31
      %s33 = ssub.s32 %s20, %s27
      %s34 = sor.u32 %s32, %s33
      %p35 = scmp.eq.s32.totalorder %s34, 0
      %s37 = sadd.s32 %s36, 1
      %s38 = scalar_select %p35, %s36, %s37
      %p41 = pneg %p35
      %p42 = scmp.eq.s32.totalorder %s12, 1
      %p43 = por %p41, %p42
      %p44 = scmp.ne.s32.totalorder %s36, %s39
      %p45 = scmp.eq.s32.totalorder %s12, 0
      %p46 = por %p44, %p45
      %p47 = scmp.ne.s32.totalorder %s36, %s39
      %p48 = scmp.eq.s32.totalorder %s17, 1
      %p49 = por %p47, %p48
      %p50 = scmp.ne.s32.totalorder %s39, %s40
      %p51 = scmp.eq.s32.totalorder %s17, 0
      %p52 = por %p50, %p51
      %p53 = scmp.ne.s32.totalorder %s39, %s40
      %p54 = scmp.eq.s32.totalorder %s18, 1
      %p55 = por %p53, %p54
      %p57 = scmp.ne.s32.totalorder %s40, %s56
      %p58 = scmp.eq.s32.totalorder %s18, 0
      %p59 = por %p57, %p58
      %s60 = ssub.s32 %s19, %s31
      %p61 = scmp.eq.s32.totalorder %s60, 0
      %s63 = sadd.s32 %s62, 1
      %s64 = scalar_select %p61, %s62, %s63
      %p67 = pneg %p61
      %p68 = scmp.eq.s32.totalorder %s12, 1
      %p69 = por %p67, %p68
      %p70 = scmp.ne.s32.totalorder %s62, %s65
      %p71 = scmp.eq.s32.totalorder %s12, 0
      %p72 = por %p70, %p71
      %p73 = scmp.ne.s32.totalorder %s62, %s65
      %p74 = scmp.eq.s32.totalorder %s17, 1
      %p75 = por %p73, %p74
      %p76 = scmp.ne.s32.totalorder %s65, %s66
      %p77 = scmp.eq.s32.totalorder %s17, 0
      %p78 = por %p76, %p77
      %p79 = scmp.ne.s32.totalorder %s65, %s66
      %p80 = scmp.eq.s32.totalorder %s18, 1
      %p81 = por %p79, %p80
      %p83 = scmp.ne.s32.totalorder %s66, %s82
      %p84 = scmp.eq.s32.totalorder %s18, 0
      %p85 = por %p83, %p84
      %s86 = ssub.s32 %s19, %s31
      %p87 = scmp.eq.s32.totalorder %s86, 0
      %s89 = sadd.s32 %s88, 1
      %s90 = scalar_select %p87, %s88, %s89
      %p93 = pneg %p87
      %p94 = scmp.eq.s32.totalorder %s12, 1
      %p95 = por %p93, %p94
      %p96 = scmp.ne.s32.totalorder %s88, %s91
      %p97 = scmp.eq.s32.totalorder %s12, 0
      %p98 = por %p96, %p97
      %p99 = scmp.ne.s32.totalorder %s88, %s91
      %p100 = scmp.eq.s32.totalorder %s17, 1
      %p101 = por %p99, %p100
      %p102 = scmp.ne.s32.totalorder %s91, %s92
      %p103 = scmp.eq.s32.totalorder %s17, 0
      %p104 = por %p102, %p103
      %p105 = scmp.ne.s32.totalorder %s91, %s92
      %p106 = scmp.eq.s32.totalorder %s18, 1
      %p107 = por %p105, %p106
      %p109 = scmp.ne.s32.totalorder %s92, %s108
      %p110 = scmp.eq.s32.totalorder %s18, 0
      %p111 = por %p109, %p110
      %s112 = ssub.s32 %s19, %s31
      %s113 = ssub.s32 %s20, %s27
      %s114 = sor.u32 %s112, %s113
      %p115 = scmp.eq.s32.totalorder %s114, 0
      %s117 = sadd.s32 %s116, 1
      %s118 = scalar_select %p115, %s116, %s117
      %p121 = pneg %p115
      %p122 = scmp.eq.s32.totalorder %s12, 1
      %p123 = por %p121, %p122
      %p124 = scmp.ne.s32.totalorder %s116, %s119
      %p125 = scmp.eq.s32.totalorder %s12, 0
      %p126 = por %p124, %p125
      %p127 = scmp.ne.s32.totalorder %s116, %s119
      %p128 = scmp.eq.s32.totalorder %s17, 1
      %p129 = por %p127, %p128
      %p130 = scmp.ne.s32.totalorder %s119, %s120
      %p131 = scmp.eq.s32.totalorder %s17, 0
      %p132 = por %p130, %p131
      %p133 = scmp.ne.s32.totalorder %s119, %s120
      %p134 = scmp.eq.s32.totalorder %s18, 1
      %p135 = por %p133, %p134
      %p137 = scmp.ne.s32.totalorder %s120, %s136
      %p138 = scmp.eq.s32.totalorder %s18, 0
      %p139 = por %p137, %p138
      %p140 = scmp.le.s32.totalorder 1, %s12
      %p141 = scmp.lt.s32.totalorder %s12, 3
      %p142 = pnand %p140, %p141
      %p143 = pneg %p142
      // Predicated region
      $region9: #{tpu_custom_call.1} parent=5 // pred_check
        _
      $region10: #{tpu_custom_call.1} parent=5 // pred_check_branch
        %145 = sbr.rel (%p142) target = $region12
      $region11: #{tpu_custom_call.1} parent=5 // pred_region
        %s146 = ssub.s32 %s12, 1
      $region12: #{tpu_custom_call.1} parent=5 // pred_fallthru
        _
      %p147 = scmp.lt.s32.totalorder %s12, 2
      // Predicated region
      $region13: #{tpu_custom_call.1} parent=5 // pred_check
        %p148 = pneg %p147
      $region14: #{tpu_custom_call.1} parent=5 // pred_check_branch
        %150 = sbr.rel (%p148) target = $region16
      $region15: #{tpu_custom_call.1} parent=5 // pred_region
        // Predicated region
        $region17: #{tpu_custom_call.1} parent=15 // pred_check
          %p151 = pneg %p46
        $region18: #{tpu_custom_call.1} parent=15 // pred_check_branch
          %153 = sbr.rel (%p151) target = $region20
        $region19: #{tpu_custom_call.1} parent=15 // pred_region
          %s154 = smul.u32 16, %s20
          %p155 = scmp.lt.s32.totalorder %s19, 1
          %s156 = scalar_select %p155, %s19, 1
          %p157 = scmp.lt.s32.totalorder %s154, 15
          %s158 = scalar_select %p157, %s154, 15
          %s159 = smul.addr %s156, 16
          %s160 = sadd.s32 %s158, %s159
          %s161 = smul.addr %s160, 4
          %s162 = scalar_lea.vmem %s0, %s161
          %s163 = smul.u32 16, %s20
        $region20: #{tpu_custom_call.1} parent=15 // pred_fallthru
          _
        // Predicated region
        $region21: #{tpu_custom_call.1} parent=15 // pred_check
          %p164 = pneg %p72
        $region22: #{tpu_custom_call.1} parent=15 // pred_check_branch
          %166 = sbr.rel (%p164) target = $region24
        $region23: #{tpu_custom_call.1} parent=15 // pred_region
          %p167 = scmp.lt.s32.totalorder %s19, 1
          %s168 = scalar_select %p167, %s19, 1
          %s169 = smul.addr %s168, 8
          %s170 = scalar_lea.vmem %s1, %s169
        $region24: #{tpu_custom_call.1} parent=15 // pred_fallthru
          _
        // Predicated region
        $region25: #{tpu_custom_call.1} parent=15 // pred_check
          %p171 = pneg %p98
        $region26: #{tpu_custom_call.1} parent=15 // pred_check_branch
          %173 = sbr.rel (%p171) target = $region28
        $region27: #{tpu_custom_call.1} parent=15 // pred_region
          %p174 = scmp.lt.s32.totalorder %s19, 1
          %s175 = scalar_select %p174, %s19, 1
          %s176 = smul.addr %s175, 2
          %s177 = smul.addr %s176, 8
          %s178 = scalar_lea.vmem %s2, %s177
        $region28: #{tpu_custom_call.1} parent=15 // pred_fallthru
          _
      $region16: #{tpu_custom_call.1} parent=5 // pred_fallthru
        _
      %p179 = scmp.le.s32.totalorder 1, %s12
      %p180 = scmp.lt.s32.totalorder %s12, 3
      %p181 = pnand %p179, %p180
      %p182 = pneg %p181
      // Predicated region
      $region29: #{tpu_custom_call.1} parent=5 // pred_check
        _
      $region30: #{tpu_custom_call.1} parent=5 // pred_check_branch
        %184 = sbr.rel (%p181) target = $region32
      $region31: #{tpu_custom_call.1} parent=5 // pred_region
        %s185 = ssub.s32 %s12, 1
        %s186 = smul.u32 16, %s22
        %p187 = scmp.lt.s32.totalorder %s21, 1
        %s188 = scalar_select %p187, %s21, 1
        %p189 = scmp.lt.s32.totalorder %s186, 15
        %s190 = scalar_select %p189, %s186, 15
        %s191 = smul.addr %s188, 16
        %s192 = sadd.s32 %s190, %s191
        %s193 = smul.addr %s192, 4
        %s194 = scalar_lea.vmem %s0, %s193
        %p195 = pneg %p52
        %p196 = pneg %p49
        %p197 = scmp.lt.s32.totalorder %s21, 1
        %s198 = scalar_select %p197, %s21, 1
        %s199 = smul.addr %s198, 8
        %s200 = scalar_lea.vmem %s1, %s199
        %p201 = pneg %p78
        %p202 = pneg %p75
        %p203 = scmp.lt.s32.totalorder %s21, 1
        %s204 = scalar_select %p203, %s21, 1
        %s205 = smul.addr %s204, 2
        %s206 = smul.addr %s205, 8
        %s207 = scalar_lea.vmem %s2, %s206
        %p208 = pneg %p104
        %p209 = pneg %p101
        %p210 = pneg %p132
        %p211 = pneg %p129
        %s212 = sand.u32 %s119, 1
        %s213 = scalar_lea.sflag [#allocation3], %s212
        %s214 = sand.u32 %s119, 1
        %s215 = smul.addr %s214, 64
        %s216 = scalar_lea.vmem [#allocation2], %s215
        %s217 = smul.u32 16, %s22
        %p218 = scmp.lt.s32.totalorder %s21, 1
        %s219 = scalar_select %p218, %s21, 1
        %p220 = scmp.lt.s32.totalorder %s217, 15
        %s221 = scalar_select %p220, %s217, 15
        %s222 = smul.addr %s219, 16
        %s223 = sadd.s32 %s221, %s222
        %s224 = smul.addr %s223, 4
        %s225 = scalar_lea.vmem %s0, %s224
        %s226 = smul.u32 16, %s22
        %p227 = scmp.lt.s32.totalorder %s21, 1
        %s228 = scalar_select %p227, %s21, 1
        %s229 = smul.addr %s228, 8
        %s230 = scalar_lea.vmem %s1, %s229
        %p231 = scmp.lt.s32.totalorder %s21, 1
        %s232 = scalar_select %p231, %s21, 1
        %s233 = smul.addr %s232, 2
        %s234 = smul.addr %s233, 8
        %s235 = scalar_lea.vmem %s2, %s234
        %s236 = smul.u32 16, %s22
        %v237 = vld [vmem:[%s225] sm:$0x77]
        %v238 = vld [vmem:[%s225 + $0x8] sm:$0x77]
        %v239 = vld [vmem:[%s225 + $0x10] sm:$0x77]
        %v240 = vld [vmem:[%s225 + $0x18] sm:$0x77]
        %v241 = vld [vmem:[%s225 + $0x20] sm:$0x77]
        %v242 = vld [vmem:[%s225 + $0x28] sm:$0x77]
        %v243 = vld [vmem:[%s225 + $0x30] sm:$0x77]
        %v244 = vld [vmem:[%s225 + $0x38] sm:$0x77]
        %v245 = vmul.f32 %v237, 0.5
        %v246 = vmul.f32 %v238, 0.5
        %v247 = vmul.f32 %v239, 0.5
        %v248 = vmul.f32 %v240, 0.5
        %v249 = vmul.f32 %v241, 0.5
        %v250 = vmul.f32 %v242, 0.5
        %v251 = vmul.f32 %v243, 0.5
        %v252 = vmul.f32 %v244, 0.5
        %v253 = vadd.f32 %v245, 0.5
        %v254 = vadd.f32 %v246, 0.5
        %v255 = vadd.f32 %v247, 0.5
        %v256 = vadd.f32 %v248, 0.5
        %v257 = vadd.f32 %v249, 0.5
        %v258 = vadd.f32 %v250, 0.5
        %v259 = vadd.f32 %v251, 0.5
        %v260 = vadd.f32 %v252, 0.5
        %v261 = vlaneseq
        %v262 = vshrl.u32 %v261, 7
        %v263 = vadd.s32 %v262, 8
        %v264 = vadd.s32 %v262, 16
        %v265 = vadd.s32 %v262, 24
        %v266 = vadd.s32 %v262, 32
        %v267 = vadd.s32 %v262, 40
        %v268 = vadd.s32 %v262, 48
        %v269 = vadd.s32 %v262, 56
        %v270 = vmul.f32 %v253, 3.0
        %v271 = vmul.f32 %v254, 3.0
        %v272 = vmul.f32 %v255, 3.0
        %v273 = vmul.f32 %v256, 3.0
        %v274 = vmul.f32 %v257, 3.0
        %v275 = vmul.f32 %v258, 3.0
        %v276 = vmul.f32 %v259, 3.0
        %v277 = vmul.f32 %v260, 3.0
        %v278 = vmax.f32 %v270, 0.0
        %v279 = vmax.f32 %v271, 0.0
        %v280 = vmax.f32 %v272, 0.0
        %v281 = vmax.f32 %v273, 0.0
        %v282 = vmax.f32 %v274, 0.0
        %v283 = vmax.f32 %v275, 0.0
        %v284 = vmax.f32 %v276, 0.0
        %v285 = vmax.f32 %v277, 0.0
        %v286 = vmin.f32 %v278, 3.0
        %v287 = vmin.f32 %v279, 3.0
        %v288 = vmin.f32 %v280, 3.0
        %v289 = vmin.f32 %v281, 3.0
        %v290 = vmin.f32 %v282, 3.0
        %v291 = vmin.f32 %v283, 3.0
        %v292 = vmin.f32 %v284, 3.0
        %v293 = vmin.f32 %v285, 3.0
        %v294 = vcvt.s32.f32 %v262
        %v295 = vcvt.s32.f32 %v263
        %v296 = vmul.f32 %v294, 0.25
        %v297 = vmul.f32 %v295, 0.25
        %v298 = vfloor.f32 %v296
        %v299 = vfloor.f32 %v297
        %v300 = vmul.f32 %v298, 4.0
        %v301 = vmul.f32 %v299, 4.0
        %v302 = vsub.f32 %v294, %v300
        %v303 = vsub.f32 %v295, %v301
        %v312 = vlaneseq
        %v313 = vshrl.u32 %v312, 7
        %v314 = vsub.s32 0, %v313
        %v315 = vrot.slane %v286, %v314
        %v316 = vlaneseq
        %v317 = vshrl.u32 %v316, 7
        %v318 = vsub.s32 4, %v317
        %v319 = vrot.slane %v286, %v318
        %v320 = vlaneseq
        %v321 = vshrl.u32 %v320, 7
        %v322 = vsub.s32 0, %v321
        %v323 = vrot.slane %v287, %v322
        %v324 = vlaneseq
        %v325 = vshrl.u32 %v324, 7
        %v326 = vsub.s32 4, %v325
        %v327 = vrot.slane %v287, %v326
        %v328 = vlaneseq
        %v329 = vshrl.u32 %v328, 7
        %v330 = vsub.s32 0, %v329
        %v331 = vrot.slane %v288, %v330
        %v332 = vlaneseq
        %v333 = vshrl.u32 %v332, 7
        %v334 = vsub.s32 4, %v333
        %v335 = vrot.slane %v288, %v334
        %v336 = vlaneseq
        %v337 = vshrl.u32 %v336, 7
        %v338 = vsub.s32 0, %v337
        %v339 = vrot.slane %v289, %v338
        %v340 = vlaneseq
        %v341 = vshrl.u32 %v340, 7
        %v342 = vsub.s32 4, %v341
        %v343 = vrot.slane %v289, %v342
        %v344 = vlaneseq
        %v345 = vshrl.u32 %v344, 7
        %v346 = vsub.s32 0, %v345
        %v347 = vrot.slane %v290, %v346
        %v348 = vlaneseq
        %v349 = vshrl.u32 %v348, 7
        %v350 = vsub.s32 4, %v349
        %v351 = vrot.slane %v290, %v350
        %v352 = vlaneseq
        %v353 = vshrl.u32 %v352, 7
        %v354 = vsub.s32 0, %v353
        %v355 = vrot.slane %v291, %v354
        %v356 = vlaneseq
        %v357 = vshrl.u32 %v356, 7
        %v358 = vsub.s32 4, %v357
        %v359 = vrot.slane %v291, %v358
        %v360 = vlaneseq
        %v361 = vshrl.u32 %v360, 7
        %v362 = vsub.s32 0, %v361
        %v363 = vrot.slane %v292, %v362
        %v364 = vlaneseq
        %v365 = vshrl.u32 %v364, 7
        %v366 = vsub.s32 4, %v365
        %v367 = vrot.slane %v292, %v366
        %v368 = vlaneseq
        %v369 = vshrl.u32 %v368, 7
        %v370 = vsub.s32 0, %v369
        %v371 = vrot.slane %v293, %v370
        %v372 = vlaneseq
        %v373 = vshrl.u32 %v372, 7
        %v374 = vsub.s32 4, %v373
        %v375 = vrot.slane %v293, %v374
        %v392 = vlaneseq
        %v393 = vshrl.u32 %v392, 7
        %v394 = vsub.s32 0, %v393
        %v395 = vrot.slane %v315, %v394
        %v396 = vlaneseq
        %v397 = vshrl.u32 %v396, 7
        %v398 = vsub.s32 0, %v397
        %v399 = vrot.slane %v319, %v398
        %v400 = vlaneseq
        %v401 = vshrl.u32 %v400, 7
        %v402 = vsub.s32 0, %v401
        %v403 = vrot.slane %v323, %v402
        %v404 = vlaneseq
        %v405 = vshrl.u32 %v404, 7
        %v406 = vsub.s32 0, %v405
        %v407 = vrot.slane %v327, %v406
        %v408 = vlaneseq
        %v409 = vshrl.u32 %v408, 7
        %v410 = vsub.s32 0, %v409
        %v411 = vrot.slane %v331, %v410
        %v412 = vlaneseq
        %v413 = vshrl.u32 %v412, 7
        %v414 = vsub.s32 0, %v413
        %v415 = vrot.slane %v335, %v414
        %v416 = vlaneseq
        %v417 = vshrl.u32 %v416, 7
        %v418 = vsub.s32 0, %v417
        %v419 = vrot.slane %v339, %v418
        %v420 = vlaneseq
        %v421 = vshrl.u32 %v420, 7
        %v422 = vsub.s32 0, %v421
        %v423 = vrot.slane %v343, %v422
        %v424 = vlaneseq
        %v425 = vshrl.u32 %v424, 7
        %v426 = vsub.s32 0, %v425
        %v427 = vrot.slane %v347, %v426
        %v428 = vlaneseq
        %v429 = vshrl.u32 %v428, 7
        %v430 = vsub.s32 0, %v429
        %v431 = vrot.slane %v351, %v430
        %v432 = vlaneseq
        %v433 = vshrl.u32 %v432, 7
        %v434 = vsub.s32 0, %v433
        %v435 = vrot.slane %v355, %v434
        %v436 = vlaneseq
        %v437 = vshrl.u32 %v436, 7
        %v438 = vsub.s32 0, %v437
        %v439 = vrot.slane %v359, %v438
        %v440 = vlaneseq
        %v441 = vshrl.u32 %v440, 7
        %v442 = vsub.s32 0, %v441
        %v443 = vrot.slane %v363, %v442
        %v444 = vlaneseq
        %v445 = vshrl.u32 %v444, 7
        %v446 = vsub.s32 0, %v445
        %v447 = vrot.slane %v367, %v446
        %v448 = vlaneseq
        %v449 = vshrl.u32 %v448, 7
        %v450 = vsub.s32 0, %v449
        %v451 = vrot.slane %v371, %v450
        %v452 = vlaneseq
        %v453 = vshrl.u32 %v452, 7
        %v454 = vsub.s32 0, %v453
        %v455 = vrot.slane %v375, %v454
        %v456 = vsub.f32 %v395, %v294
        %v457 = vsub.f32 %v399, %v294
        %v458 = vsub.f32 %v403, %v294
        %v459 = vsub.f32 %v407, %v294
        %v460 = vsub.f32 %v411, %v294
        %v461 = vsub.f32 %v415, %v294
        %v462 = vsub.f32 %v419, %v294
        %v463 = vsub.f32 %v423, %v294
        %v464 = vsub.f32 %v427, %v294
        %v465 = vsub.f32 %v431, %v294
        %v466 = vsub.f32 %v435, %v294
        %v467 = vsub.f32 %v439, %v294
        %v468 = vsub.f32 %v443, %v294
        %v469 = vsub.f32 %v447, %v294
        %v470 = vsub.f32 %v451, %v294
        %v471 = vsub.f32 %v455, %v294
        %v472 = vand.u32 2147483647, %v456
        %v473 = vand.u32 2147483647, %v457
        %v474 = vand.u32 2147483647, %v458
        %v475 = vand.u32 2147483647, %v459
        %v476 = vand.u32 2147483647, %v460
        %v477 = vand.u32 2147483647, %v461
        %v478 = vand.u32 2147483647, %v462
        %v479 = vand.u32 2147483647, %v463
        %v480 = vand.u32 2147483647, %v464
        %v481 = vand.u32 2147483647, %v465
        %v482 = vand.u32 2147483647, %v466
        %v483 = vand.u32 2147483647, %v467
        %v484 = vand.u32 2147483647, %v468
        %v485 = vand.u32 2147483647, %v469
        %v486 = vand.u32 2147483647, %v470
        %v487 = vand.u32 2147483647, %v471
        %v488 = vsub.f32 1.0, %v472
        %v489 = vsub.f32 1.0, %v473
        %v490 = vsub.f32 1.0, %v474
        %v491 = vsub.f32 1.0, %v475
        %v492 = vsub.f32 1.0, %v476
        %v493 = vsub.f32 1.0, %v477
        %v494 = vsub.f32 1.0, %v478
        %v495 = vsub.f32 1.0, %v479
        %v496 = vsub.f32 1.0, %v480
        %v497 = vsub.f32 1.0, %v481
        %v498 = vsub.f32 1.0, %v482
        %v499 = vsub.f32 1.0, %v483
        %v500 = vsub.f32 1.0, %v484
        %v501 = vsub.f32 1.0, %v485
        %v502 = vsub.f32 1.0, %v486
        %v503 = vsub.f32 1.0, %v487
        %v504 = vmax.f32 %v488, 0.0
        %v505 = vmax.f32 %v489, 0.0
        %v506 = vmax.f32 %v490, 0.0
        %v507 = vmax.f32 %v491, 0.0
        %v508 = vmax.f32 %v492, 0.0
        %v509 = vmax.f32 %v493, 0.0
        %v510 = vmax.f32 %v494, 0.0
        %v511 = vmax.f32 %v495, 0.0
        %v512 = vmax.f32 %v496, 0.0
        %v513 = vmax.f32 %v497, 0.0
        %v514 = vmax.f32 %v498, 0.0
        %v515 = vmax.f32 %v499, 0.0
        %v516 = vmax.f32 %v500, 0.0
        %v517 = vmax.f32 %v501, 0.0
        %v518 = vmax.f32 %v502, 0.0
        %v519 = vmax.f32 %v503, 0.0
        %v520 = vlaneseq
        %v521 = vshrl.u32 %v520, 7
        %v522 = vsub.s32 1, %v521
        %v523 = vrot.slane %v286, %v522
        %v524 = vlaneseq
        %v525 = vshrl.u32 %v524, 7
        %v526 = vsub.s32 5, %v525
        %v527 = vrot.slane %v286, %v526
        %v528 = vlaneseq
        %v529 = vshrl.u32 %v528, 7
        %v530 = vsub.s32 1, %v529
        %v531 = vrot.slane %v287, %v530
        %v532 = vlaneseq
        %v533 = vshrl.u32 %v532, 7
        %v534 = vsub.s32 5, %v533
        %v535 = vrot.slane %v287, %v534
        %v536 = vlaneseq
        %v537 = vshrl.u32 %v536, 7
        %v538 = vsub.s32 1, %v537
        %v539 = vrot.slane %v288, %v538
        %v540 = vlaneseq
        %v541 = vshrl.u32 %v540, 7
        %v542 = vsub.s32 5, %v541
        %v543 = vrot.slane %v288, %v542
        %v544 = vlaneseq
        %v545 = vshrl.u32 %v544, 7
        %v546 = vsub.s32 1, %v545
        %v547 = vrot.slane %v289, %v546
        %v548 = vlaneseq
        %v549 = vshrl.u32 %v548, 7
        %v550 = vsub.s32 5, %v549
        %v551 = vrot.slane %v289, %v550
        %v552 = vlaneseq
        %v553 = vshrl.u32 %v552, 7
        %v554 = vsub.s32 1, %v553
        %v555 = vrot.slane %v290, %v554
        %v556 = vlaneseq
        %v557 = vshrl.u32 %v556, 7
        %v558 = vsub.s32 5, %v557
        %v559 = vrot.slane %v290, %v558
        %v560 = vlaneseq
        %v561 = vshrl.u32 %v560, 7
        %v562 = vsub.s32 1, %v561
        %v563 = vrot.slane %v291, %v562
        %v564 = vlaneseq
        %v565 = vshrl.u32 %v564, 7
        %v566 = vsub.s32 5, %v565
        %v567 = vrot.slane %v291, %v566
        %v568 = vlaneseq
        %v569 = vshrl.u32 %v568, 7
        %v570 = vsub.s32 1, %v569
        %v571 = vrot.slane %v292, %v570
        %v572 = vlaneseq
        %v573 = vshrl.u32 %v572, 7
        %v574 = vsub.s32 5, %v573
        %v575 = vrot.slane %v292, %v574
        %v576 = vlaneseq
        %v577 = vshrl.u32 %v576, 7
        %v578 = vsub.s32 1, %v577
        %v579 = vrot.slane %v293, %v578
        %v580 = vlaneseq
        %v581 = vshrl.u32 %v580, 7
        %v582 = vsub.s32 5, %v581
        %v583 = vrot.slane %v293, %v582
        %v600 = vlaneseq
        %v601 = vshrl.u32 %v600, 7
        %v602 = vsub.s32 1, %v601
        %v603 = vrot.slane %v523, %v602
        %v604 = vlaneseq
        %v605 = vshrl.u32 %v604, 7
        %v606 = vsub.s32 1, %v605
        %v607 = vrot.slane %v527, %v606
        %v608 = vlaneseq
        %v609 = vshrl.u32 %v608, 7
        %v610 = vsub.s32 1, %v609
        %v611 = vrot.slane %v531, %v610
        %v612 = vlaneseq
        %v613 = vshrl.u32 %v612, 7
        %v614 = vsub.s32 1, %v613
        %v615 = vrot.slane %v535, %v614
        %v616 = vlaneseq
        %v617 = vshrl.u32 %v616, 7
        %v618 = vsub.s32 1, %v617
        %v619 = vrot.slane %v539, %v618
        %v620 = vlaneseq
        %v621 = vshrl.u32 %v620, 7
        %v622 = vsub.s32 1, %v621
        %v623 = vrot.slane %v543, %v622
        %v624 = vlaneseq
        %v625 = vshrl.u32 %v624, 7
        %v626 = vsub.s32 1, %v625
        %v627 = vrot.slane %v547, %v626
        %v628 = vlaneseq
        %v629 = vshrl.u32 %v628, 7
        %v630 = vsub.s32 1, %v629
        %v631 = vrot.slane %v551, %v630
        %v632 = vlaneseq
        %v633 = vshrl.u32 %v632, 7
        %v634 = vsub.s32 1, %v633
        %v635 = vrot.slane %v555, %v634
        %v636 = vlaneseq
        %v637 = vshrl.u32 %v636, 7
        %v638 = vsub.s32 1, %v637
        %v639 = vrot.slane %v559, %v638
        %v640 = vlaneseq
        %v641 = vshrl.u32 %v640, 7
        %v642 = vsub.s32 1, %v641
        %v643 = vrot.slane %v563, %v642
        %v644 = vlaneseq
        %v645 = vshrl.u32 %v644, 7
        %v646 = vsub.s32 1, %v645
        %v647 = vrot.slane %v567, %v646
        %v648 = vlaneseq
        %v649 = vshrl.u32 %v648, 7
        %v650 = vsub.s32 1, %v649
        %v651 = vrot.slane %v571, %v650
        %v652 = vlaneseq
        %v653 = vshrl.u32 %v652, 7
        %v654 = vsub.s32 1, %v653
        %v655 = vrot.slane %v575, %v654
        %v656 = vlaneseq
        %v657 = vshrl.u32 %v656, 7
        %v658 = vsub.s32 1, %v657
        %v659 = vrot.slane %v579, %v658
        %v660 = vlaneseq
        %v661 = vshrl.u32 %v660, 7
        %v662 = vsub.s32 1, %v661
        %v663 = vrot.slane %v583, %v662
        %v664 = vsub.f32 %v603, %v298
        %v665 = vsub.f32 %v607, %v298
        %v666 = vsub.f32 %v611, %v298
        %v667 = vsub.f32 %v615, %v298
        %v668 = vsub.f32 %v619, %v298
        %v669 = vsub.f32 %v623, %v298
        %v670 = vsub.f32 %v627, %v298
        %v671 = vsub.f32 %v631, %v298
        %v672 = vsub.f32 %v635, %v298
        %v673 = vsub.f32 %v639, %v298
        %v674 = vsub.f32 %v643, %v298
        %v675 = vsub.f32 %v647, %v298
        %v676 = vsub.f32 %v651, %v298
        %v677 = vsub.f32 %v655, %v298
        %v678 = vsub.f32 %v659, %v298
        %v679 = vsub.f32 %v663, %v298
        %v680 = vsub.f32 %v603, %v299
        %v681 = vsub.f32 %v607, %v299
        %v682 = vsub.f32 %v611, %v299
        %v683 = vsub.f32 %v615, %v299
        %v684 = vsub.f32 %v619, %v299
        %v685 = vsub.f32 %v623, %v299
        %v686 = vsub.f32 %v627, %v299
        %v687 = vsub.f32 %v631, %v299
        %v688 = vsub.f32 %v635, %v299
        %v689 = vsub.f32 %v639, %v299
        %v690 = vsub.f32 %v643, %v299
        %v691 = vsub.f32 %v647, %v299
        %v692 = vsub.f32 %v651, %v299
        %v693 = vsub.f32 %v655, %v299
        %v694 = vsub.f32 %v659, %v299
        %v695 = vsub.f32 %v663, %v299
        %v696 = vand.u32 2147483647, %v664
        %v697 = vand.u32 2147483647, %v665
        %v698 = vand.u32 2147483647, %v666
        %v699 = vand.u32 2147483647, %v667
        %v700 = vand.u32 2147483647, %v668
        %v701 = vand.u32 2147483647, %v669
        %v702 = vand.u32 2147483647, %v670
        %v703 = vand.u32 2147483647, %v671
        %v704 = vand.u32 2147483647, %v672
        %v705 = vand.u32 2147483647, %v673
        %v706 = vand.u32 2147483647, %v674
        %v707 = vand.u32 2147483647, %v675
        %v708 = vand.u32 2147483647, %v676
        %v709 = vand.u32 2147483647, %v677
        %v710 = vand.u32 2147483647, %v678
        %v711 = vand.u32 2147483647, %v679
        %v712 = vand.u32 2147483647, %v680
        %v713 = vand.u32 2147483647, %v681
        %v714 = vand.u32 2147483647, %v682
        %v715 = vand.u32 2147483647, %v683
        %v716 = vand.u32 2147483647, %v684
        %v717 = vand.u32 2147483647, %v685
        %v718 = vand.u32 2147483647, %v686
        %v719 = vand.u32 2147483647, %v687
        %v720 = vand.u32 2147483647, %v688
        %v721 = vand.u32 2147483647, %v689
        %v722 = vand.u32 2147483647, %v690
        %v723 = vand.u32 2147483647, %v691
        %v724 = vand.u32 2147483647, %v692
        %v725 = vand.u32 2147483647, %v693
        %v726 = vand.u32 2147483647, %v694
        %v727 = vand.u32 2147483647, %v695
        %v728 = vsub.f32 1.0, %v696
        %v729 = vsub.f32 1.0, %v697
        %v730 = vsub.f32 1.0, %v698
        %v731 = vsub.f32 1.0, %v699
        %v732 = vsub.f32 1.0, %v700
        %v733 = vsub.f32 1.0, %v701
        %v734 = vsub.f32 1.0, %v702
        %v735 = vsub.f32 1.0, %v703
        %v736 = vsub.f32 1.0, %v704
        %v737 = vsub.f32 1.0, %v705
        %v738 = vsub.f32 1.0, %v706
        %v739 = vsub.f32 1.0, %v707
        %v740 = vsub.f32 1.0, %v708
        %v741 = vsub.f32 1.0, %v709
        %v742 = vsub.f32 1.0, %v710
        %v743 = vsub.f32 1.0, %v711
        %v744 = vsub.f32 1.0, %v712
        %v745 = vsub.f32 1.0, %v713
        %v746 = vsub.f32 1.0, %v714
        %v747 = vsub.f32 1.0, %v715
        %v748 = vsub.f32 1.0, %v716
        %v749 = vsub.f32 1.0, %v717
        %v750 = vsub.f32 1.0, %v718
        %v751 = vsub.f32 1.0, %v719
        %v752 = vsub.f32 1.0, %v720
        %v753 = vsub.f32 1.0, %v721
        %v754 = vsub.f32 1.0, %v722
        %v755 = vsub.f32 1.0, %v723
        %v756 = vsub.f32 1.0, %v724
        %v757 = vsub.f32 1.0, %v725
        %v758 = vsub.f32 1.0, %v726
        %v759 = vsub.f32 1.0, %v727
        %v760 = vmax.f32 %v728, 0.0
        %v761 = vmax.f32 %v729, 0.0
        %v762 = vmax.f32 %v730, 0.0
        %v763 = vmax.f32 %v731, 0.0
        %v764 = vmax.f32 %v732, 0.0
        %v765 = vmax.f32 %v733, 0.0
        %v766 = vmax.f32 %v734, 0.0
        %v767 = vmax.f32 %v735, 0.0
        %v768 = vmax.f32 %v736, 0.0
        %v769 = vmax.f32 %v737, 0.0
        %v770 = vmax.f32 %v738, 0.0
        %v771 = vmax.f32 %v739, 0.0
        %v772 = vmax.f32 %v740, 0.0
        %v773 = vmax.f32 %v741, 0.0
        %v774 = vmax.f32 %v742, 0.0
        %v775 = vmax.f32 %v743, 0.0
        %v776 = vmax.f32 %v744, 0.0
        %v777 = vmax.f32 %v745, 0.0
        %v778 = vmax.f32 %v746, 0.0
        %v779 = vmax.f32 %v747, 0.0
        %v780 = vmax.f32 %v748, 0.0
        %v781 = vmax.f32 %v749, 0.0
        %v782 = vmax.f32 %v750, 0.0
        %v783 = vmax.f32 %v751, 0.0
        %v784 = vmax.f32 %v752, 0.0
        %v785 = vmax.f32 %v753, 0.0
        %v786 = vmax.f32 %v754, 0.0
        %v787 = vmax.f32 %v755, 0.0
        %v788 = vmax.f32 %v756, 0.0
        %v789 = vmax.f32 %v757, 0.0
        %v790 = vmax.f32 %v758, 0.0
        %v791 = vmax.f32 %v759, 0.0
        %v792 = vlaneseq
        %v793 = vshrl.u32 %v792, 7
        %v794 = vsub.s32 2, %v793
        %v795 = vrot.slane %v286, %v794
        %v796 = vlaneseq
        %v797 = vshrl.u32 %v796, 7
        %v798 = vsub.s32 6, %v797
        %v799 = vrot.slane %v286, %v798
        %v800 = vlaneseq
        %v801 = vshrl.u32 %v800, 7
        %v802 = vsub.s32 2, %v801
        %v803 = vrot.slane %v287, %v802
        %v804 = vlaneseq
        %v805 = vshrl.u32 %v804, 7
        %v806 = vsub.s32 6, %v805
        %v807 = vrot.slane %v287, %v806
        %v808 = vlaneseq
        %v809 = vshrl.u32 %v808, 7
        %v810 = vsub.s32 2, %v809
        %v811 = vrot.slane %v288, %v810
        %v812 = vlaneseq
        %v813 = vshrl.u32 %v812, 7
        %v814 = vsub.s32 6, %v813
        %v815 = vrot.slane %v288, %v814
        %v816 = vlaneseq
        %v817 = vshrl.u32 %v816, 7
        %v818 = vsub.s32 2, %v817
        %v819 = vrot.slane %v289, %v818
        %v820 = vlaneseq
        %v821 = vshrl.u32 %v820, 7
        %v822 = vsub.s32 6, %v821
        %v823 = vrot.slane %v289, %v822
        %v824 = vlaneseq
        %v825 = vshrl.u32 %v824, 7
        %v826 = vsub.s32 2, %v825
        %v827 = vrot.slane %v290, %v826
        %v828 = vlaneseq
        %v829 = vshrl.u32 %v828, 7
        %v830 = vsub.s32 6, %v829
        %v831 = vrot.slane %v290, %v830
        %v832 = vlaneseq
        %v833 = vshrl.u32 %v832, 7
        %v834 = vsub.s32 2, %v833
        %v835 = vrot.slane %v291, %v834
        %v836 = vlaneseq
        %v837 = vshrl.u32 %v836, 7
        %v838 = vsub.s32 6, %v837
        %v839 = vrot.slane %v291, %v838
        %v840 = vlaneseq
        %v841 = vshrl.u32 %v840, 7
        %v842 = vsub.s32 2, %v841
        %v843 = vrot.slane %v292, %v842
        %v844 = vlaneseq
        %v845 = vshrl.u32 %v844, 7
        %v846 = vsub.s32 6, %v845
        %v847 = vrot.slane %v292, %v846
        %v848 = vlaneseq
        %v849 = vshrl.u32 %v848, 7
        %v850 = vsub.s32 2, %v849
        %v851 = vrot.slane %v293, %v850
        %v852 = vlaneseq
        %v853 = vshrl.u32 %v852, 7
        %v854 = vsub.s32 6, %v853
        %v855 = vrot.slane %v293, %v854
        %v872 = vlaneseq
        %v873 = vshrl.u32 %v872, 7
        %v874 = vsub.s32 2, %v873
        %v875 = vrot.slane %v795, %v874
        %v876 = vlaneseq
        %v877 = vshrl.u32 %v876, 7
        %v878 = vsub.s32 2, %v877
        %v879 = vrot.slane %v799, %v878
        %v880 = vlaneseq
        %v881 = vshrl.u32 %v880, 7
        %v882 = vsub.s32 2, %v881
        %v883 = vrot.slane %v803, %v882
        %v884 = vlaneseq
        %v885 = vshrl.u32 %v884, 7
        %v886 = vsub.s32 2, %v885
        %v887 = vrot.slane %v807, %v886
        %v888 = vlaneseq
        %v889 = vshrl.u32 %v888, 7
        %v890 = vsub.s32 2, %v889
        %v891 = vrot.slane %v811, %v890
        %v892 = vlaneseq
        %v893 = vshrl.u32 %v892, 7
        %v894 = vsub.s32 2, %v893
        %v895 = vrot.slane %v815, %v894
        %v896 = vlaneseq
        %v897 = vshrl.u32 %v896, 7
        %v898 = vsub.s32 2, %v897
        %v899 = vrot.slane %v819, %v898
        %v900 = vlaneseq
        %v901 = vshrl.u32 %v900, 7
        %v902 = vsub.s32 2, %v901
        %v903 = vrot.slane %v823, %v902
        %v904 = vlaneseq
        %v905 = vshrl.u32 %v904, 7
        %v906 = vsub.s32 2, %v905
        %v907 = vrot.slane %v827, %v906
        %v908 = vlaneseq
        %v909 = vshrl.u32 %v908, 7
        %v910 = vsub.s32 2, %v909
        %v911 = vrot.slane %v831, %v910
        %v912 = vlaneseq
        %v913 = vshrl.u32 %v912, 7
        %v914 = vsub.s32 2, %v913
        %v915 = vrot.slane %v835, %v914
        %v916 = vlaneseq
        %v917 = vshrl.u32 %v916, 7
        %v918 = vsub.s32 2, %v917
        %v919 = vrot.slane %v839, %v918
        %v920 = vlaneseq
        %v921 = vshrl.u32 %v920, 7
        %v922 = vsub.s32 2, %v921
        %v923 = vrot.slane %v843, %v922
        %v924 = vlaneseq
        %v925 = vshrl.u32 %v924, 7
        %v926 = vsub.s32 2, %v925
        %v927 = vrot.slane %v847, %v926
        %v928 = vlaneseq
        %v929 = vshrl.u32 %v928, 7
        %v930 = vsub.s32 2, %v929
        %v931 = vrot.slane %v851, %v930
        %v932 = vlaneseq
        %v933 = vshrl.u32 %v932, 7
        %v934 = vsub.s32 2, %v933
        %v935 = vrot.slane %v855, %v934
        %v936 = vsub.f32 %v875, %v302
        %v937 = vsub.f32 %v879, %v302
        %v938 = vsub.f32 %v883, %v302
        %v939 = vsub.f32 %v887, %v302
        %v940 = vsub.f32 %v891, %v302
        %v941 = vsub.f32 %v895, %v302
        %v942 = vsub.f32 %v899, %v302
        %v943 = vsub.f32 %v903, %v302
        %v944 = vsub.f32 %v907, %v302
        %v945 = vsub.f32 %v911, %v302
        %v946 = vsub.f32 %v915, %v302
        %v947 = vsub.f32 %v919, %v302
        %v948 = vsub.f32 %v923, %v302
        %v949 = vsub.f32 %v927, %v302
        %v950 = vsub.f32 %v931, %v302
        %v951 = vsub.f32 %v935, %v302
        %v952 = vsub.f32 %v875, %v303
        %v953 = vsub.f32 %v879, %v303
        %v954 = vsub.f32 %v883, %v303
        %v955 = vsub.f32 %v887, %v303
        %v956 = vsub.f32 %v891, %v303
        %v957 = vsub.f32 %v895, %v303
        %v958 = vsub.f32 %v899, %v303
        %v959 = vsub.f32 %v903, %v303
        %v960 = vsub.f32 %v907, %v303
        %v961 = vsub.f32 %v911, %v303
        %v962 = vsub.f32 %v915, %v303
        %v963 = vsub.f32 %v919, %v303
        %v964 = vsub.f32 %v923, %v303
        %v965 = vsub.f32 %v927, %v303
        %v966 = vsub.f32 %v931, %v303
        %v967 = vsub.f32 %v935, %v303
        %v968 = vand.u32 2147483647, %v936
        %v969 = vand.u32 2147483647, %v937
        %v970 = vand.u32 2147483647, %v938
        %v971 = vand.u32 2147483647, %v939
        %v972 = vand.u32 2147483647, %v940
        %v973 = vand.u32 2147483647, %v941
        %v974 = vand.u32 2147483647, %v942
        %v975 = vand.u32 2147483647, %v943
        %v976 = vand.u32 2147483647, %v944
        %v977 = vand.u32 2147483647, %v945
        %v978 = vand.u32 2147483647, %v946
        %v979 = vand.u32 2147483647, %v947
        %v980 = vand.u32 2147483647, %v948
        %v981 = vand.u32 2147483647, %v949
        %v982 = vand.u32 2147483647, %v950
        %v983 = vand.u32 2147483647, %v951
        %v984 = vand.u32 2147483647, %v952
        %v985 = vand.u32 2147483647, %v953
        %v986 = vand.u32 2147483647, %v954
        %v987 = vand.u32 2147483647, %v955
        %v988 = vand.u32 2147483647, %v956
        %v989 = vand.u32 2147483647, %v957
        %v990 = vand.u32 2147483647, %v958
        %v991 = vand.u32 2147483647, %v959
        %v992 = vand.u32 2147483647, %v960
        %v993 = vand.u32 2147483647, %v961
        %v994 = vand.u32 2147483647, %v962
        %v995 = vand.u32 2147483647, %v963
        %v996 = vand.u32 2147483647, %v964
        %v997 = vand.u32 2147483647, %v965
        %v998 = vand.u32 2147483647, %v966
        %v999 = vand.u32 2147483647, %v967
        %v1000 = vsub.f32 1.0, %v968
        %v1001 = vsub.f32 1.0, %v969
        %v1002 = vsub.f32 1.0, %v970
        %v1003 = vsub.f32 1.0, %v971
        %v1004 = vsub.f32 1.0, %v972
        %v1005 = vsub.f32 1.0, %v973
        %v1006 = vsub.f32 1.0, %v974
        %v1007 = vsub.f32 1.0, %v975
        %v1008 = vsub.f32 1.0, %v976
        %v1009 = vsub.f32 1.0, %v977
        %v1010 = vsub.f32 1.0, %v978
        %v1011 = vsub.f32 1.0, %v979
        %v1012 = vsub.f32 1.0, %v980
        %v1013 = vsub.f32 1.0, %v981
        %v1014 = vsub.f32 1.0, %v982
        %v1015 = vsub.f32 1.0, %v983
        %v1016 = vsub.f32 1.0, %v984
        %v1017 = vsub.f32 1.0, %v985
        %v1018 = vsub.f32 1.0, %v986
        %v1019 = vsub.f32 1.0, %v987
        %v1020 = vsub.f32 1.0, %v988
        %v1021 = vsub.f32 1.0, %v989
        %v1022 = vsub.f32 1.0, %v990
        %v1023 = vsub.f32 1.0, %v991
        %v1024 = vsub.f32 1.0, %v992
        %v1025 = vsub.f32 1.0, %v993
        %v1026 = vsub.f32 1.0, %v994
        %v1027 = vsub.f32 1.0, %v995
        %v1028 = vsub.f32 1.0, %v996
        %v1029 = vsub.f32 1.0, %v997
        %v1030 = vsub.f32 1.0, %v998
        %v1031 = vsub.f32 1.0, %v999
        %v1032 = vmax.f32 %v1000, 0.0
        %v1033 = vmax.f32 %v1001, 0.0
        %v1034 = vmax.f32 %v1002, 0.0
        %v1035 = vmax.f32 %v1003, 0.0
        %v1036 = vmax.f32 %v1004, 0.0
        %v1037 = vmax.f32 %v1005, 0.0
        %v1038 = vmax.f32 %v1006, 0.0
        %v1039 = vmax.f32 %v1007, 0.0
        %v1040 = vmax.f32 %v1008, 0.0
        %v1041 = vmax.f32 %v1009, 0.0
        %v1042 = vmax.f32 %v1010, 0.0
        %v1043 = vmax.f32 %v1011, 0.0
        %v1044 = vmax.f32 %v1012, 0.0
        %v1045 = vmax.f32 %v1013, 0.0
        %v1046 = vmax.f32 %v1014, 0.0
        %v1047 = vmax.f32 %v1015, 0.0
        %v1048 = vmax.f32 %v1016, 0.0
        %v1049 = vmax.f32 %v1017, 0.0
        %v1050 = vmax.f32 %v1018, 0.0
        %v1051 = vmax.f32 %v1019, 0.0
        %v1052 = vmax.f32 %v1020, 0.0
        %v1053 = vmax.f32 %v1021, 0.0
        %v1054 = vmax.f32 %v1022, 0.0
        %v1055 = vmax.f32 %v1023, 0.0
        %v1056 = vmax.f32 %v1024, 0.0
        %v1057 = vmax.f32 %v1025, 0.0
        %v1058 = vmax.f32 %v1026, 0.0
        %v1059 = vmax.f32 %v1027, 0.0
        %v1060 = vmax.f32 %v1028, 0.0
        %v1061 = vmax.f32 %v1029, 0.0
        %v1062 = vmax.f32 %v1030, 0.0
        %v1063 = vmax.f32 %v1031, 0.0
        %v1064 = vmul.f32 %v760, %v1032
        %v1065 = vmul.f32 %v761, %v1033
        %v1066 = vmul.f32 %v762, %v1034
        %v1067 = vmul.f32 %v763, %v1035
        %v1068 = vmul.f32 %v764, %v1036
        %v1069 = vmul.f32 %v765, %v1037
        %v1070 = vmul.f32 %v766, %v1038
        %v1071 = vmul.f32 %v767, %v1039
        %v1072 = vmul.f32 %v768, %v1040
        %v1073 = vmul.f32 %v769, %v1041
        %v1074 = vmul.f32 %v770, %v1042
        %v1075 = vmul.f32 %v771, %v1043
        %v1076 = vmul.f32 %v772, %v1044
        %v1077 = vmul.f32 %v773, %v1045
        %v1078 = vmul.f32 %v774, %v1046
        %v1079 = vmul.f32 %v775, %v1047
        %v1080 = vmul.f32 %v776, %v1048
        %v1081 = vmul.f32 %v777, %v1049
        %v1082 = vmul.f32 %v778, %v1050
        %v1083 = vmul.f32 %v779, %v1051
        %v1084 = vmul.f32 %v780, %v1052
        %v1085 = vmul.f32 %v781, %v1053
        %v1086 = vmul.f32 %v782, %v1054
        %v1087 = vmul.f32 %v783, %v1055
        %v1088 = vmul.f32 %v784, %v1056
        %v1089 = vmul.f32 %v785, %v1057
        %v1090 = vmul.f32 %v786, %v1058
        %v1091 = vmul.f32 %v787, %v1059
        %v1092 = vmul.f32 %v788, %v1060
        %v1093 = vmul.f32 %v789, %v1061
        %v1094 = vmul.f32 %v790, %v1062
        %v1095 = vmul.f32 %v791, %v1063
        %v1096 = vld [vmem:[%s230] sm:$0xff]
        %vm1097 = vcmask 130048
        %v1099 = vsel %vm1097, %v1096, 0
        %1101 = vmatprep.subr.mxu0 %v1065
        %1102 = vmatpush1.msra.mxu0 %v1064
        %1103 = vmatprep.subr.mxu0 %v1081
        %1104 = vmatpush1.msra.mxu0 %v1080
        %1105 = vmatprep.subr.mxu0 0.0
        %1106 = vmatpush1.msra.mxu0 0.0
        %1107 = vmatprep.subr.mxu0 0.0
        %1108 = vmatpush1.msra.mxu0 0.0
        %1109 = vmatprep.subr.mxu0 0.0
        %1110 = vmatpush1.msra.mxu0 0.0
        %1111 = vmatprep.subr.mxu0 0.0
        %1112 = vmatpush1.msra.mxu0 0.0
        %1113 = vmatprep.subr.mxu0 0.0
        %1114 = vmatpush1.msra.mxu0 0.0
        %1115 = vmatprep.subr.mxu0 0.0
        %1116 = vmatpush1.msra.mxu0 0.0
        %1117 = vmatprep.subr.mxu0 0.0
        %1118 = vmatpush1.msra.mxu0 0.0
        %1119 = vmatprep.subr.mxu0 0.0
        %1120 = vmatpush1.msra.mxu0 0.0
        %1121 = vmatprep.subr.mxu0 0.0
        %1122 = vmatpush1.msra.mxu0 0.0
        %1123 = vmatprep.subr.mxu0 0.0
        %1124 = vmatpush1.msra.mxu0 0.0
        %1125 = vmatprep.subr.mxu0 0.0
        %1126 = vmatpush1.msra.mxu0 0.0
        %1127 = vmatprep.subr.mxu0 0.0
        %1128 = vmatpush1.msra.mxu0 0.0
        %1129 = vmatprep.subr.mxu0 0.0
        %1130 = vmatpush1.msra.mxu0 0.0
        %1131 = vmatprep.subr.mxu0 0.0
        %1132 = vmatpush1.msra.mxu0 0.0
        %1133 = vmatprep.subr.mxu0 0.0
        %1134 = vmatpush1.msra.mxu0 0.0
        %1135 = vmatprep.subr.mxu0 0.0
        %1136 = vmatpush1.msra.mxu0 0.0
        %1137 = vmatprep.subr.mxu0 0.0
        %1138 = vmatpush1.msra.mxu0 0.0
        %1139 = vmatprep.subr.mxu0 0.0
        %1140 = vmatpush1.msra.mxu0 0.0
        %1141 = vmatprep.subr.mxu0 0.0
        %1142 = vmatpush1.msra.mxu0 0.0
        %1143 = vmatprep.subr.mxu0 0.0
        %1144 = vmatpush1.msra.mxu0 0.0
        %1145 = vmatprep.subr.mxu0 0.0
        %1146 = vmatpush1.msra.mxu0 0.0
        %1147 = vmatprep.subr.mxu0 0.0
        %1148 = vmatpush1.msra.mxu0 0.0
        %1149 = vmatprep.subr.mxu0 0.0
        %1150 = vmatpush1.msra.mxu0 0.0
        %1151 = vmatprep.subr.mxu0 0.0
        %1152 = vmatpush1.msra.mxu0 0.0
        %1153 = vmatprep.subr.mxu0 0.0
        %1154 = vmatpush1.msra.mxu0 0.0
        %1155 = vmatprep.subr.mxu0 0.0
        %1156 = vmatpush1.msra.mxu0 0.0
        %1157 = vmatprep.subr.mxu0 0.0
        %1158 = vmatpush1.msra.mxu0 0.0
        %1159 = vmatprep.subr.mxu0 0.0
        %1160 = vmatpush1.msra.mxu0 0.0
        %1161 = vmatprep.subr.mxu0 0.0
        %1162 = vmatpush1.msra.mxu0 0.0
        %1163 = vmatprep.subr.mxu0 0.0
        %1164 = vmatpush1.msra.mxu0 0.0
        %1165 = vmatprep.mubr.f32.mxu0 0.0
        %1166 = vmatmul.mubr.f32.gmra.mrb[0].mxu0 %v1099
        %v1167 = vpop.f32.mrb[0].mxu0
        %v1168 = vadd.f32 0.0, %v1167
        %v1169 = vpop.f32.mrb[0].mxu0
        %v1170 = vadd.f32 0.0, %v1169
        %1171 = vdwg.mxu0
        %1172 = vmatprep.subr.mxu0 %v1067
        %1173 = vmatpush1.msra.mxu0 %v1066
        %1174 = vmatprep.subr.mxu0 %v1083
        %1175 = vmatpush1.msra.mxu0 %v1082
        %1176 = vmatprep.subr.mxu0 0.0
        %1177 = vmatpush1.msra.mxu0 0.0
        %1178 = vmatprep.subr.mxu0 0.0
        %1179 = vmatpush1.msra.mxu0 0.0
        %1180 = vmatprep.subr.mxu0 0.0
        %1181 = vmatpush1.msra.mxu0 0.0
        %1182 = vmatprep.subr.mxu0 0.0
        %1183 = vmatpush1.msra.mxu0 0.0
        %1184 = vmatprep.subr.mxu0 0.0
        %1185 = vmatpush1.msra.mxu0 0.0
        %1186 = vmatprep.subr.mxu0 0.0
        %1187 = vmatpush1.msra.mxu0 0.0
        %1188 = vmatprep.subr.mxu0 0.0
        %1189 = vmatpush1.msra.mxu0 0.0
        %1190 = vmatprep.subr.mxu0 0.0
        %1191 = vmatpush1.msra.mxu0 0.0
        %1192 = vmatprep.subr.mxu0 0.0
        %1193 = vmatpush1.msra.mxu0 0.0
        %1194 = vmatprep.subr.mxu0 0.0
        %1195 = vmatpush1.msra.mxu0 0.0
        %1196 = vmatprep.subr.mxu0 0.0
        %1197 = vmatpush1.msra.mxu0 0.0
        %1198 = vmatprep.subr.mxu0 0.0
        %1199 = vmatpush1.msra.mxu0 0.0
        %1200 = vmatprep.subr.mxu0 0.0
        %1201 = vmatpush1.msra.mxu0 0.0
        %1202 = vmatprep.subr.mxu0 0.0
        %1203 = vmatpush1.msra.mxu0 0.0
        %1204 = vmatprep.subr.mxu0 0.0
        %1205 = vmatpush1.msra.mxu0 0.0
        %1206 = vmatprep.subr.mxu0 0.0
        %1207 = vmatpush1.msra.mxu0 0.0
        %1208 = vmatprep.subr.mxu0 0.0
        %1209 = vmatpush1.msra.mxu0 0.0
        %1210 = vmatprep.subr.mxu0 0.0
        %1211 = vmatpush1.msra.mxu0 0.0
        %1212 = vmatprep.subr.mxu0 0.0
        %1213 = vmatpush1.msra.mxu0 0.0
        %1214 = vmatprep.subr.mxu0 0.0
        %1215 = vmatpush1.msra.mxu0 0.0
        %1216 = vmatprep.subr.mxu0 0.0
        %1217 = vmatpush1.msra.mxu0 0.0
        %1218 = vmatprep.subr.mxu0 0.0
        %1219 = vmatpush1.msra.mxu0 0.0
        %1220 = vmatprep.subr.mxu0 0.0
        %1221 = vmatpush1.msra.mxu0 0.0
        %1222 = vmatprep.subr.mxu0 0.0
        %1223 = vmatpush1.msra.mxu0 0.0
        %1224 = vmatprep.subr.mxu0 0.0
        %1225 = vmatpush1.msra.mxu0 0.0
        %1226 = vmatprep.subr.mxu0 0.0
        %1227 = vmatpush1.msra.mxu0 0.0
        %1228 = vmatprep.subr.mxu0 0.0
        %1229 = vmatpush1.msra.mxu0 0.0
        %1230 = vmatprep.subr.mxu0 0.0
        %1231 = vmatpush1.msra.mxu0 0.0
        %1232 = vmatprep.subr.mxu0 0.0
        %1233 = vmatpush1.msra.mxu0 0.0
        %1234 = vmatprep.subr.mxu0 0.0
        %1235 = vmatpush1.msra.mxu0 0.0
        %1236 = vmatprep.mubr.f32.mxu0 0.0
        %1237 = vmatmul.mubr.f32.gmra.mrb[0].mxu0 %v1099
        %v1238 = vpop.f32.mrb[0].mxu0
        %v1239 = vadd.f32 0.0, %v1238
        %v1240 = vpop.f32.mrb[0].mxu0
        %v1241 = vadd.f32 0.0, %v1240
        %1242 = vdwg.mxu0
        %1243 = vmatprep.subr.mxu0 %v1069
        %1244 = vmatpush1.msra.mxu0 %v1068
        %1245 = vmatprep.subr.mxu0 %v1085
        %1246 = vmatpush1.msra.mxu0 %v1084
        %1247 = vmatprep.subr.mxu0 0.0
        %1248 = vmatpush1.msra.mxu0 0.0
        %1249 = vmatprep.subr.mxu0 0.0
        %1250 = vmatpush1.msra.mxu0 0.0
        %1251 = vmatprep.subr.mxu0 0.0
        %1252 = vmatpush1.msra.mxu0 0.0
        %1253 = vmatprep.subr.mxu0 0.0
        %1254 = vmatpush1.msra.mxu0 0.0
        %1255 = vmatprep.subr.mxu0 0.0
        %1256 = vmatpush1.msra.mxu0 0.0
        %1257 = vmatprep.subr.mxu0 0.0
        %1258 = vmatpush1.msra.mxu0 0.0
        %1259 = vmatprep.subr.mxu0 0.0
        %1260 = vmatpush1.msra.mxu0 0.0
        %1261 = vmatprep.subr.mxu0 0.0
        %1262 = vmatpush1.msra.mxu0 0.0
        %1263 = vmatprep.subr.mxu0 0.0
        %1264 = vmatpush1.msra.mxu0 0.0
        %1265 = vmatprep.subr.mxu0 0.0
        %1266 = vmatpush1.msra.mxu0 0.0
        %1267 = vmatprep.subr.mxu0 0.0
        %1268 = vmatpush1.msra.mxu0 0.0
        %1269 = vmatprep.subr.mxu0 0.0
        %1270 = vmatpush1.msra.mxu0 0.0
        %1271 = vmatprep.subr.mxu0 0.0
        %1272 = vmatpush1.msra.mxu0 0.0
        %1273 = vmatprep.subr.mxu0 0.0
        %1274 = vmatpush1.msra.mxu0 0.0
        %1275 = vmatprep.subr.mxu0 0.0
        %1276 = vmatpush1.msra.mxu0 0.0
        %1277 = vmatprep.subr.mxu0 0.0
        %1278 = vmatpush1.msra.mxu0 0.0
        %1279 = vmatprep.subr.mxu0 0.0
        %1280 = vmatpush1.msra.mxu0 0.0
        %1281 = vmatprep.subr.mxu0 0.0
        %1282 = vmatpush1.msra.mxu0 0.0
        %1283 = vmatprep.subr.mxu0 0.0
        %1284 = vmatpush1.msra.mxu0 0.0
        %1285 = vmatprep.subr.mxu0 0.0
        %1286 = vmatpush1.msra.mxu0 0.0
        %1287 = vmatprep.subr.mxu0 0.0
        %1288 = vmatpush1.msra.mxu0 0.0
        %1289 = vmatprep.subr.mxu0 0.0
        %1290 = vmatpush1.msra.mxu0 0.0
        %1291 = vmatprep.subr.mxu0 0.0
        %1292 = vmatpush1.msra.mxu0 0.0
        %1293 = vmatprep.subr.mxu0 0.0
        %1294 = vmatpush1.msra.mxu0 0.0
        %1295 = vmatprep.subr.mxu0 0.0
        %1296 = vmatpush1.msra.mxu0 0.0
        %1297 = vmatprep.subr.mxu0 0.0
        %1298 = vmatpush1.msra.mxu0 0.0
        %1299 = vmatprep.subr.mxu0 0.0
        %1300 = vmatpush1.msra.mxu0 0.0
        %1301 = vmatprep.subr.mxu0 0.0
        %1302 = vmatpush1.msra.mxu0 0.0
        %1303 = vmatprep.subr.mxu0 0.0
        %1304 = vmatpush1.msra.mxu0 0.0
        %1305 = vmatprep.subr.mxu0 0.0
        %1306 = vmatpush1.msra.mxu0 0.0
        %1307 = vmatprep.mubr.f32.mxu0 0.0
        %1308 = vmatmul.mubr.f32.gmra.mrb[0].mxu0 %v1099
        %v1309 = vpop.f32.mrb[0].mxu0
        %v1310 = vadd.f32 0.0, %v1309
        %v1311 = vpop.f32.mrb[0].mxu0
        %v1312 = vadd.f32 0.0, %v1311
        %1313 = vdwg.mxu0
        %1314 = vmatprep.subr.mxu0 %v1071
        %1315 = vmatpush1.msra.mxu0 %v1070
        %1316 = vmatprep.subr.mxu0 %v1087
        %1317 = vmatpush1.msra.mxu0 %v1086
        %1318 = vmatprep.subr.mxu0 0.0
        %1319 = vmatpush1.msra.mxu0 0.0
        %1320 = vmatprep.subr.mxu0 0.0
        %1321 = vmatpush1.msra.mxu0 0.0
        %1322 = vmatprep.subr.mxu0 0.0
        %1323 = vmatpush1.msra.mxu0 0.0
        %1324 = vmatprep.subr.mxu0 0.0
        %1325 = vmatpush1.msra.mxu0 0.0
        %1326 = vmatprep.subr.mxu0 0.0
        %1327 = vmatpush1.msra.mxu0 0.0
        %1328 = vmatprep.subr.mxu0 0.0
        %1329 = vmatpush1.msra.mxu0 0.0
        %1330 = vmatprep.subr.mxu0 0.0
        %1331 = vmatpush1.msra.mxu0 0.0
        %1332 = vmatprep.subr.mxu0 0.0
        %1333 = vmatpush1.msra.mxu0 0.0
        %1334 = vmatprep.subr.mxu0 0.0
        %1335 = vmatpush1.msra.mxu0 0.0
        %1336 = vmatprep.subr.mxu0 0.0
        %1337 = vmatpush1.msra.mxu0 0.0
        %1338 = vmatprep.subr.mxu0 0.0
        %1339 = vmatpush1.msra.mxu0 0.0
        %1340 = vmatprep.subr.mxu0 0.0
        %1341 = vmatpush1.msra.mxu0 0.0
        %1342 = vmatprep.subr.mxu0 0.0
        %1343 = vmatpush1.msra.mxu0 0.0
        %1344 = vmatprep.subr.mxu0 0.0
        %1345 = vmatpush1.msra.mxu0 0.0
        %1346 = vmatprep.subr.mxu0 0.0
        %1347 = vmatpush1.msra.mxu0 0.0
        %1348 = vmatprep.subr.mxu0 0.0
        %1349 = vmatpush1.msra.mxu0 0.0
        %1350 = vmatprep.subr.mxu0 0.0
        %1351 = vmatpush1.msra.mxu0 0.0
        %1352 = vmatprep.subr.mxu0 0.0
        %1353 = vmatpush1.msra.mxu0 0.0
        %1354 = vmatprep.subr.mxu0 0.0
        %1355 = vmatpush1.msra.mxu0 0.0
        %1356 = vmatprep.subr.mxu0 0.0
        %1357 = vmatpush1.msra.mxu0 0.0
        %1358 = vmatprep.subr.mxu0 0.0
        %1359 = vmatpush1.msra.mxu0 0.0
        %1360 = vmatprep.subr.mxu0 0.0
        %1361 = vmatpush1.msra.mxu0 0.0
        %1362 = vmatprep.subr.mxu0 0.0
        %1363 = vmatpush1.msra.mxu0 0.0
        %1364 = vmatprep.subr.mxu0 0.0
        %1365 = vmatpush1.msra.mxu0 0.0
        %1366 = vmatprep.subr.mxu0 0.0
        %1367 = vmatpush1.msra.mxu0 0.0
        %1368 = vmatprep.subr.mxu0 0.0
        %1369 = vmatpush1.msra.mxu0 0.0
        %1370 = vmatprep.subr.mxu0 0.0
        %1371 = vmatpush1.msra.mxu0 0.0
        %1372 = vmatprep.subr.mxu0 0.0
        %1373 = vmatpush1.msra.mxu0 0.0
        %1374 = vmatprep.subr.mxu0 0.0
        %1375 = vmatpush1.msra.mxu0 0.0
        %1376 = vmatprep.subr.mxu0 0.0
        %1377 = vmatpush1.msra.mxu0 0.0
        %1378 = vmatprep.mubr.f32.mxu0 0.0
        %1379 = vmatmul.mubr.f32.gmra.mrb[0].mxu0 %v1099
        %v1380 = vpop.f32.mrb[0].mxu0
        %v1381 = vadd.f32 0.0, %v1380
        %v1382 = vpop.f32.mrb[0].mxu0
        %v1383 = vadd.f32 0.0, %v1382
        %1384 = vdwg.mxu0
        %1385 = vmatprep.subr.mxu0 %v1073
        %1386 = vmatpush1.msra.mxu0 %v1072
        %1387 = vmatprep.subr.mxu0 %v1089
        %1388 = vmatpush1.msra.mxu0 %v1088
        %1389 = vmatprep.subr.mxu0 0.0
        %1390 = vmatpush1.msra.mxu0 0.0
        %1391 = vmatprep.subr.mxu0 0.0
        %1392 = vmatpush1.msra.mxu0 0.0
        %1393 = vmatprep.subr.mxu0 0.0
        %1394 = vmatpush1.msra.mxu0 0.0
        %1395 = vmatprep.subr.mxu0 0.0
        %1396 = vmatpush1.msra.mxu0 0.0
        %1397 = vmatprep.subr.mxu0 0.0
        %1398 = vmatpush1.msra.mxu0 0.0
        %1399 = vmatprep.subr.mxu0 0.0
        %1400 = vmatpush1.msra.mxu0 0.0
        %1401 = vmatprep.subr.mxu0 0.0
        %1402 = vmatpush1.msra.mxu0 0.0
        %1403 = vmatprep.subr.mxu0 0.0
        %1404 = vmatpush1.msra.mxu0 0.0
        %1405 = vmatprep.subr.mxu0 0.0
        %1406 = vmatpush1.msra.mxu0 0.0
        %1407 = vmatprep.subr.mxu0 0.0
        %1408 = vmatpush1.msra.mxu0 0.0
        %1409 = vmatprep.subr.mxu0 0.0
        %1410 = vmatpush1.msra.mxu0 0.0
        %1411 = vmatprep.subr.mxu0 0.0
        %1412 = vmatpush1.msra.mxu0 0.0
        %1413 = vmatprep.subr.mxu0 0.0
        %1414 = vmatpush1.msra.mxu0 0.0
        %1415 = vmatprep.subr.mxu0 0.0
        %1416 = vmatpush1.msra.mxu0 0.0
        %1417 = vmatprep.subr.mxu0 0.0
        %1418 = vmatpush1.msra.mxu0 0.0
        %1419 = vmatprep.subr.mxu0 0.0
        %1420 = vmatpush1.msra.mxu0 0.0
        %1421 = vmatprep.subr.mxu0 0.0
        %1422 = vmatpush1.msra.mxu0 0.0
        %1423 = vmatprep.subr.mxu0 0.0
        %1424 = vmatpush1.msra.mxu0 0.0
        %1425 = vmatprep.subr.mxu0 0.0
        %1426 = vmatpush1.msra.mxu0 0.0
        %1427 = vmatprep.subr.mxu0 0.0
        %1428 = vmatpush1.msra.mxu0 0.0
        %1429 = vmatprep.subr.mxu0 0.0
        %1430 = vmatpush1.msra.mxu0 0.0
        %1431 = vmatprep.subr.mxu0 0.0
        %1432 = vmatpush1.msra.mxu0 0.0
        %1433 = vmatprep.subr.mxu0 0.0
        %1434 = vmatpush1.msra.mxu0 0.0
        %1435 = vmatprep.subr.mxu0 0.0
        %1436 = vmatpush1.msra.mxu0 0.0
        %1437 = vmatprep.subr.mxu0 0.0
        %1438 = vmatpush1.msra.mxu0 0.0
        %1439 = vmatprep.subr.mxu0 0.0
        %1440 = vmatpush1.msra.mxu0 0.0
        %1441 = vmatprep.subr.mxu0 0.0
        %1442 = vmatpush1.msra.mxu0 0.0
        %1443 = vmatprep.subr.mxu0 0.0
        %1444 = vmatpush1.msra.mxu0 0.0
        %1445 = vmatprep.subr.mxu0 0.0
        %1446 = vmatpush1.msra.mxu0 0.0
        %1447 = vmatprep.subr.mxu0 0.0
        %1448 = vmatpush1.msra.mxu0 0.0
        %1449 = vmatprep.mubr.f32.mxu0 0.0
        %1450 = vmatmul.mubr.f32.gmra.mrb[0].mxu0 %v1099
        %v1451 = vpop.f32.mrb[0].mxu0
        %v1452 = vadd.f32 0.0, %v1451
        %v1453 = vpop.f32.mrb[0].mxu0
        %v1454 = vadd.f32 0.0, %v1453
        %1455 = vdwg.mxu0
        %1456 = vmatprep.subr.mxu0 %v1075
        %1457 = vmatpush1.msra.mxu0 %v1074
        %1458 = vmatprep.subr.mxu0 %v1091
        %1459 = vmatpush1.msra.mxu0 %v1090
        %1460 = vmatprep.subr.mxu0 0.0
        %1461 = vmatpush1.msra.mxu0 0.0
        %1462 = vmatprep.subr.mxu0 0.0
        %1463 = vmatpush1.msra.mxu0 0.0
        %1464 = vmatprep.subr.mxu0 0.0
        %1465 = vmatpush1.msra.mxu0 0.0
        %1466 = vmatprep.subr.mxu0 0.0
        %1467 = vmatpush1.msra.mxu0 0.0
        %1468 = vmatprep.subr.mxu0 0.0
        %1469 = vmatpush1.msra.mxu0 0.0
        %1470 = vmatprep.subr.mxu0 0.0
        %1471 = vmatpush1.msra.mxu0 0.0
        %1472 = vmatprep.subr.mxu0 0.0
        %1473 = vmatpush1.msra.mxu0 0.0
        %1474 = vmatprep.subr.mxu0 0.0
        %1475 = vmatpush1.msra.mxu0 0.0
        %1476 = vmatprep.subr.mxu0 0.0
        %1477 = vmatpush1.msra.mxu0 0.0
        %1478 = vmatprep.subr.mxu0 0.0
        %1479 = vmatpush1.msra.mxu0 0.0
        %1480 = vmatprep.subr.mxu0 0.0
        %1481 = vmatpush1.msra.mxu0 0.0
        %1482 = vmatprep.subr.mxu0 0.0
        %1483 = vmatpush1.msra.mxu0 0.0
        %1484 = vmatprep.subr.mxu0 0.0
        %1485 = vmatpush1.msra.mxu0 0.0
        %1486 = vmatprep.subr.mxu0 0.0
        %1487 = vmatpush1.msra.mxu0 0.0
        %1488 = vmatprep.subr.mxu0 0.0
        %1489 = vmatpush1.msra.mxu0 0.0
        %1490 = vmatprep.subr.mxu0 0.0
        %1491 = vmatpush1.msra.mxu0 0.0
        %1492 = vmatprep.subr.mxu0 0.0
        %1493 = vmatpush1.msra.mxu0 0.0
        %1494 = vmatprep.subr.mxu0 0.0
        %1495 = vmatpush1.msra.mxu0 0.0
        %1496 = vmatprep.subr.mxu0 0.0
        %1497 = vmatpush1.msra.mxu0 0.0
        %1498 = vmatprep.subr.mxu0 0.0
        %1499 = vmatpush1.msra.mxu0 0.0
        %1500 = vmatprep.subr.mxu0 0.0
        %1501 = vmatpush1.msra.mxu0 0.0
        %1502 = vmatprep.subr.mxu0 0.0
        %1503 = vmatpush1.msra.mxu0 0.0
        %1504 = vmatprep.subr.mxu0 0.0
        %1505 = vmatpush1.msra.mxu0 0.0
        %1506 = vmatprep.subr.mxu0 0.0
        %1507 = vmatpush1.msra.mxu0 0.0
        %1508 = vmatprep.subr.mxu0 0.0
        %1509 = vmatpush1.msra.mxu0 0.0
        %1510 = vmatprep.subr.mxu0 0.0
        %1511 = vmatpush1.msra.mxu0 0.0
        %1512 = vmatprep.subr.mxu0 0.0
        %1513 = vmatpush1.msra.mxu0 0.0
        %1514 = vmatprep.subr.mxu0 0.0
        %1515 = vmatpush1.msra.mxu0 0.0
        %1516 = vmatprep.subr.mxu0 0.0
        %1517 = vmatpush1.msra.mxu0 0.0
        %1518 = vmatprep.subr.mxu0 0.0
        %1519 = vmatpush1.msra.mxu0 0.0
        %1520 = vmatprep.mubr.f32.mxu0 0.0
        %1521 = vmatmul.mubr.f32.gmra.mrb[0].mxu0 %v1099
        %v1522 = vpop.f32.mrb[0].mxu0
        %v1523 = vadd.f32 0.0, %v1522
        %v1524 = vpop.f32.mrb[0].mxu0
        %v1525 = vadd.f32 0.0, %v1524
        %1526 = vdwg.mxu0
        %1527 = vmatprep.subr.mxu0 %v1077
        %1528 = vmatpush1.msra.mxu0 %v1076
        %1529 = vmatprep.subr.mxu0 %v1093
        %1530 = vmatpush1.msra.mxu0 %v1092
        %1531 = vmatprep.subr.mxu0 0.0
        %1532 = vmatpush1.msra.mxu0 0.0
        %1533 = vmatprep.subr.mxu0 0.0
        %1534 = vmatpush1.msra.mxu0 0.0
        %1535 = vmatprep.subr.mxu0 0.0
        %1536 = vmatpush1.msra.mxu0 0.0
        %1537 = vmatprep.subr.mxu0 0.0
        %1538 = vmatpush1.msra.mxu0 0.0
        %1539 = vmatprep.subr.mxu0 0.0
        %1540 = vmatpush1.msra.mxu0 0.0
        %1541 = vmatprep.subr.mxu0 0.0
        %1542 = vmatpush1.msra.mxu0 0.0
        %1543 = vmatprep.subr.mxu0 0.0
        %1544 = vmatpush1.msra.mxu0 0.0
        %1545 = vmatprep.subr.mxu0 0.0
        %1546 = vmatpush1.msra.mxu0 0.0
        %1547 = vmatprep.subr.mxu0 0.0
        %1548 = vmatpush1.msra.mxu0 0.0
        %1549 = vmatprep.subr.mxu0 0.0
        %1550 = vmatpush1.msra.mxu0 0.0
        %1551 = vmatprep.subr.mxu0 0.0
        %1552 = vmatpush1.msra.mxu0 0.0
        %1553 = vmatprep.subr.mxu0 0.0
        %1554 = vmatpush1.msra.mxu0 0.0
        %1555 = vmatprep.subr.mxu0 0.0
        %1556 = vmatpush1.msra.mxu0 0.0
        %1557 = vmatprep.subr.mxu0 0.0
        %1558 = vmatpush1.msra.mxu0 0.0
        %1559 = vmatprep.subr.mxu0 0.0
        %1560 = vmatpush1.msra.mxu0 0.0
        %1561 = vmatprep.subr.mxu0 0.0
        %1562 = vmatpush1.msra.mxu0 0.0
        %1563 = vmatprep.subr.mxu0 0.0
        %1564 = vmatpush1.msra.mxu0 0.0
        %1565 = vmatprep.subr.mxu0 0.0
        %1566 = vmatpush1.msra.mxu0 0.0
        %1567 = vmatprep.subr.mxu0 0.0
        %1568 = vmatpush1.msra.mxu0 0.0
        %1569 = vmatprep.subr.mxu0 0.0
        %1570 = vmatpush1.msra.mxu0 0.0
        %1571 = vmatprep.subr.mxu0 0.0
        %1572 = vmatpush1.msra.mxu0 0.0
        %1573 = vmatprep.subr.mxu0 0.0
        %1574 = vmatpush1.msra.mxu0 0.0
        %1575 = vmatprep.subr.mxu0 0.0
        %1576 = vmatpush1.msra.mxu0 0.0
        %1577 = vmatprep.subr.mxu0 0.0
        %1578 = vmatpush1.msra.mxu0 0.0
        %1579 = vmatprep.subr.mxu0 0.0
        %1580 = vmatpush1.msra.mxu0 0.0
        %1581 = vmatprep.subr.mxu0 0.0
        %1582 = vmatpush1.msra.mxu0 0.0
        %1583 = vmatprep.subr.mxu0 0.0
        %1584 = vmatpush1.msra.mxu0 0.0
        %1585 = vmatprep.subr.mxu0 0.0
        %1586 = vmatpush1.msra.mxu0 0.0
        %1587 = vmatprep.subr.mxu0 0.0
        %1588 = vmatpush1.msra.mxu0 0.0
        %1589 = vmatprep.subr.mxu0 0.0
        %1590 = vmatpush1.msra.mxu0 0.0
        %1591 = vmatprep.mubr.f32.mxu0 0.0
        %1592 = vmatmul.mubr.f32.gmra.mrb[0].mxu0 %v1099
        %v1593 = vpop.f32.mrb[0].mxu0
        %v1594 = vadd.f32 0.0, %v1593
        %v1595 = vpop.f32.mrb[0].mxu0
        %v1596 = vadd.f32 0.0, %v1595
        %1597 = vdwg.mxu0
        %1598 = vmatprep.subr.mxu0 %v1079
        %1599 = vmatpush1.msra.mxu0 %v1078
        %1600 = vmatprep.subr.mxu0 %v1095
        %1601 = vmatpush1.msra.mxu0 %v1094
        %1602 = vmatprep.subr.mxu0 0.0
        %1603 = vmatpush1.msra.mxu0 0.0
        %1604 = vmatprep.subr.mxu0 0.0
        %1605 = vmatpush1.msra.mxu0 0.0
        %1606 = vmatprep.subr.mxu0 0.0
        %1607 = vmatpush1.msra.mxu0 0.0
        %1608 = vmatprep.subr.mxu0 0.0
        %1609 = vmatpush1.msra.mxu0 0.0
        %1610 = vmatprep.subr.mxu0 0.0
        %1611 = vmatpush1.msra.mxu0 0.0
        %1612 = vmatprep.subr.mxu0 0.0
        %1613 = vmatpush1.msra.mxu0 0.0
        %1614 = vmatprep.subr.mxu0 0.0
        %1615 = vmatpush1.msra.mxu0 0.0
        %1616 = vmatprep.subr.mxu0 0.0
        %1617 = vmatpush1.msra.mxu0 0.0
        %1618 = vmatprep.subr.mxu0 0.0
        %1619 = vmatpush1.msra.mxu0 0.0
        %1620 = vmatprep.subr.mxu0 0.0
        %1621 = vmatpush1.msra.mxu0 0.0
        %1622 = vmatprep.subr.mxu0 0.0
        %1623 = vmatpush1.msra.mxu0 0.0
        %1624 = vmatprep.subr.mxu0 0.0
        %1625 = vmatpush1.msra.mxu0 0.0
        %1626 = vmatprep.subr.mxu0 0.0
        %1627 = vmatpush1.msra.mxu0 0.0
        %1628 = vmatprep.subr.mxu0 0.0
        %1629 = vmatpush1.msra.mxu0 0.0
        %1630 = vmatprep.subr.mxu0 0.0
        %1631 = vmatpush1.msra.mxu0 0.0
        %1632 = vmatprep.subr.mxu0 0.0
        %1633 = vmatpush1.msra.mxu0 0.0
        %1634 = vmatprep.subr.mxu0 0.0
        %1635 = vmatpush1.msra.mxu0 0.0
        %1636 = vmatprep.subr.mxu0 0.0
        %1637 = vmatpush1.msra.mxu0 0.0
        %1638 = vmatprep.subr.mxu0 0.0
        %1639 = vmatpush1.msra.mxu0 0.0
        %1640 = vmatprep.subr.mxu0 0.0
        %1641 = vmatpush1.msra.mxu0 0.0
        %1642 = vmatprep.subr.mxu0 0.0
        %1643 = vmatpush1.msra.mxu0 0.0
        %1644 = vmatprep.subr.mxu0 0.0
        %1645 = vmatpush1.msra.mxu0 0.0
        %1646 = vmatprep.subr.mxu0 0.0
        %1647 = vmatpush1.msra.mxu0 0.0
        %1648 = vmatprep.subr.mxu0 0.0
        %1649 = vmatpush1.msra.mxu0 0.0
        %1650 = vmatprep.subr.mxu0 0.0
        %1651 = vmatpush1.msra.mxu0 0.0
        %1652 = vmatprep.subr.mxu0 0.0
        %1653 = vmatpush1.msra.mxu0 0.0
        %1654 = vmatprep.subr.mxu0 0.0
        %1655 = vmatpush1.msra.mxu0 0.0
        %1656 = vmatprep.subr.mxu0 0.0
        %1657 = vmatpush1.msra.mxu0 0.0
        %1658 = vmatprep.subr.mxu0 0.0
        %1659 = vmatpush1.msra.mxu0 0.0
        %1660 = vmatprep.subr.mxu0 0.0
        %1661 = vmatpush1.msra.mxu0 0.0
        %1662 = vmatprep.mubr.f32.mxu0 0.0
        %1663 = vmatmul.mubr.f32.gmra.mrb[0].mxu0 %v1099
        %v1664 = vpop.f32.mrb[0].mxu0
        %v1665 = vadd.f32 0.0, %v1664
        %v1666 = vpop.f32.mrb[0].mxu0
        %v1667 = vadd.f32 0.0, %v1666
        %1668 = vdwg.mxu0
        %v1669 = vmul.f32 %v1168, %v504
        %v1670 = vmul.f32 %v1170, %v505
        %v1671 = vmul.f32 %v1239, %v506
        %v1672 = vmul.f32 %v1241, %v507
        %v1673 = vmul.f32 %v1310, %v508
        %v1674 = vmul.f32 %v1312, %v509
        %v1675 = vmul.f32 %v1381, %v510
        %v1676 = vmul.f32 %v1383, %v511
        %v1677 = vmul.f32 %v1452, %v512
        %v1678 = vmul.f32 %v1454, %v513
        %v1679 = vmul.f32 %v1523, %v514
        %v1680 = vmul.f32 %v1525, %v515
        %v1681 = vmul.f32 %v1594, %v516
        %v1682 = vmul.f32 %v1596, %v517
        %v1683 = vmul.f32 %v1665, %v518
        %v1684 = vmul.f32 %v1667, %v519
        %vm1685 = vcmask 1043456
        %v1686 = vsel %vm1685, %v1669, 0.0
        %v1687 = vrot.slane %v1686, 4
        %v1688 = vadd.f32 %v1686, %v1687
        %v1689 = vrot.slane %v1688, 2
        %v1690 = vadd.f32 %v1688, %v1689
        %v1691 = vrot.slane %v1690, 1
        %v1692 = vadd.f32 %v1690, %v1691
        %v1693 = vsel %vm1685, %v1670, 0.0
        %v1694 = vrot.slane %v1693, 4
        %v1695 = vadd.f32 %v1693, %v1694
        %v1696 = vrot.slane %v1695, 2
        %v1697 = vadd.f32 %v1695, %v1696
        %v1698 = vrot.slane %v1697, 1
        %v1699 = vadd.f32 %v1697, %v1698
        %v1700 = vsel %vm1685, %v1671, 0.0
        %v1701 = vrot.slane %v1700, 4
        %v1702 = vadd.f32 %v1700, %v1701
        %v1703 = vrot.slane %v1702, 2
        %v1704 = vadd.f32 %v1702, %v1703
        %v1705 = vrot.slane %v1704, 1
        %v1706 = vadd.f32 %v1704, %v1705
        %v1707 = vsel %vm1685, %v1672, 0.0
        %v1708 = vrot.slane %v1707, 4
        %v1709 = vadd.f32 %v1707, %v1708
        %v1710 = vrot.slane %v1709, 2
        %v1711 = vadd.f32 %v1709, %v1710
        %v1712 = vrot.slane %v1711, 1
        %v1713 = vadd.f32 %v1711, %v1712
        %v1714 = vsel %vm1685, %v1673, 0.0
        %v1715 = vrot.slane %v1714, 4
        %v1716 = vadd.f32 %v1714, %v1715
        %v1717 = vrot.slane %v1716, 2
        %v1718 = vadd.f32 %v1716, %v1717
        %v1719 = vrot.slane %v1718, 1
        %v1720 = vadd.f32 %v1718, %v1719
        %v1721 = vsel %vm1685, %v1674, 0.0
        %v1722 = vrot.slane %v1721, 4
        %v1723 = vadd.f32 %v1721, %v1722
        %v1724 = vrot.slane %v1723, 2
        %v1725 = vadd.f32 %v1723, %v1724
        %v1726 = vrot.slane %v1725, 1
        %v1727 = vadd.f32 %v1725, %v1726
        %v1728 = vsel %vm1685, %v1675, 0.0
        %v1729 = vrot.slane %v1728, 4
        %v1730 = vadd.f32 %v1728, %v1729
        %v1731 = vrot.slane %v1730, 2
        %v1732 = vadd.f32 %v1730, %v1731
        %v1733 = vrot.slane %v1732, 1
        %v1734 = vadd.f32 %v1732, %v1733
        %v1735 = vsel %vm1685, %v1676, 0.0
        %v1736 = vrot.slane %v1735, 4
        %v1737 = vadd.f32 %v1735, %v1736
        %v1738 = vrot.slane %v1737, 2
        %v1739 = vadd.f32 %v1737, %v1738
        %v1740 = vrot.slane %v1739, 1
        %v1741 = vadd.f32 %v1739, %v1740
        %v1742 = vsel %vm1685, %v1677, 0.0
        %v1743 = vrot.slane %v1742, 4
        %v1744 = vadd.f32 %v1742, %v1743
        %v1745 = vrot.slane %v1744, 2
        %v1746 = vadd.f32 %v1744, %v1745
        %v1747 = vrot.slane %v1746, 1
        %v1748 = vadd.f32 %v1746, %v1747
        %v1749 = vsel %vm1685, %v1678, 0.0
        %v1750 = vrot.slane %v1749, 4
        %v1751 = vadd.f32 %v1749, %v1750
        %v1752 = vrot.slane %v1751, 2
        %v1753 = vadd.f32 %v1751, %v1752
        %v1754 = vrot.slane %v1753, 1
        %v1755 = vadd.f32 %v1753, %v1754
        %v1756 = vsel %vm1685, %v1679, 0.0
        %v1757 = vrot.slane %v1756, 4
        %v1758 = vadd.f32 %v1756, %v1757
        %v1759 = vrot.slane %v1758, 2
        %v1760 = vadd.f32 %v1758, %v1759
        %v1761 = vrot.slane %v1760, 1
        %v1762 = vadd.f32 %v1760, %v1761
        %v1763 = vsel %vm1685, %v1680, 0.0
        %v1764 = vrot.slane %v1763, 4
        %v1765 = vadd.f32 %v1763, %v1764
        %v1766 = vrot.slane %v1765, 2
        %v1767 = vadd.f32 %v1765, %v1766
        %v1768 = vrot.slane %v1767, 1
        %v1769 = vadd.f32 %v1767, %v1768
        %v1770 = vsel %vm1685, %v1681, 0.0
        %v1771 = vrot.slane %v1770, 4
        %v1772 = vadd.f32 %v1770, %v1771
        %v1773 = vrot.slane %v1772, 2
        %v1774 = vadd.f32 %v1772, %v1773
        %v1775 = vrot.slane %v1774, 1
        %v1776 = vadd.f32 %v1774, %v1775
        %v1777 = vsel %vm1685, %v1682, 0.0
        %v1778 = vrot.slane %v1777, 4
        %v1779 = vadd.f32 %v1777, %v1778
        %v1780 = vrot.slane %v1779, 2
        %v1781 = vadd.f32 %v1779, %v1780
        %v1782 = vrot.slane %v1781, 1
        %v1783 = vadd.f32 %v1781, %v1782
        %v1784 = vsel %vm1685, %v1683, 0.0
        %v1785 = vrot.slane %v1784, 4
        %v1786 = vadd.f32 %v1784, %v1785
        %v1787 = vrot.slane %v1786, 2
        %v1788 = vadd.f32 %v1786, %v1787
        %v1789 = vrot.slane %v1788, 1
        %v1790 = vadd.f32 %v1788, %v1789
        %v1791 = vsel %vm1685, %v1684, 0.0
        %v1792 = vrot.slane %v1791, 4
        %v1793 = vadd.f32 %v1791, %v1792
        %v1794 = vrot.slane %v1793, 2
        %v1795 = vadd.f32 %v1793, %v1794
        %v1796 = vrot.slane %v1795, 1
        %v1797 = vadd.f32 %v1795, %v1796
        %v1814 = vrot.slane %v504, 4
        %v1815 = vrot.slane %v505, 4
        %v1816 = vrot.slane %v506, 4
        %v1817 = vrot.slane %v507, 4
        %v1818 = vrot.slane %v508, 4
        %v1819 = vrot.slane %v509, 4
        %v1820 = vrot.slane %v510, 4
        %v1821 = vrot.slane %v511, 4
        %v1822 = vrot.slane %v512, 4
        %v1823 = vrot.slane %v513, 4
        %v1824 = vrot.slane %v514, 4
        %v1825 = vrot.slane %v515, 4
        %v1826 = vrot.slane %v516, 4
        %v1827 = vrot.slane %v517, 4
        %v1828 = vrot.slane %v518, 4
        %v1829 = vrot.slane %v519, 4
        %v1846 = vmul.f32 %v1168, %v1814
        %v1847 = vmul.f32 %v1170, %v1815
        %v1848 = vmul.f32 %v1239, %v1816
        %v1849 = vmul.f32 %v1241, %v1817
        %v1850 = vmul.f32 %v1310, %v1818
        %v1851 = vmul.f32 %v1312, %v1819
        %v1852 = vmul.f32 %v1381, %v1820
        %v1853 = vmul.f32 %v1383, %v1821
        %v1854 = vmul.f32 %v1452, %v1822
        %v1855 = vmul.f32 %v1454, %v1823
        %v1856 = vmul.f32 %v1523, %v1824
        %v1857 = vmul.f32 %v1525, %v1825
        %v1858 = vmul.f32 %v1594, %v1826
        %v1859 = vmul.f32 %v1596, %v1827
        %v1860 = vmul.f32 %v1665, %v1828
        %v1861 = vmul.f32 %v1667, %v1829
        %v1878 = vrot.slane %v1846, 4
        %v1879 = vrot.slane %v1847, 4
        %v1880 = vrot.slane %v1848, 4
        %v1881 = vrot.slane %v1849, 4
        %v1882 = vrot.slane %v1850, 4
        %v1883 = vrot.slane %v1851, 4
        %v1884 = vrot.slane %v1852, 4
        %v1885 = vrot.slane %v1853, 4
        %v1886 = vrot.slane %v1854, 4
        %v1887 = vrot.slane %v1855, 4
        %v1888 = vrot.slane %v1856, 4
        %v1889 = vrot.slane %v1857, 4
        %v1890 = vrot.slane %v1858, 4
        %v1891 = vrot.slane %v1859, 4
        %v1892 = vrot.slane %v1860, 4
        %v1893 = vrot.slane %v1861, 4
        %v1910 = vsel %vm1685, %v1878, 0.0
        %v1911 = vrot.slane %v1910, 4
        %v1912 = vadd.f32 %v1910, %v1911
        %v1913 = vrot.slane %v1912, 2
        %v1914 = vadd.f32 %v1912, %v1913
        %v1915 = vrot.slane %v1914, 1
        %v1916 = vadd.f32 %v1914, %v1915
        %v1917 = vsel %vm1685, %v1879, 0.0
        %v1918 = vrot.slane %v1917, 4
        %v1919 = vadd.f32 %v1917, %v1918
        %v1920 = vrot.slane %v1919, 2
        %v1921 = vadd.f32 %v1919, %v1920
        %v1922 = vrot.slane %v1921, 1
        %v1923 = vadd.f32 %v1921, %v1922
        %v1924 = vsel %vm1685, %v1880, 0.0
        %v1925 = vrot.slane %v1924, 4
        %v1926 = vadd.f32 %v1924, %v1925
        %v1927 = vrot.slane %v1926, 2
        %v1928 = vadd.f32 %v1926, %v1927
        %v1929 = vrot.slane %v1928, 1
        %v1930 = vadd.f32 %v1928, %v1929
        %v1931 = vsel %vm1685, %v1881, 0.0
        %v1932 = vrot.slane %v1931, 4
        %v1933 = vadd.f32 %v1931, %v1932
        %v1934 = vrot.slane %v1933, 2
        %v1935 = vadd.f32 %v1933, %v1934
        %v1936 = vrot.slane %v1935, 1
        %v1937 = vadd.f32 %v1935, %v1936
        %v1938 = vsel %vm1685, %v1882, 0.0
        %v1939 = vrot.slane %v1938, 4
        %v1940 = vadd.f32 %v1938, %v1939
        %v1941 = vrot.slane %v1940, 2
        %v1942 = vadd.f32 %v1940, %v1941
        %v1943 = vrot.slane %v1942, 1
        %v1944 = vadd.f32 %v1942, %v1943
        %v1945 = vsel %vm1685, %v1883, 0.0
        %v1946 = vrot.slane %v1945, 4
        %v1947 = vadd.f32 %v1945, %v1946
        %v1948 = vrot.slane %v1947, 2
        %v1949 = vadd.f32 %v1947, %v1948
        %v1950 = vrot.slane %v1949, 1
        %v1951 = vadd.f32 %v1949, %v1950
        %v1952 = vsel %vm1685, %v1884, 0.0
        %v1953 = vrot.slane %v1952, 4
        %v1954 = vadd.f32 %v1952, %v1953
        %v1955 = vrot.slane %v1954, 2
        %v1956 = vadd.f32 %v1954, %v1955
        %v1957 = vrot.slane %v1956, 1
        %v1958 = vadd.f32 %v1956, %v1957
        %v1959 = vsel %vm1685, %v1885, 0.0
        %v1960 = vrot.slane %v1959, 4
        %v1961 = vadd.f32 %v1959, %v1960
        %v1962 = vrot.slane %v1961, 2
        %v1963 = vadd.f32 %v1961, %v1962
        %v1964 = vrot.slane %v1963, 1
        %v1965 = vadd.f32 %v1963, %v1964
        %v1966 = vsel %vm1685, %v1886, 0.0
        %v1967 = vrot.slane %v1966, 4
        %v1968 = vadd.f32 %v1966, %v1967
        %v1969 = vrot.slane %v1968, 2
        %v1970 = vadd.f32 %v1968, %v1969
        %v1971 = vrot.slane %v1970, 1
        %v1972 = vadd.f32 %v1970, %v1971
        %v1973 = vsel %vm1685, %v1887, 0.0
        %v1974 = vrot.slane %v1973, 4
        %v1975 = vadd.f32 %v1973, %v1974
        %v1976 = vrot.slane %v1975, 2
        %v1977 = vadd.f32 %v1975, %v1976
        %v1978 = vrot.slane %v1977, 1
        %v1979 = vadd.f32 %v1977, %v1978
        %v1980 = vsel %vm1685, %v1888, 0.0
        %v1981 = vrot.slane %v1980, 4
        %v1982 = vadd.f32 %v1980, %v1981
        %v1983 = vrot.slane %v1982, 2
        %v1984 = vadd.f32 %v1982, %v1983
        %v1985 = vrot.slane %v1984, 1
        %v1986 = vadd.f32 %v1984, %v1985
        %v1987 = vsel %vm1685, %v1889, 0.0
        %v1988 = vrot.slane %v1987, 4
        %v1989 = vadd.f32 %v1987, %v1988
        %v1990 = vrot.slane %v1989, 2
        %v1991 = vadd.f32 %v1989, %v1990
        %v1992 = vrot.slane %v1991, 1
        %v1993 = vadd.f32 %v1991, %v1992
        %v1994 = vsel %vm1685, %v1890, 0.0
        %v1995 = vrot.slane %v1994, 4
        %v1996 = vadd.f32 %v1994, %v1995
        %v1997 = vrot.slane %v1996, 2
        %v1998 = vadd.f32 %v1996, %v1997
        %v1999 = vrot.slane %v1998, 1
        %v2000 = vadd.f32 %v1998, %v1999
        %v2001 = vsel %vm1685, %v1891, 0.0
        %v2002 = vrot.slane %v2001, 4
        %v2003 = vadd.f32 %v2001, %v2002
        %v2004 = vrot.slane %v2003, 2
        %v2005 = vadd.f32 %v2003, %v2004
        %v2006 = vrot.slane %v2005, 1
        %v2007 = vadd.f32 %v2005, %v2006
        %v2008 = vsel %vm1685, %v1892, 0.0
        %v2009 = vrot.slane %v2008, 4
        %v2010 = vadd.f32 %v2008, %v2009
        %v2011 = vrot.slane %v2010, 2
        %v2012 = vadd.f32 %v2010, %v2011
        %v2013 = vrot.slane %v2012, 1
        %v2014 = vadd.f32 %v2012, %v2013
        %v2015 = vsel %vm1685, %v1893, 0.0
        %v2016 = vrot.slane %v2015, 4
        %v2017 = vadd.f32 %v2015, %v2016
        %v2018 = vrot.slane %v2017, 2
        %v2019 = vadd.f32 %v2017, %v2018
        %v2020 = vrot.slane %v2019, 1
        %v2021 = vadd.f32 %v2019, %v2020
        %v2022 = vmul.f32 %v253, 7.0
        %v2023 = vmul.f32 %v254, 7.0
        %v2024 = vmul.f32 %v255, 7.0
        %v2025 = vmul.f32 %v256, 7.0
        %v2026 = vmul.f32 %v257, 7.0
        %v2027 = vmul.f32 %v258, 7.0
        %v2028 = vmul.f32 %v259, 7.0
        %v2029 = vmul.f32 %v260, 7.0
        %v2030 = vmax.f32 %v2022, 0.0
        %v2031 = vmax.f32 %v2023, 0.0
        %v2032 = vmax.f32 %v2024, 0.0
        %v2033 = vmax.f32 %v2025, 0.0
        %v2034 = vmax.f32 %v2026, 0.0
        %v2035 = vmax.f32 %v2027, 0.0
        %v2036 = vmax.f32 %v2028, 0.0
        %v2037 = vmax.f32 %v2029, 0.0
        %v2038 = vmin.f32 %v2030, 7.0
        %v2039 = vmin.f32 %v2031, 7.0
        %v2040 = vmin.f32 %v2032, 7.0
        %v2041 = vmin.f32 %v2033, 7.0
        %v2042 = vmin.f32 %v2034, 7.0
        %v2043 = vmin.f32 %v2035, 7.0
        %v2044 = vmin.f32 %v2036, 7.0
        %v2045 = vmin.f32 %v2037, 7.0
        %v2046 = vcvt.s32.f32 %v264
        %v2047 = vcvt.s32.f32 %v265
        %v2048 = vcvt.s32.f32 %v266
        %v2049 = vcvt.s32.f32 %v267
        %v2050 = vcvt.s32.f32 %v268
        %v2051 = vcvt.s32.f32 %v269
        %v2052 = vmul.f32 %v294, 0.125
        %v2053 = vmul.f32 %v295, 0.125
        %v2054 = vmul.f32 %v2046, 0.125
        %v2055 = vmul.f32 %v2047, 0.125
        %v2056 = vmul.f32 %v2048, 0.125
        %v2057 = vmul.f32 %v2049, 0.125
        %v2058 = vmul.f32 %v2050, 0.125
        %v2059 = vmul.f32 %v2051, 0.125
        %v2060 = vfloor.f32 %v2052
        %v2061 = vfloor.f32 %v2053
        %v2062 = vfloor.f32 %v2054
        %v2063 = vfloor.f32 %v2055
        %v2064 = vfloor.f32 %v2056
        %v2065 = vfloor.f32 %v2057
        %v2066 = vfloor.f32 %v2058
        %v2067 = vfloor.f32 %v2059
        %v2068 = vmul.f32 %v2060, 8.0
        %v2069 = vmul.f32 %v2061, 8.0
        %v2070 = vmul.f32 %v2062, 8.0
        %v2071 = vmul.f32 %v2063, 8.0
        %v2072 = vmul.f32 %v2064, 8.0
        %v2073 = vmul.f32 %v2065, 8.0
        %v2074 = vmul.f32 %v2066, 8.0
        %v2075 = vmul.f32 %v2067, 8.0
        %v2076 = vsub.f32 %v294, %v2068
        %v2077 = vsub.f32 %v295, %v2069
        %v2078 = vsub.f32 %v2046, %v2070
        %v2079 = vsub.f32 %v2047, %v2071
        %v2080 = vsub.f32 %v2048, %v2072
        %v2081 = vsub.f32 %v2049, %v2073
        %v2082 = vsub.f32 %v2050, %v2074
        %v2083 = vsub.f32 %v2051, %v2075
        %v2092 = vlaneseq
        %v2093 = vshrl.u32 %v2092, 7
        %v2094 = vsub.s32 0, %v2093
        %v2095 = vrot.slane %v2038, %v2094
        %v2096 = vlaneseq
        %v2097 = vshrl.u32 %v2096, 7
        %v2098 = vsub.s32 4, %v2097
        %v2099 = vrot.slane %v2038, %v2098
        %v2100 = vlaneseq
        %v2101 = vshrl.u32 %v2100, 7
        %v2102 = vsub.s32 0, %v2101
        %v2103 = vrot.slane %v2039, %v2102
        %v2104 = vlaneseq
        %v2105 = vshrl.u32 %v2104, 7
        %v2106 = vsub.s32 4, %v2105
        %v2107 = vrot.slane %v2039, %v2106
        %v2108 = vlaneseq
        %v2109 = vshrl.u32 %v2108, 7
        %v2110 = vsub.s32 0, %v2109
        %v2111 = vrot.slane %v2040, %v2110
        %v2112 = vlaneseq
        %v2113 = vshrl.u32 %v2112, 7
        %v2114 = vsub.s32 4, %v2113
        %v2115 = vrot.slane %v2040, %v2114
        %v2116 = vlaneseq
        %v2117 = vshrl.u32 %v2116, 7
        %v2118 = vsub.s32 0, %v2117
        %v2119 = vrot.slane %v2041, %v2118
        %v2120 = vlaneseq
        %v2121 = vshrl.u32 %v2120, 7
        %v2122 = vsub.s32 4, %v2121
        %v2123 = vrot.slane %v2041, %v2122
        %v2124 = vlaneseq
        %v2125 = vshrl.u32 %v2124, 7
        %v2126 = vsub.s32 0, %v2125
        %v2127 = vrot.slane %v2042, %v2126
        %v2128 = vlaneseq
        %v2129 = vshrl.u32 %v2128, 7
        %v2130 = vsub.s32 4, %v2129
        %v2131 = vrot.slane %v2042, %v2130
        %v2132 = vlaneseq
        %v2133 = vshrl.u32 %v2132, 7
        %v2134 = vsub.s32 0, %v2133
        %v2135 = vrot.slane %v2043, %v2134
        %v2136 = vlaneseq
        %v2137 = vshrl.u32 %v2136, 7
        %v2138 = vsub.s32 4, %v2137
        %v2139 = vrot.slane %v2043, %v2138
        %v2140 = vlaneseq
        %v2141 = vshrl.u32 %v2140, 7
        %v2142 = vsub.s32 0, %v2141
        %v2143 = vrot.slane %v2044, %v2142
        %v2144 = vlaneseq
        %v2145 = vshrl.u32 %v2144, 7
        %v2146 = vsub.s32 4, %v2145
        %v2147 = vrot.slane %v2044, %v2146
        %v2148 = vlaneseq
        %v2149 = vshrl.u32 %v2148, 7
        %v2150 = vsub.s32 0, %v2149
        %v2151 = vrot.slane %v2045, %v2150
        %v2152 = vlaneseq
        %v2153 = vshrl.u32 %v2152, 7
        %v2154 = vsub.s32 4, %v2153
        %v2155 = vrot.slane %v2045, %v2154
        %v2172 = vlaneseq
        %v2173 = vshrl.u32 %v2172, 7
        %v2174 = vsub.s32 0, %v2173
        %v2175 = vrot.slane %v2095, %v2174
        %v2176 = vlaneseq
        %v2177 = vshrl.u32 %v2176, 7
        %v2178 = vsub.s32 0, %v2177
        %v2179 = vrot.slane %v2099, %v2178
        %v2180 = vlaneseq
        %v2181 = vshrl.u32 %v2180, 7
        %v2182 = vsub.s32 0, %v2181
        %v2183 = vrot.slane %v2103, %v2182
        %v2184 = vlaneseq
        %v2185 = vshrl.u32 %v2184, 7
        %v2186 = vsub.s32 0, %v2185
        %v2187 = vrot.slane %v2107, %v2186
        %v2188 = vlaneseq
        %v2189 = vshrl.u32 %v2188, 7
        %v2190 = vsub.s32 0, %v2189
        %v2191 = vrot.slane %v2111, %v2190
        %v2192 = vlaneseq
        %v2193 = vshrl.u32 %v2192, 7
        %v2194 = vsub.s32 0, %v2193
        %v2195 = vrot.slane %v2115, %v2194
        %v2196 = vlaneseq
        %v2197 = vshrl.u32 %v2196, 7
        %v2198 = vsub.s32 0, %v2197
        %v2199 = vrot.slane %v2119, %v2198
        %v2200 = vlaneseq
        %v2201 = vshrl.u32 %v2200, 7
        %v2202 = vsub.s32 0, %v2201
        %v2203 = vrot.slane %v2123, %v2202
        %v2204 = vlaneseq
        %v2205 = vshrl.u32 %v2204, 7
        %v2206 = vsub.s32 0, %v2205
        %v2207 = vrot.slane %v2127, %v2206
        %v2208 = vlaneseq
        %v2209 = vshrl.u32 %v2208, 7
        %v2210 = vsub.s32 0, %v2209
        %v2211 = vrot.slane %v2131, %v2210
        %v2212 = vlaneseq
        %v2213 = vshrl.u32 %v2212, 7
        %v2214 = vsub.s32 0, %v2213
        %v2215 = vrot.slane %v2135, %v2214
        %v2216 = vlaneseq
        %v2217 = vshrl.u32 %v2216, 7
        %v2218 = vsub.s32 0, %v2217
        %v2219 = vrot.slane %v2139, %v2218
        %v2220 = vlaneseq
        %v2221 = vshrl.u32 %v2220, 7
        %v2222 = vsub.s32 0, %v2221
        %v2223 = vrot.slane %v2143, %v2222
        %v2224 = vlaneseq
        %v2225 = vshrl.u32 %v2224, 7
        %v2226 = vsub.s32 0, %v2225
        %v2227 = vrot.slane %v2147, %v2226
        %v2228 = vlaneseq
        %v2229 = vshrl.u32 %v2228, 7
        %v2230 = vsub.s32 0, %v2229
        %v2231 = vrot.slane %v2151, %v2230
        %v2232 = vlaneseq
        %v2233 = vshrl.u32 %v2232, 7
        %v2234 = vsub.s32 0, %v2233
        %v2235 = vrot.slane %v2155, %v2234
        %v2236 = vsub.f32 %v2175, %v294
        %v2237 = vsub.f32 %v2179, %v294
        %v2238 = vsub.f32 %v2183, %v294
        %v2239 = vsub.f32 %v2187, %v294
        %v2240 = vsub.f32 %v2191, %v294
        %v2241 = vsub.f32 %v2195, %v294
        %v2242 = vsub.f32 %v2199, %v294
        %v2243 = vsub.f32 %v2203, %v294
        %v2244 = vsub.f32 %v2207, %v294
        %v2245 = vsub.f32 %v2211, %v294
        %v2246 = vsub.f32 %v2215, %v294
        %v2247 = vsub.f32 %v2219, %v294
        %v2248 = vsub.f32 %v2223, %v294
        %v2249 = vsub.f32 %v2227, %v294
        %v2250 = vsub.f32 %v2231, %v294
        %v2251 = vsub.f32 %v2235, %v294
        %v2252 = vand.u32 2147483647, %v2236
        %v2253 = vand.u32 2147483647, %v2237
        %v2254 = vand.u32 2147483647, %v2238
        %v2255 = vand.u32 2147483647, %v2239
        %v2256 = vand.u32 2147483647, %v2240
        %v2257 = vand.u32 2147483647, %v2241
        %v2258 = vand.u32 2147483647, %v2242
        %v2259 = vand.u32 2147483647, %v2243
        %v2260 = vand.u32 2147483647, %v2244
        %v2261 = vand.u32 2147483647, %v2245
        %v2262 = vand.u32 2147483647, %v2246
        %v2263 = vand.u32 2147483647, %v2247
        %v2264 = vand.u32 2147483647, %v2248
        %v2265 = vand.u32 2147483647, %v2249
        %v2266 = vand.u32 2147483647, %v2250
        %v2267 = vand.u32 2147483647, %v2251
        %v2268 = vsub.f32 1.0, %v2252
        %v2269 = vsub.f32 1.0, %v2253
        %v2270 = vsub.f32 1.0, %v2254
        %v2271 = vsub.f32 1.0, %v2255
        %v2272 = vsub.f32 1.0, %v2256
        %v2273 = vsub.f32 1.0, %v2257
        %v2274 = vsub.f32 1.0, %v2258
        %v2275 = vsub.f32 1.0, %v2259
        %v2276 = vsub.f32 1.0, %v2260
        %v2277 = vsub.f32 1.0, %v2261
        %v2278 = vsub.f32 1.0, %v2262
        %v2279 = vsub.f32 1.0, %v2263
        %v2280 = vsub.f32 1.0, %v2264
        %v2281 = vsub.f32 1.0, %v2265
        %v2282 = vsub.f32 1.0, %v2266
        %v2283 = vsub.f32 1.0, %v2267
        %v2284 = vmax.f32 %v2268, 0.0
        %v2285 = vmax.f32 %v2269, 0.0
        %v2286 = vmax.f32 %v2270, 0.0
        %v2287 = vmax.f32 %v2271, 0.0
        %v2288 = vmax.f32 %v2272, 0.0
        %v2289 = vmax.f32 %v2273, 0.0
        %v2290 = vmax.f32 %v2274, 0.0
        %v2291 = vmax.f32 %v2275, 0.0
        %v2292 = vmax.f32 %v2276, 0.0
        %v2293 = vmax.f32 %v2277, 0.0
        %v2294 = vmax.f32 %v2278, 0.0
        %v2295 = vmax.f32 %v2279, 0.0
        %v2296 = vmax.f32 %v2280, 0.0
        %v2297 = vmax.f32 %v2281, 0.0
        %v2298 = vmax.f32 %v2282, 0.0
        %v2299 = vmax.f32 %v2283, 0.0
        %v2300 = vlaneseq
        %v2301 = vshrl.u32 %v2300, 7
        %v2302 = vsub.s32 1, %v2301
        %v2303 = vrot.slane %v2038, %v2302
        %v2304 = vlaneseq
        %v2305 = vshrl.u32 %v2304, 7
        %v2306 = vsub.s32 5, %v2305
        %v2307 = vrot.slane %v2038, %v2306
        %v2308 = vlaneseq
        %v2309 = vshrl.u32 %v2308, 7
        %v2310 = vsub.s32 1, %v2309
        %v2311 = vrot.slane %v2039, %v2310
        %v2312 = vlaneseq
        %v2313 = vshrl.u32 %v2312, 7
        %v2314 = vsub.s32 5, %v2313
        %v2315 = vrot.slane %v2039, %v2314
        %v2316 = vlaneseq
        %v2317 = vshrl.u32 %v2316, 7
        %v2318 = vsub.s32 1, %v2317
        %v2319 = vrot.slane %v2040, %v2318
        %v2320 = vlaneseq
        %v2321 = vshrl.u32 %v2320, 7
        %v2322 = vsub.s32 5, %v2321
        %v2323 = vrot.slane %v2040, %v2322
        %v2324 = vlaneseq
        %v2325 = vshrl.u32 %v2324, 7
        %v2326 = vsub.s32 1, %v2325
        %v2327 = vrot.slane %v2041, %v2326
        %v2328 = vlaneseq
        %v2329 = vshrl.u32 %v2328, 7
        %v2330 = vsub.s32 5, %v2329
        %v2331 = vrot.slane %v2041, %v2330
        %v2332 = vlaneseq
        %v2333 = vshrl.u32 %v2332, 7
        %v2334 = vsub.s32 1, %v2333
        %v2335 = vrot.slane %v2042, %v2334
        %v2336 = vlaneseq
        %v2337 = vshrl.u32 %v2336, 7
        %v2338 = vsub.s32 5, %v2337
        %v2339 = vrot.slane %v2042, %v2338
        %v2340 = vlaneseq
        %v2341 = vshrl.u32 %v2340, 7
        %v2342 = vsub.s32 1, %v2341
        %v2343 = vrot.slane %v2043, %v2342
        %v2344 = vlaneseq
        %v2345 = vshrl.u32 %v2344, 7
        %v2346 = vsub.s32 5, %v2345
        %v2347 = vrot.slane %v2043, %v2346
        %v2348 = vlaneseq
        %v2349 = vshrl.u32 %v2348, 7
        %v2350 = vsub.s32 1, %v2349
        %v2351 = vrot.slane %v2044, %v2350
        %v2352 = vlaneseq
        %v2353 = vshrl.u32 %v2352, 7
        %v2354 = vsub.s32 5, %v2353
        %v2355 = vrot.slane %v2044, %v2354
        %v2356 = vlaneseq
        %v2357 = vshrl.u32 %v2356, 7
        %v2358 = vsub.s32 1, %v2357
        %v2359 = vrot.slane %v2045, %v2358
        %v2360 = vlaneseq
        %v2361 = vshrl.u32 %v2360, 7
        %v2362 = vsub.s32 5, %v2361
        %v2363 = vrot.slane %v2045, %v2362
        %v2380 = vlaneseq
        %v2381 = vshrl.u32 %v2380, 7
        %v2382 = vsub.s32 1, %v2381
        %v2383 = vrot.slane %v2303, %v2382
        %v2384 = vlaneseq
        %v2385 = vshrl.u32 %v2384, 7
        %v2386 = vsub.s32 1, %v2385
        %v2387 = vrot.slane %v2307, %v2386
        %v2388 = vlaneseq
        %v2389 = vshrl.u32 %v2388, 7
        %v2390 = vsub.s32 1, %v2389
        %v2391 = vrot.slane %v2311, %v2390
        %v2392 = vlaneseq
        %v2393 = vshrl.u32 %v2392, 7
        %v2394 = vsub.s32 1, %v2393
        %v2395 = vrot.slane %v2315, %v2394
        %v2396 = vlaneseq
        %v2397 = vshrl.u32 %v2396, 7
        %v2398 = vsub.s32 1, %v2397
        %v2399 = vrot.slane %v2319, %v2398
        %v2400 = vlaneseq
        %v2401 = vshrl.u32 %v2400, 7
        %v2402 = vsub.s32 1, %v2401
        %v2403 = vrot.slane %v2323, %v2402
        %v2404 = vlaneseq
        %v2405 = vshrl.u32 %v2404, 7
        %v2406 = vsub.s32 1, %v2405
        %v2407 = vrot.slane %v2327, %v2406
        %v2408 = vlaneseq
        %v2409 = vshrl.u32 %v2408, 7
        %v2410 = vsub.s32 1, %v2409
        %v2411 = vrot.slane %v2331, %v2410
        %v2412 = vlaneseq
        %v2413 = vshrl.u32 %v2412, 7
        %v2414 = vsub.s32 1, %v2413
        %v2415 = vrot.slane %v2335, %v2414
        %v2416 = vlaneseq
        %v2417 = vshrl.u32 %v2416, 7
        %v2418 = vsub.s32 1, %v2417
        %v2419 = vrot.slane %v2339, %v2418
        %v2420 = vlaneseq
        %v2421 = vshrl.u32 %v2420, 7
        %v2422 = vsub.s32 1, %v2421
        %v2423 = vrot.slane %v2343, %v2422
        %v2424 = vlaneseq
        %v2425 = vshrl.u32 %v2424, 7
        %v2426 = vsub.s32 1, %v2425
        %v2427 = vrot.slane %v2347, %v2426
        %v2428 = vlaneseq
        %v2429 = vshrl.u32 %v2428, 7
        %v2430 = vsub.s32 1, %v2429
        %v2431 = vrot.slane %v2351, %v2430
        %v2432 = vlaneseq
        %v2433 = vshrl.u32 %v2432, 7
        %v2434 = vsub.s32 1, %v2433
        %v2435 = vrot.slane %v2355, %v2434
        %v2436 = vlaneseq
        %v2437 = vshrl.u32 %v2436, 7
        %v2438 = vsub.s32 1, %v2437
        %v2439 = vrot.slane %v2359, %v2438
        %v2440 = vlaneseq
        %v2441 = vshrl.u32 %v2440, 7
        %v2442 = vsub.s32 1, %v2441
        %v2443 = vrot.slane %v2363, %v2442
        %v2444 = vsub.f32 %v2383, %v2060
        %v2445 = vsub.f32 %v2387, %v2060
        %v2446 = vsub.f32 %v2391, %v2060
        %v2447 = vsub.f32 %v2395, %v2060
        %v2448 = vsub.f32 %v2399, %v2060
        %v2449 = vsub.f32 %v2403, %v2060
        %v2450 = vsub.f32 %v2407, %v2060
        %v2451 = vsub.f32 %v2411, %v2060
        %v2452 = vsub.f32 %v2415, %v2060
        %v2453 = vsub.f32 %v2419, %v2060
        %v2454 = vsub.f32 %v2423, %v2060
        %v2455 = vsub.f32 %v2427, %v2060
        %v2456 = vsub.f32 %v2431, %v2060
        %v2457 = vsub.f32 %v2435, %v2060
        %v2458 = vsub.f32 %v2439, %v2060
        %v2459 = vsub.f32 %v2443, %v2060
        %v2460 = vsub.f32 %v2383, %v2061
        %v2461 = vsub.f32 %v2387, %v2061
        %v2462 = vsub.f32 %v2391, %v2061
        %v2463 = vsub.f32 %v2395, %v2061
        %v2464 = vsub.f32 %v2399, %v2061
        %v2465 = vsub.f32 %v2403, %v2061
        %v2466 = vsub.f32 %v2407, %v2061
        %v2467 = vsub.f32 %v2411, %v2061
        %v2468 = vsub.f32 %v2415, %v2061
        %v2469 = vsub.f32 %v2419, %v2061
        %v2470 = vsub.f32 %v2423, %v2061
        %v2471 = vsub.f32 %v2427, %v2061
        %v2472 = vsub.f32 %v2431, %v2061
        %v2473 = vsub.f32 %v2435, %v2061
        %v2474 = vsub.f32 %v2439, %v2061
        %v2475 = vsub.f32 %v2443, %v2061
        %v2476 = vsub.f32 %v2383, %v2062
        %v2477 = vsub.f32 %v2387, %v2062
        %v2478 = vsub.f32 %v2391, %v2062
        %v2479 = vsub.f32 %v2395, %v2062
        %v2480 = vsub.f32 %v2399, %v2062
        %v2481 = vsub.f32 %v2403, %v2062
        %v2482 = vsub.f32 %v2407, %v2062
        %v2483 = vsub.f32 %v2411, %v2062
        %v2484 = vsub.f32 %v2415, %v2062
        %v2485 = vsub.f32 %v2419, %v2062
        %v2486 = vsub.f32 %v2423, %v2062
        %v2487 = vsub.f32 %v2427, %v2062
        %v2488 = vsub.f32 %v2431, %v2062
        %v2489 = vsub.f32 %v2435, %v2062
        %v2490 = vsub.f32 %v2439, %v2062
        %v2491 = vsub.f32 %v2443, %v2062
        %v2492 = vsub.f32 %v2383, %v2063
        %v2493 = vsub.f32 %v2387, %v2063
        %v2494 = vsub.f32 %v2391, %v2063
        %v2495 = vsub.f32 %v2395, %v2063
        %v2496 = vsub.f32 %v2399, %v2063
        %v2497 = vsub.f32 %v2403, %v2063
        %v2498 = vsub.f32 %v2407, %v2063
        %v2499 = vsub.f32 %v2411, %v2063
        %v2500 = vsub.f32 %v2415, %v2063
        %v2501 = vsub.f32 %v2419, %v2063
        %v2502 = vsub.f32 %v2423, %v2063
        %v2503 = vsub.f32 %v2427, %v2063
        %v2504 = vsub.f32 %v2431, %v2063
        %v2505 = vsub.f32 %v2435, %v2063
        %v2506 = vsub.f32 %v2439, %v2063
        %v2507 = vsub.f32 %v2443, %v2063
        %v2508 = vsub.f32 %v2383, %v2064
        %v2509 = vsub.f32 %v2387, %v2064
        %v2510 = vsub.f32 %v2391, %v2064
        %v2511 = vsub.f32 %v2395, %v2064
        %v2512 = vsub.f32 %v2399, %v2064
        %v2513 = vsub.f32 %v2403, %v2064
        %v2514 = vsub.f32 %v2407, %v2064
        %v2515 = vsub.f32 %v2411, %v2064
        %v2516 = vsub.f32 %v2415, %v2064
        %v2517 = vsub.f32 %v2419, %v2064
        %v2518 = vsub.f32 %v2423, %v2064
        %v2519 = vsub.f32 %v2427, %v2064
        %v2520 = vsub.f32 %v2431, %v2064
        %v2521 = vsub.f32 %v2435, %v2064
        %v2522 = vsub.f32 %v2439, %v2064
        %v2523 = vsub.f32 %v2443, %v2064
        %v2524 = vsub.f32 %v2383, %v2065
        %v2525 = vsub.f32 %v2387, %v2065
        %v2526 = vsub.f32 %v2391, %v2065
        %v2527 = vsub.f32 %v2395, %v2065
        %v2528 = vsub.f32 %v2399, %v2065
        %v2529 = vsub.f32 %v2403, %v2065
        %v2530 = vsub.f32 %v2407, %v2065
        %v2531 = vsub.f32 %v2411, %v2065
        %v2532 = vsub.f32 %v2415, %v2065
        %v2533 = vsub.f32 %v2419, %v2065
        %v2534 = vsub.f32 %v2423, %v2065
        %v2535 = vsub.f32 %v2427, %v2065
        %v2536 = vsub.f32 %v2431, %v2065
        %v2537 = vsub.f32 %v2435, %v2065
        %v2538 = vsub.f32 %v2439, %v2065
        %v2539 = vsub.f32 %v2443, %v2065
        %v2540 = vsub.f32 %v2383, %v2066
        %v2541 = vsub.f32 %v2387, %v2066
        %v2542 = vsub.f32 %v2391, %v2066
        %v2543 = vsub.f32 %v2395, %v2066
        %v2544 = vsub.f32 %v2399, %v2066
        %v2545 = vsub.f32 %v2403, %v2066
        %v2546 = vsub.f32 %v2407, %v2066
        %v2547 = vsub.f32 %v2411, %v2066
        %v2548 = vsub.f32 %v2415, %v2066
        %v2549 = vsub.f32 %v2419, %v2066
        %v2550 = vsub.f32 %v2423, %v2066
        %v2551 = vsub.f32 %v2427, %v2066
        %v2552 = vsub.f32 %v2431, %v2066
        %v2553 = vsub.f32 %v2435, %v2066
        %v2554 = vsub.f32 %v2439, %v2066
        %v2555 = vsub.f32 %v2443, %v2066
        %v2556 = vsub.f32 %v2383, %v2067
        %v2557 = vsub.f32 %v2387, %v2067
        %v2558 = vsub.f32 %v2391, %v2067
        %v2559 = vsub.f32 %v2395, %v2067
        %v2560 = vsub.f32 %v2399, %v2067
        %v2561 = vsub.f32 %v2403, %v2067
        %v2562 = vsub.f32 %v2407, %v2067
        %v2563 = vsub.f32 %v2411, %v2067
        %v2564 = vsub.f32 %v2415, %v2067
        %v2565 = vsub.f32 %v2419, %v2067
        %v2566 = vsub.f32 %v2423, %v2067
        %v2567 = vsub.f32 %v2427, %v2067
        %v2568 = vsub.f32 %v2431, %v2067
        %v2569 = vsub.f32 %v2435, %v2067
        %v2570 = vsub.f32 %v2439, %v2067
        %v2571 = vsub.f32 %v2443, %v2067
        %v2572 = vand.u32 2147483647, %v2444
        %v2573 = vand.u32 2147483647, %v2445
        %v2574 = vand.u32 2147483647, %v2446
        %v2575 = vand.u32 2147483647, %v2447
        %v2576 = vand.u32 2147483647, %v2448
        %v2577 = vand.u32 2147483647, %v2449
        %v2578 = vand.u32 2147483647, %v2450
        %v2579 = vand.u32 2147483647, %v2451
        %v2580 = vand.u32 2147483647, %v2452
        %v2581 = vand.u32 2147483647, %v2453
        %v2582 = vand.u32 2147483647, %v2454
        %v2583 = vand.u32 2147483647, %v2455
        %v2584 = vand.u32 2147483647, %v2456
        %v2585 = vand.u32 2147483647, %v2457
        %v2586 = vand.u32 2147483647, %v2458
        %v2587 = vand.u32 2147483647, %v2459
        %v2588 = vand.u32 2147483647, %v2460
        %v2589 = vand.u32 2147483647, %v2461
        %v2590 = vand.u32 2147483647, %v2462
        %v2591 = vand.u32 2147483647, %v2463
        %v2592 = vand.u32 2147483647, %v2464
        %v2593 = vand.u32 2147483647, %v2465
        %v2594 = vand.u32 2147483647, %v2466
        %v2595 = vand.u32 2147483647, %v2467
        %v2596 = vand.u32 2147483647, %v2468
        %v2597 = vand.u32 2147483647, %v2469
        %v2598 = vand.u32 2147483647, %v2470
        %v2599 = vand.u32 2147483647, %v2471
        %v2600 = vand.u32 2147483647, %v2472
        %v2601 = vand.u32 2147483647, %v2473
        %v2602 = vand.u32 2147483647, %v2474
        %v2603 = vand.u32 2147483647, %v2475
        %v2604 = vand.u32 2147483647, %v2476
        %v2605 = vand.u32 2147483647, %v2477
        %v2606 = vand.u32 2147483647, %v2478
        %v2607 = vand.u32 2147483647, %v2479
        %v2608 = vand.u32 2147483647, %v2480
        %v2609 = vand.u32 2147483647, %v2481
        %v2610 = vand.u32 2147483647, %v2482
        %v2611 = vand.u32 2147483647, %v2483
        %v2612 = vand.u32 2147483647, %v2484
        %v2613 = vand.u32 2147483647, %v2485
        %v2614 = vand.u32 2147483647, %v2486
        %v2615 = vand.u32 2147483647, %v2487
        %v2616 = vand.u32 2147483647, %v2488
        %v2617 = vand.u32 2147483647, %v2489
        %v2618 = vand.u32 2147483647, %v2490
        %v2619 = vand.u32 2147483647, %v2491
        %v2620 = vand.u32 2147483647, %v2492
        %v2621 = vand.u32 2147483647, %v2493
        %v2622 = vand.u32 2147483647, %v2494
        %v2623 = vand.u32 2147483647, %v2495
        %v2624 = vand.u32 2147483647, %v2496
        %v2625 = vand.u32 2147483647, %v2497
        %v2626 = vand.u32 2147483647, %v2498
        %v2627 = vand.u32 2147483647, %v2499
        %v2628 = vand.u32 2147483647, %v2500
        %v2629 = vand.u32 2147483647, %v2501
        %v2630 = vand.u32 2147483647, %v2502
        %v2631 = vand.u32 2147483647, %v2503
        %v2632 = vand.u32 2147483647, %v2504
        %v2633 = vand.u32 2147483647, %v2505
        %v2634 = vand.u32 2147483647, %v2506
        %v2635 = vand.u32 2147483647, %v2507
        %v2636 = vand.u32 2147483647, %v2508
        %v2637 = vand.u32 2147483647, %v2509
        %v2638 = vand.u32 2147483647, %v2510
        %v2639 = vand.u32 2147483647, %v2511
        %v2640 = vand.u32 2147483647, %v2512
        %v2641 = vand.u32 2147483647, %v2513
        %v2642 = vand.u32 2147483647, %v2514
        %v2643 = vand.u32 2147483647, %v2515
        %v2644 = vand.u32 2147483647, %v2516
        %v2645 = vand.u32 2147483647, %v2517
        %v2646 = vand.u32 2147483647, %v2518
        %v2647 = vand.u32 2147483647, %v2519
        %v2648 = vand.u32 2147483647, %v2520
        %v2649 = vand.u32 2147483647, %v2521
        %v2650 = vand.u32 2147483647, %v2522
        %v2651 = vand.u32 2147483647, %v2523
        %v2652 = vand.u32 2147483647, %v2524
        %v2653 = vand.u32 2147483647, %v2525
        %v2654 = vand.u32 2147483647, %v2526
        %v2655 = vand.u32 2147483647, %v2527
        %v2656 = vand.u32 2147483647, %v2528
        %v2657 = vand.u32 2147483647, %v2529
        %v2658 = vand.u32 2147483647, %v2530
        %v2659 = vand.u32 2147483647, %v2531
        %v2660 = vand.u32 2147483647, %v2532
        %v2661 = vand.u32 2147483647, %v2533
        %v2662 = vand.u32 2147483647, %v2534
        %v2663 = vand.u32 2147483647, %v2535
        %v2664 = vand.u32 2147483647, %v2536
        %v2665 = vand.u32 2147483647, %v2537
        %v2666 = vand.u32 2147483647, %v2538
        %v2667 = vand.u32 2147483647, %v2539
        %v2668 = vand.u32 2147483647, %v2540
        %v2669 = vand.u32 2147483647, %v2541
        %v2670 = vand.u32 2147483647, %v2542
        %v2671 = vand.u32 2147483647, %v2543
        %v2672 = vand.u32 2147483647, %v2544
        %v2673 = vand.u32 2147483647, %v2545
        %v2674 = vand.u32 2147483647, %v2546
        %v2675 = vand.u32 2147483647, %v2547
        %v2676 = vand.u32 2147483647, %v2548
        %v2677 = vand.u32 2147483647, %v2549
        %v2678 = vand.u32 2147483647, %v2550
        %v2679 = vand.u32 2147483647, %v2551
        %v2680 = vand.u32 2147483647, %v2552
        %v2681 = vand.u32 2147483647, %v2553
        %v2682 = vand.u32 2147483647, %v2554
        %v2683 = vand.u32 2147483647, %v2555
        %v2684 = vand.u32 2147483647, %v2556
        %v2685 = vand.u32 2147483647, %v2557
        %v2686 = vand.u32 2147483647, %v2558
        %v2687 = vand.u32 2147483647, %v2559
        %v2688 = vand.u32 2147483647, %v2560
        %v2689 = vand.u32 2147483647, %v2561
        %v2690 = vand.u32 2147483647, %v2562
        %v2691 = vand.u32 2147483647, %v2563
        %v2692 = vand.u32 2147483647, %v2564
        %v2693 = vand.u32 2147483647, %v2565
        %v2694 = vand.u32 2147483647, %v2566
        %v2695 = vand.u32 2147483647, %v2567
        %v2696 = vand.u32 2147483647, %v2568
        %v2697 = vand.u32 2147483647, %v2569
        %v2698 = vand.u32 2147483647, %v2570
        %v2699 = vand.u32 2147483647, %v2571
        %v2700 = vsub.f32 1.0, %v2572
        %v2701 = vsub.f32 1.0, %v2573
        %v2702 = vsub.f32 1.0, %v2574
        %v2703 = vsub.f32 1.0, %v2575
        %v2704 = vsub.f32 1.0, %v2576
        %v2705 = vsub.f32 1.0, %v2577
        %v2706 = vsub.f32 1.0, %v2578
        %v2707 = vsub.f32 1.0, %v2579
        %v2708 = vsub.f32 1.0, %v2580
        %v2709 = vsub.f32 1.0, %v2581
        %v2710 = vsub.f32 1.0, %v2582
        %v2711 = vsub.f32 1.0, %v2583
        %v2712 = vsub.f32 1.0, %v2584
        %v2713 = vsub.f32 1.0, %v2585
        %v2714 = vsub.f32 1.0, %v2586
        %v2715 = vsub.f32 1.0, %v2587
        %v2716 = vsub.f32 1.0, %v2588
        %v2717 = vsub.f32 1.0, %v2589
        %v2718 = vsub.f32 1.0, %v2590
        %v2719 = vsub.f32 1.0, %v2591
        %v2720 = vsub.f32 1.0, %v2592
        %v2721 = vsub.f32 1.0, %v2593
        %v2722 = vsub.f32 1.0, %v2594
        %v2723 = vsub.f32 1.0, %v2595
        %v2724 = vsub.f32 1.0, %v2596
        %v2725 = vsub.f32 1.0, %v2597
        %v2726 = vsub.f32 1.0, %v2598
        %v2727 = vsub.f32 1.0, %v2599
        %v2728 = vsub.f32 1.0, %v2600
        %v2729 = vsub.f32 1.0, %v2601
        %v2730 = vsub.f32 1.0, %v2602
        %v2731 = vsub.f32 1.0, %v2603
        %v2732 = vsub.f32 1.0, %v2604
        %v2733 = vsub.f32 1.0, %v2605
        %v2734 = vsub.f32 1.0, %v2606
        %v2735 = vsub.f32 1.0, %v2607
        %v2736 = vsub.f32 1.0, %v2608
        %v2737 = vsub.f32 1.0, %v2609
        %v2738 = vsub.f32 1.0, %v2610
        %v2739 = vsub.f32 1.0, %v2611
        %v2740 = vsub.f32 1.0, %v2612
        %v2741 = vsub.f32 1.0, %v2613
        %v2742 = vsub.f32 1.0, %v2614
        %v2743 = vsub.f32 1.0, %v2615
        %v2744 = vsub.f32 1.0, %v2616
        %v2745 = vsub.f32 1.0, %v2617
        %v2746 = vsub.f32 1.0, %v2618
        %v2747 = vsub.f32 1.0, %v2619
        %v2748 = vsub.f32 1.0, %v2620
        %v2749 = vsub.f32 1.0, %v2621
        %v2750 = vsub.f32 1.0, %v2622
        %v2751 = vsub.f32 1.0, %v2623
        %v2752 = vsub.f32 1.0, %v2624
        %v2753 = vsub.f32 1.0, %v2625
        %v2754 = vsub.f32 1.0, %v2626
        %v2755 = vsub.f32 1.0, %v2627
        %v2756 = vsub.f32 1.0, %v2628
        %v2757 = vsub.f32 1.0, %v2629
        %v2758 = vsub.f32 1.0, %v2630
        %v2759 = vsub.f32 1.0, %v2631
        %v2760 = vsub.f32 1.0, %v2632
        %v2761 = vsub.f32 1.0, %v2633
        %v2762 = vsub.f32 1.0, %v2634
        %v2763 = vsub.f32 1.0, %v2635
        %v2764 = vsub.f32 1.0, %v2636
        %v2765 = vsub.f32 1.0, %v2637
        %v2766 = vsub.f32 1.0, %v2638
        %v2767 = vsub.f32 1.0, %v2639
        %v2768 = vsub.f32 1.0, %v2640
        %v2769 = vsub.f32 1.0, %v2641
        %v2770 = vsub.f32 1.0, %v2642
        %v2771 = vsub.f32 1.0, %v2643
        %v2772 = vsub.f32 1.0, %v2644
        %v2773 = vsub.f32 1.0, %v2645
        %v2774 = vsub.f32 1.0, %v2646
        %v2775 = vsub.f32 1.0, %v2647
        %v2776 = vsub.f32 1.0, %v2648
        %v2777 = vsub.f32 1.0, %v2649
        %v2778 = vsub.f32 1.0, %v2650
        %v2779 = vsub.f32 1.0, %v2651
        %v2780 = vsub.f32 1.0, %v2652
        %v2781 = vsub.f32 1.0, %v2653
        %v2782 = vsub.f32 1.0, %v2654
        %v2783 = vsub.f32 1.0, %v2655
        %v2784 = vsub.f32 1.0, %v2656
        %v2785 = vsub.f32 1.0, %v2657
        %v2786 = vsub.f32 1.0, %v2658
        %v2787 = vsub.f32 1.0, %v2659
        %v2788 = vsub.f32 1.0, %v2660
        %v2789 = vsub.f32 1.0, %v2661
        %v2790 = vsub.f32 1.0, %v2662
        %v2791 = vsub.f32 1.0, %v2663
        %v2792 = vsub.f32 1.0, %v2664
        %v2793 = vsub.f32 1.0, %v2665
        %v2794 = vsub.f32 1.0, %v2666
        %v2795 = vsub.f32 1.0, %v2667
        %v2796 = vsub.f32 1.0, %v2668
        %v2797 = vsub.f32 1.0, %v2669
        %v2798 = vsub.f32 1.0, %v2670
        %v2799 = vsub.f32 1.0, %v2671
        %v2800 = vsub.f32 1.0, %v2672
        %v2801 = vsub.f32 1.0, %v2673
        %v2802 = vsub.f32 1.0, %v2674
        %v2803 = vsub.f32 1.0, %v2675
        %v2804 = vsub.f32 1.0, %v2676
        %v2805 = vsub.f32 1.0, %v2677
        %v2806 = vsub.f32 1.0, %v2678
        %v2807 = vsub.f32 1.0, %v2679
        %v2808 = vsub.f32 1.0, %v2680
        %v2809 = vsub.f32 1.0, %v2681
        %v2810 = vsub.f32 1.0, %v2682
        %v2811 = vsub.f32 1.0, %v2683
        %v2812 = vsub.f32 1.0, %v2684
        %v2813 = vsub.f32 1.0, %v2685
        %v2814 = vsub.f32 1.0, %v2686
        %v2815 = vsub.f32 1.0, %v2687
        %v2816 = vsub.f32 1.0, %v2688
        %v2817 = vsub.f32 1.0, %v2689
        %v2818 = vsub.f32 1.0, %v2690
        %v2819 = vsub.f32 1.0, %v2691
        %v2820 = vsub.f32 1.0, %v2692
        %v2821 = vsub.f32 1.0, %v2693
        %v2822 = vsub.f32 1.0, %v2694
        %v2823 = vsub.f32 1.0, %v2695
        %v2824 = vsub.f32 1.0, %v2696
        %v2825 = vsub.f32 1.0, %v2697
        %v2826 = vsub.f32 1.0, %v2698
        %v2827 = vsub.f32 1.0, %v2699
        %v2828 = vmax.f32 %v2700, 0.0
        %v2829 = vmax.f32 %v2701, 0.0
        %v2830 = vmax.f32 %v2702, 0.0
        %v2831 = vmax.f32 %v2703, 0.0
        %v2832 = vmax.f32 %v2704, 0.0
        %v2833 = vmax.f32 %v2705, 0.0
        %v2834 = vmax.f32 %v2706, 0.0
        %v2835 = vmax.f32 %v2707, 0.0
        %v2836 = vmax.f32 %v2708, 0.0
        %v2837 = vmax.f32 %v2709, 0.0
        %v2838 = vmax.f32 %v2710, 0.0
        %v2839 = vmax.f32 %v2711, 0.0
        %v2840 = vmax.f32 %v2712, 0.0
        %v2841 = vmax.f32 %v2713, 0.0
        %v2842 = vmax.f32 %v2714, 0.0
        %v2843 = vmax.f32 %v2715, 0.0
        %v2844 = vmax.f32 %v2716, 0.0
        %v2845 = vmax.f32 %v2717, 0.0
        %v2846 = vmax.f32 %v2718, 0.0
        %v2847 = vmax.f32 %v2719, 0.0
        %v2848 = vmax.f32 %v2720, 0.0
        %v2849 = vmax.f32 %v2721, 0.0
        %v2850 = vmax.f32 %v2722, 0.0
        %v2851 = vmax.f32 %v2723, 0.0
        %v2852 = vmax.f32 %v2724, 0.0
        %v2853 = vmax.f32 %v2725, 0.0
        %v2854 = vmax.f32 %v2726, 0.0
        %v2855 = vmax.f32 %v2727, 0.0
        %v2856 = vmax.f32 %v2728, 0.0
        %v2857 = vmax.f32 %v2729, 0.0
        %v2858 = vmax.f32 %v2730, 0.0
        %v2859 = vmax.f32 %v2731, 0.0
        %v2860 = vmax.f32 %v2732, 0.0
        %v2861 = vmax.f32 %v2733, 0.0
        %v2862 = vmax.f32 %v2734, 0.0
        %v2863 = vmax.f32 %v2735, 0.0
        %v2864 = vmax.f32 %v2736, 0.0
        %v2865 = vmax.f32 %v2737, 0.0
        %v2866 = vmax.f32 %v2738, 0.0
        %v2867 = vmax.f32 %v2739, 0.0
        %v2868 = vmax.f32 %v2740, 0.0
        %v2869 = vmax.f32 %v2741, 0.0
        %v2870 = vmax.f32 %v2742, 0.0
        %v2871 = vmax.f32 %v2743, 0.0
        %v2872 = vmax.f32 %v2744, 0.0
        %v2873 = vmax.f32 %v2745, 0.0
        %v2874 = vmax.f32 %v2746, 0.0
        %v2875 = vmax.f32 %v2747, 0.0
        %v2876 = vmax.f32 %v2748, 0.0
        %v2877 = vmax.f32 %v2749, 0.0
        %v2878 = vmax.f32 %v2750, 0.0
        %v2879 = vmax.f32 %v2751, 0.0
        %v2880 = vmax.f32 %v2752, 0.0
        %v2881 = vmax.f32 %v2753, 0.0
        %v2882 = vmax.f32 %v2754, 0.0
        %v2883 = vmax.f32 %v2755, 0.0
        %v2884 = vmax.f32 %v2756, 0.0
        %v2885 = vmax.f32 %v2757, 0.0
        %v2886 = vmax.f32 %v2758, 0.0
        %v2887 = vmax.f32 %v2759, 0.0
        %v2888 = vmax.f32 %v2760, 0.0
        %v2889 = vmax.f32 %v2761, 0.0
        %v2890 = vmax.f32 %v2762, 0.0
        %v2891 = vmax.f32 %v2763, 0.0
        %v2892 = vmax.f32 %v2764, 0.0
        %v2893 = vmax.f32 %v2765, 0.0
        %v2894 = vmax.f32 %v2766, 0.0
        %v2895 = vmax.f32 %v2767, 0.0
        %v2896 = vmax.f32 %v2768, 0.0
        %v2897 = vmax.f32 %v2769, 0.0
        %v2898 = vmax.f32 %v2770, 0.0
        %v2899 = vmax.f32 %v2771, 0.0
        %v2900 = vmax.f32 %v2772, 0.0
        %v2901 = vmax.f32 %v2773, 0.0
        %v2902 = vmax.f32 %v2774, 0.0
        %v2903 = vmax.f32 %v2775, 0.0
        %v2904 = vmax.f32 %v2776, 0.0
        %v2905 = vmax.f32 %v2777, 0.0
        %v2906 = vmax.f32 %v2778, 0.0
        %v2907 = vmax.f32 %v2779, 0.0
        %v2908 = vmax.f32 %v2780, 0.0
        %v2909 = vmax.f32 %v2781, 0.0
        %v2910 = vmax.f32 %v2782, 0.0
        %v2911 = vmax.f32 %v2783, 0.0
        %v2912 = vmax.f32 %v2784, 0.0
        %v2913 = vmax.f32 %v2785, 0.0
        %v2914 = vmax.f32 %v2786, 0.0
        %v2915 = vmax.f32 %v2787, 0.0
        %v2916 = vmax.f32 %v2788, 0.0
        %v2917 = vmax.f32 %v2789, 0.0
        %v2918 = vmax.f32 %v2790, 0.0
        %v2919 = vmax.f32 %v2791, 0.0
        %v2920 = vmax.f32 %v2792, 0.0
        %v2921 = vmax.f32 %v2793, 0.0
        %v2922 = vmax.f32 %v2794, 0.0
        %v2923 = vmax.f32 %v2795, 0.0
        %v2924 = vmax.f32 %v2796, 0.0
        %v2925 = vmax.f32 %v2797, 0.0
        %v2926 = vmax.f32 %v2798, 0.0
        %v2927 = vmax.f32 %v2799, 0.0
        %v2928 = vmax.f32 %v2800, 0.0
        %v2929 = vmax.f32 %v2801, 0.0
        %v2930 = vmax.f32 %v2802, 0.0
        %v2931 = vmax.f32 %v2803, 0.0
        %v2932 = vmax.f32 %v2804, 0.0
        %v2933 = vmax.f32 %v2805, 0.0
        %v2934 = vmax.f32 %v2806, 0.0
        %v2935 = vmax.f32 %v2807, 0.0
        %v2936 = vmax.f32 %v2808, 0.0
        %v2937 = vmax.f32 %v2809, 0.0
        %v2938 = vmax.f32 %v2810, 0.0
        %v2939 = vmax.f32 %v2811, 0.0
        %v2940 = vmax.f32 %v2812, 0.0
        %v2941 = vmax.f32 %v2813, 0.0
        %v2942 = vmax.f32 %v2814, 0.0
        %v2943 = vmax.f32 %v2815, 0.0
        %v2944 = vmax.f32 %v2816, 0.0
        %v2945 = vmax.f32 %v2817, 0.0
        %v2946 = vmax.f32 %v2818, 0.0
        %v2947 = vmax.f32 %v2819, 0.0
        %v2948 = vmax.f32 %v2820, 0.0
        %v2949 = vmax.f32 %v2821, 0.0
        %v2950 = vmax.f32 %v2822, 0.0
        %v2951 = vmax.f32 %v2823, 0.0
        %v2952 = vmax.f32 %v2824, 0.0
        %v2953 = vmax.f32 %v2825, 0.0
        %v2954 = vmax.f32 %v2826, 0.0
        %v2955 = vmax.f32 %v2827, 0.0
        %v2956 = vlaneseq
        %v2957 = vshrl.u32 %v2956, 7
        %v2958 = vsub.s32 2, %v2957
        %v2959 = vrot.slane %v2038, %v2958
        %v2960 = vlaneseq
        %v2961 = vshrl.u32 %v2960, 7
        %v2962 = vsub.s32 6, %v2961
        %v2963 = vrot.slane %v2038, %v2962
        %v2964 = vlaneseq
        %v2965 = vshrl.u32 %v2964, 7
        %v2966 = vsub.s32 2, %v2965
        %v2967 = vrot.slane %v2039, %v2966
        %v2968 = vlaneseq
        %v2969 = vshrl.u32 %v2968, 7
        %v2970 = vsub.s32 6, %v2969
        %v2971 = vrot.slane %v2039, %v2970
        %v2972 = vlaneseq
        %v2973 = vshrl.u32 %v2972, 7
        %v2974 = vsub.s32 2, %v2973
        %v2975 = vrot.slane %v2040, %v2974
        %v2976 = vlaneseq
        %v2977 = vshrl.u32 %v2976, 7
        %v2978 = vsub.s32 6, %v2977
        %v2979 = vrot.slane %v2040, %v2978
        %v2980 = vlaneseq
        %v2981 = vshrl.u32 %v2980, 7
        %v2982 = vsub.s32 2, %v2981
        %v2983 = vrot.slane %v2041, %v2982
        %v2984 = vlaneseq
        %v2985 = vshrl.u32 %v2984, 7
        %v2986 = vsub.s32 6, %v2985
        %v2987 = vrot.slane %v2041, %v2986
        %v2988 = vlaneseq
        %v2989 = vshrl.u32 %v2988, 7
        %v2990 = vsub.s32 2, %v2989
        %v2991 = vrot.slane %v2042, %v2990
        %v2992 = vlaneseq
        %v2993 = vshrl.u32 %v2992, 7
        %v2994 = vsub.s32 6, %v2993
        %v2995 = vrot.slane %v2042, %v2994
        %v2996 = vlaneseq
        %v2997 = vshrl.u32 %v2996, 7
        %v2998 = vsub.s32 2, %v2997
        %v2999 = vrot.slane %v2043, %v2998
        %v3000 = vlaneseq
        %v3001 = vshrl.u32 %v3000, 7
        %v3002 = vsub.s32 6, %v3001
        %v3003 = vrot.slane %v2043, %v3002
        %v3004 = vlaneseq
        %v3005 = vshrl.u32 %v3004, 7
        %v3006 = vsub.s32 2, %v3005
        %v3007 = vrot.slane %v2044, %v3006
        %v3008 = vlaneseq
        %v3009 = vshrl.u32 %v3008, 7
        %v3010 = vsub.s32 6, %v3009
        %v3011 = vrot.slane %v2044, %v3010
        %v3012 = vlaneseq
        %v3013 = vshrl.u32 %v3012, 7
        %v3014 = vsub.s32 2, %v3013
        %v3015 = vrot.slane %v2045, %v3014
        %v3016 = vlaneseq
        %v3017 = vshrl.u32 %v3016, 7
        %v3018 = vsub.s32 6, %v3017
        %v3019 = vrot.slane %v2045, %v3018
        %v3036 = vlaneseq
        %v3037 = vshrl.u32 %v3036, 7
        %v3038 = vsub.s32 2, %v3037
        %v3039 = vrot.slane %v2959, %v3038
        %v3040 = vlaneseq
        %v3041 = vshrl.u32 %v3040, 7
        %v3042 = vsub.s32 2, %v3041
        %v3043 = vrot.slane %v2963, %v3042
        %v3044 = vlaneseq
        %v3045 = vshrl.u32 %v3044, 7
        %v3046 = vsub.s32 2, %v3045
        %v3047 = vrot.slane %v2967, %v3046
        %v3048 = vlaneseq
        %v3049 = vshrl.u32 %v3048, 7
        %v3050 = vsub.s32 2, %v3049
        %v3051 = vrot.slane %v2971, %v3050
        %v3052 = vlaneseq
        %v3053 = vshrl.u32 %v3052, 7
        %v3054 = vsub.s32 2, %v3053
        %v3055 = vrot.slane %v2975, %v3054
        %v3056 = vlaneseq
        %v3057 = vshrl.u32 %v3056, 7
        %v3058 = vsub.s32 2, %v3057
        %v3059 = vrot.slane %v2979, %v3058
        %v3060 = vlaneseq
        %v3061 = vshrl.u32 %v3060, 7
        %v3062 = vsub.s32 2, %v3061
        %v3063 = vrot.slane %v2983, %v3062
        %v3064 = vlaneseq
        %v3065 = vshrl.u32 %v3064, 7
        %v3066 = vsub.s32 2, %v3065
        %v3067 = vrot.slane %v2987, %v3066
        %v3068 = vlaneseq
        %v3069 = vshrl.u32 %v3068, 7
        %v3070 = vsub.s32 2, %v3069
        %v3071 = vrot.slane %v2991, %v3070
        %v3072 = vlaneseq
        %v3073 = vshrl.u32 %v3072, 7
        %v3074 = vsub.s32 2, %v3073
        %v3075 = vrot.slane %v2995, %v3074
        %v3076 = vlaneseq
        %v3077 = vshrl.u32 %v3076, 7
        %v3078 = vsub.s32 2, %v3077
        %v3079 = vrot.slane %v2999, %v3078
        %v3080 = vlaneseq
        %v3081 = vshrl.u32 %v3080, 7
        %v3082 = vsub.s32 2, %v3081
        %v3083 = vrot.slane %v3003, %v3082
        %v3084 = vlaneseq
        %v3085 = vshrl.u32 %v3084, 7
        %v3086 = vsub.s32 2, %v3085
        %v3087 = vrot.slane %v3007, %v3086
        %v3088 = vlaneseq
        %v3089 = vshrl.u32 %v3088, 7
        %v3090 = vsub.s32 2, %v3089
        %v3091 = vrot.slane %v3011, %v3090
        %v3092 = vlaneseq
        %v3093 = vshrl.u32 %v3092, 7
        %v3094 = vsub.s32 2, %v3093
        %v3095 = vrot.slane %v3015, %v3094
        %v3096 = vlaneseq
        %v3097 = vshrl.u32 %v3096, 7
        %v3098 = vsub.s32 2, %v3097
        %v3099 = vrot.slane %v3019, %v3098
        %v3100 = vsub.f32 %v3039, %v2076
        %v3101 = vsub.f32 %v3043, %v2076
        %v3102 = vsub.f32 %v3047, %v2076
        %v3103 = vsub.f32 %v3051, %v2076
        %v3104 = vsub.f32 %v3055, %v2076
        %v3105 = vsub.f32 %v3059, %v2076
        %v3106 = vsub.f32 %v3063, %v2076
        %v3107 = vsub.f32 %v3067, %v2076
        %v3108 = vsub.f32 %v3071, %v2076
        %v3109 = vsub.f32 %v3075, %v2076
        %v3110 = vsub.f32 %v3079, %v2076
        %v3111 = vsub.f32 %v3083, %v2076
        %v3112 = vsub.f32 %v3087, %v2076
        %v3113 = vsub.f32 %v3091, %v2076
        %v3114 = vsub.f32 %v3095, %v2076
        %v3115 = vsub.f32 %v3099, %v2076
        %v3116 = vsub.f32 %v3039, %v2077
        %v3117 = vsub.f32 %v3043, %v2077
        %v3118 = vsub.f32 %v3047, %v2077
        %v3119 = vsub.f32 %v3051, %v2077
        %v3120 = vsub.f32 %v3055, %v2077
        %v3121 = vsub.f32 %v3059, %v2077
        %v3122 = vsub.f32 %v3063, %v2077
        %v3123 = vsub.f32 %v3067, %v2077
        %v3124 = vsub.f32 %v3071, %v2077
        %v3125 = vsub.f32 %v3075, %v2077
        %v3126 = vsub.f32 %v3079, %v2077
        %v3127 = vsub.f32 %v3083, %v2077
        %v3128 = vsub.f32 %v3087, %v2077
        %v3129 = vsub.f32 %v3091, %v2077
        %v3130 = vsub.f32 %v3095, %v2077
        %v3131 = vsub.f32 %v3099, %v2077
        %v3132 = vsub.f32 %v3039, %v2078
        %v3133 = vsub.f32 %v3043, %v2078
        %v3134 = vsub.f32 %v3047, %v2078
        %v3135 = vsub.f32 %v3051, %v2078
        %v3136 = vsub.f32 %v3055, %v2078
        %v3137 = vsub.f32 %v3059, %v2078
        %v3138 = vsub.f32 %v3063, %v2078
        %v3139 = vsub.f32 %v3067, %v2078
        %v3140 = vsub.f32 %v3071, %v2078
        %v3141 = vsub.f32 %v3075, %v2078
        %v3142 = vsub.f32 %v3079, %v2078
        %v3143 = vsub.f32 %v3083, %v2078
        %v3144 = vsub.f32 %v3087, %v2078
        %v3145 = vsub.f32 %v3091, %v2078
        %v3146 = vsub.f32 %v3095, %v2078
        %v3147 = vsub.f32 %v3099, %v2078
        %v3148 = vsub.f32 %v3039, %v2079
        %v3149 = vsub.f32 %v3043, %v2079
        %v3150 = vsub.f32 %v3047, %v2079
        %v3151 = vsub.f32 %v3051, %v2079
        %v3152 = vsub.f32 %v3055, %v2079
        %v3153 = vsub.f32 %v3059, %v2079
        %v3154 = vsub.f32 %v3063, %v2079
        %v3155 = vsub.f32 %v3067, %v2079
        %v3156 = vsub.f32 %v3071, %v2079
        %v3157 = vsub.f32 %v3075, %v2079
        %v3158 = vsub.f32 %v3079, %v2079
        %v3159 = vsub.f32 %v3083, %v2079
        %v3160 = vsub.f32 %v3087, %v2079
        %v3161 = vsub.f32 %v3091, %v2079
        %v3162 = vsub.f32 %v3095, %v2079
        %v3163 = vsub.f32 %v3099, %v2079
        %v3164 = vsub.f32 %v3039, %v2080
        %v3165 = vsub.f32 %v3043, %v2080
        %v3166 = vsub.f32 %v3047, %v2080
        %v3167 = vsub.f32 %v3051, %v2080
        %v3168 = vsub.f32 %v3055, %v2080
        %v3169 = vsub.f32 %v3059, %v2080
        %v3170 = vsub.f32 %v3063, %v2080
        %v3171 = vsub.f32 %v3067, %v2080
        %v3172 = vsub.f32 %v3071, %v2080
        %v3173 = vsub.f32 %v3075, %v2080
        %v3174 = vsub.f32 %v3079, %v2080
        %v3175 = vsub.f32 %v3083, %v2080
        %v3176 = vsub.f32 %v3087, %v2080
        %v3177 = vsub.f32 %v3091, %v2080
        %v3178 = vsub.f32 %v3095, %v2080
        %v3179 = vsub.f32 %v3099, %v2080
        %v3180 = vsub.f32 %v3039, %v2081
        %v3181 = vsub.f32 %v3043, %v2081
        %v3182 = vsub.f32 %v3047, %v2081
        %v3183 = vsub.f32 %v3051, %v2081
        %v3184 = vsub.f32 %v3055, %v2081
        %v3185 = vsub.f32 %v3059, %v2081
        %v3186 = vsub.f32 %v3063, %v2081
        %v3187 = vsub.f32 %v3067, %v2081
        %v3188 = vsub.f32 %v3071, %v2081
        %v3189 = vsub.f32 %v3075, %v2081
        %v3190 = vsub.f32 %v3079, %v2081
        %v3191 = vsub.f32 %v3083, %v2081
        %v3192 = vsub.f32 %v3087, %v2081
        %v3193 = vsub.f32 %v3091, %v2081
        %v3194 = vsub.f32 %v3095, %v2081
        %v3195 = vsub.f32 %v3099, %v2081
        %v3196 = vsub.f32 %v3039, %v2082
        %v3197 = vsub.f32 %v3043, %v2082
        %v3198 = vsub.f32 %v3047, %v2082
        %v3199 = vsub.f32 %v3051, %v2082
        %v3200 = vsub.f32 %v3055, %v2082
        %v3201 = vsub.f32 %v3059, %v2082
        %v3202 = vsub.f32 %v3063, %v2082
        %v3203 = vsub.f32 %v3067, %v2082
        %v3204 = vsub.f32 %v3071, %v2082
        %v3205 = vsub.f32 %v3075, %v2082
        %v3206 = vsub.f32 %v3079, %v2082
        %v3207 = vsub.f32 %v3083, %v2082
        %v3208 = vsub.f32 %v3087, %v2082
        %v3209 = vsub.f32 %v3091, %v2082
        %v3210 = vsub.f32 %v3095, %v2082
        %v3211 = vsub.f32 %v3099, %v2082
        %v3212 = vsub.f32 %v3039, %v2083
        %v3213 = vsub.f32 %v3043, %v2083
        %v3214 = vsub.f32 %v3047, %v2083
        %v3215 = vsub.f32 %v3051, %v2083
        %v3216 = vsub.f32 %v3055, %v2083
        %v3217 = vsub.f32 %v3059, %v2083
        %v3218 = vsub.f32 %v3063, %v2083
        %v3219 = vsub.f32 %v3067, %v2083
        %v3220 = vsub.f32 %v3071, %v2083
        %v3221 = vsub.f32 %v3075, %v2083
        %v3222 = vsub.f32 %v3079, %v2083
        %v3223 = vsub.f32 %v3083, %v2083
        %v3224 = vsub.f32 %v3087, %v2083
        %v3225 = vsub.f32 %v3091, %v2083
        %v3226 = vsub.f32 %v3095, %v2083
        %v3227 = vsub.f32 %v3099, %v2083
        %v3228 = vand.u32 2147483647, %v3100
        %v3229 = vand.u32 2147483647, %v3101
        %v3230 = vand.u32 2147483647, %v3102
        %v3231 = vand.u32 2147483647, %v3103
        %v3232 = vand.u32 2147483647, %v3104
        %v3233 = vand.u32 2147483647, %v3105
        %v3234 = vand.u32 2147483647, %v3106
        %v3235 = vand.u32 2147483647, %v3107
        %v3236 = vand.u32 2147483647, %v3108
        %v3237 = vand.u32 2147483647, %v3109
        %v3238 = vand.u32 2147483647, %v3110
        %v3239 = vand.u32 2147483647, %v3111
        %v3240 = vand.u32 2147483647, %v3112
        %v3241 = vand.u32 2147483647, %v3113
        %v3242 = vand.u32 2147483647, %v3114
        %v3243 = vand.u32 2147483647, %v3115
        %v3244 = vand.u32 2147483647, %v3116
        %v3245 = vand.u32 2147483647, %v3117
        %v3246 = vand.u32 2147483647, %v3118
        %v3247 = vand.u32 2147483647, %v3119
        %v3248 = vand.u32 2147483647, %v3120
        %v3249 = vand.u32 2147483647, %v3121
        %v3250 = vand.u32 2147483647, %v3122
        %v3251 = vand.u32 2147483647, %v3123
        %v3252 = vand.u32 2147483647, %v3124
        %v3253 = vand.u32 2147483647, %v3125
        %v3254 = vand.u32 2147483647, %v3126
        %v3255 = vand.u32 2147483647, %v3127
        %v3256 = vand.u32 2147483647, %v3128
        %v3257 = vand.u32 2147483647, %v3129
        %v3258 = vand.u32 2147483647, %v3130
        %v3259 = vand.u32 2147483647, %v3131
        %v3260 = vand.u32 2147483647, %v3132
        %v3261 = vand.u32 2147483647, %v3133
        %v3262 = vand.u32 2147483647, %v3134
        %v3263 = vand.u32 2147483647, %v3135
        %v3264 = vand.u32 2147483647, %v3136
        %v3265 = vand.u32 2147483647, %v3137
        %v3266 = vand.u32 2147483647, %v3138
        %v3267 = vand.u32 2147483647, %v3139
        %v3268 = vand.u32 2147483647, %v3140
        %v3269 = vand.u32 2147483647, %v3141
        %v3270 = vand.u32 2147483647, %v3142
        %v3271 = vand.u32 2147483647, %v3143
        %v3272 = vand.u32 2147483647, %v3144
        %v3273 = vand.u32 2147483647, %v3145
        %v3274 = vand.u32 2147483647, %v3146
        %v3275 = vand.u32 2147483647, %v3147
        %v3276 = vand.u32 2147483647, %v3148
        %v3277 = vand.u32 2147483647, %v3149
        %v3278 = vand.u32 2147483647, %v3150
        %v3279 = vand.u32 2147483647, %v3151
        %v3280 = vand.u32 2147483647, %v3152
        %v3281 = vand.u32 2147483647, %v3153
        %v3282 = vand.u32 2147483647, %v3154
        %v3283 = vand.u32 2147483647, %v3155
        %v3284 = vand.u32 2147483647, %v3156
        %v3285 = vand.u32 2147483647, %v3157
        %v3286 = vand.u32 2147483647, %v3158
        %v3287 = vand.u32 2147483647, %v3159
        %v3288 = vand.u32 2147483647, %v3160
        %v3289 = vand.u32 2147483647, %v3161
        %v3290 = vand.u32 2147483647, %v3162
        %v3291 = vand.u32 2147483647, %v3163
        %v3292 = vand.u32 2147483647, %v3164
        %v3293 = vand.u32 2147483647, %v3165
        %v3294 = vand.u32 2147483647, %v3166
        %v3295 = vand.u32 2147483647, %v3167
        %v3296 = vand.u32 2147483647, %v3168
        %v3297 = vand.u32 2147483647, %v3169
        %v3298 = vand.u32 2147483647, %v3170
        %v3299 = vand.u32 2147483647, %v3171
        %v3300 = vand.u32 2147483647, %v3172
        %v3301 = vand.u32 2147483647, %v3173
        %v3302 = vand.u32 2147483647, %v3174
        %v3303 = vand.u32 2147483647, %v3175
        %v3304 = vand.u32 2147483647, %v3176
        %v3305 = vand.u32 2147483647, %v3177
        %v3306 = vand.u32 2147483647, %v3178
        %v3307 = vand.u32 2147483647, %v3179
        %v3308 = vand.u32 2147483647, %v3180
        %v3309 = vand.u32 2147483647, %v3181
        %v3310 = vand.u32 2147483647, %v3182
        %v3311 = vand.u32 2147483647, %v3183
        %v3312 = vand.u32 2147483647, %v3184
        %v3313 = vand.u32 2147483647, %v3185
        %v3314 = vand.u32 2147483647, %v3186
        %v3315 = vand.u32 2147483647, %v3187
        %v3316 = vand.u32 2147483647, %v3188
        %v3317 = vand.u32 2147483647, %v3189
        %v3318 = vand.u32 2147483647, %v3190
        %v3319 = vand.u32 2147483647, %v3191
        %v3320 = vand.u32 2147483647, %v3192
        %v3321 = vand.u32 2147483647, %v3193
        %v3322 = vand.u32 2147483647, %v3194
        %v3323 = vand.u32 2147483647, %v3195
        %v3324 = vand.u32 2147483647, %v3196
        %v3325 = vand.u32 2147483647, %v3197
        %v3326 = vand.u32 2147483647, %v3198
        %v3327 = vand.u32 2147483647, %v3199
        %v3328 = vand.u32 2147483647, %v3200
        %v3329 = vand.u32 2147483647, %v3201
        %v3330 = vand.u32 2147483647, %v3202
        %v3331 = vand.u32 2147483647, %v3203
        %v3332 = vand.u32 2147483647, %v3204
        %v3333 = vand.u32 2147483647, %v3205
        %v3334 = vand.u32 2147483647, %v3206
        %v3335 = vand.u32 2147483647, %v3207
        %v3336 = vand.u32 2147483647, %v3208
        %v3337 = vand.u32 2147483647, %v3209
        %v3338 = vand.u32 2147483647, %v3210
        %v3339 = vand.u32 2147483647, %v3211
        %v3340 = vand.u32 2147483647, %v3212
        %v3341 = vand.u32 2147483647, %v3213
        %v3342 = vand.u32 2147483647, %v3214
        %v3343 = vand.u32 2147483647, %v3215
        %v3344 = vand.u32 2147483647, %v3216
        %v3345 = vand.u32 2147483647, %v3217
        %v3346 = vand.u32 2147483647, %v3218
        %v3347 = vand.u32 2147483647, %v3219
        %v3348 = vand.u32 2147483647, %v3220
        %v3349 = vand.u32 2147483647, %v3221
        %v3350 = vand.u32 2147483647, %v3222
        %v3351 = vand.u32 2147483647, %v3223
        %v3352 = vand.u32 2147483647, %v3224
        %v3353 = vand.u32 2147483647, %v3225
        %v3354 = vand.u32 2147483647, %v3226
        %v3355 = vand.u32 2147483647, %v3227
        %v3356 = vsub.f32 1.0, %v3228
        %v3357 = vsub.f32 1.0, %v3229
        %v3358 = vsub.f32 1.0, %v3230
        %v3359 = vsub.f32 1.0, %v3231
        %v3360 = vsub.f32 1.0, %v3232
        %v3361 = vsub.f32 1.0, %v3233
        %v3362 = vsub.f32 1.0, %v3234
        %v3363 = vsub.f32 1.0, %v3235
        %v3364 = vsub.f32 1.0, %v3236
        %v3365 = vsub.f32 1.0, %v3237
        %v3366 = vsub.f32 1.0, %v3238
        %v3367 = vsub.f32 1.0, %v3239
        %v3368 = vsub.f32 1.0, %v3240
        %v3369 = vsub.f32 1.0, %v3241
        %v3370 = vsub.f32 1.0, %v3242
        %v3371 = vsub.f32 1.0, %v3243
        %v3372 = vsub.f32 1.0, %v3244
        %v3373 = vsub.f32 1.0, %v3245
        %v3374 = vsub.f32 1.0, %v3246
        %v3375 = vsub.f32 1.0, %v3247
        %v3376 = vsub.f32 1.0, %v3248
        %v3377 = vsub.f32 1.0, %v3249
        %v3378 = vsub.f32 1.0, %v3250
        %v3379 = vsub.f32 1.0, %v3251
        %v3380 = vsub.f32 1.0, %v3252
        %v3381 = vsub.f32 1.0, %v3253
        %v3382 = vsub.f32 1.0, %v3254
        %v3383 = vsub.f32 1.0, %v3255
        %v3384 = vsub.f32 1.0, %v3256
        %v3385 = vsub.f32 1.0, %v3257
        %v3386 = vsub.f32 1.0, %v3258
        %v3387 = vsub.f32 1.0, %v3259
        %v3388 = vsub.f32 1.0, %v3260
        %v3389 = vsub.f32 1.0, %v3261
        %v3390 = vsub.f32 1.0, %v3262
        %v3391 = vsub.f32 1.0, %v3263
        %v3392 = vsub.f32 1.0, %v3264
        %v3393 = vsub.f32 1.0, %v3265
        %v3394 = vsub.f32 1.0, %v3266
        %v3395 = vsub.f32 1.0, %v3267
        %v3396 = vsub.f32 1.0, %v3268
        %v3397 = vsub.f32 1.0, %v3269
        %v3398 = vsub.f32 1.0, %v3270
        %v3399 = vsub.f32 1.0, %v3271
        %v3400 = vsub.f32 1.0, %v3272
        %v3401 = vsub.f32 1.0, %v3273
        %v3402 = vsub.f32 1.0, %v3274
        %v3403 = vsub.f32 1.0, %v3275
        %v3404 = vsub.f32 1.0, %v3276
        %v3405 = vsub.f32 1.0, %v3277
        %v3406 = vsub.f32 1.0, %v3278
        %v3407 = vsub.f32 1.0, %v3279
        %v3408 = vsub.f32 1.0, %v3280
        %v3409 = vsub.f32 1.0, %v3281
        %v3410 = vsub.f32 1.0, %v3282
        %v3411 = vsub.f32 1.0, %v3283
        %v3412 = vsub.f32 1.0, %v3284
        %v3413 = vsub.f32 1.0, %v3285
        %v3414 = vsub.f32 1.0, %v3286
        %v3415 = vsub.f32 1.0, %v3287
        %v3416 = vsub.f32 1.0, %v3288
        %v3417 = vsub.f32 1.0, %v3289
        %v3418 = vsub.f32 1.0, %v3290
        %v3419 = vsub.f32 1.0, %v3291
        %v3420 = vsub.f32 1.0, %v3292
        %v3421 = vsub.f32 1.0, %v3293
        %v3422 = vsub.f32 1.0, %v3294
        %v3423 = vsub.f32 1.0, %v3295
        %v3424 = vsub.f32 1.0, %v3296
        %v3425 = vsub.f32 1.0, %v3297
        %v3426 = vsub.f32 1.0, %v3298
        %v3427 = vsub.f32 1.0, %v3299
        %v3428 = vsub.f32 1.0, %v3300
        %v3429 = vsub.f32 1.0, %v3301
        %v3430 = vsub.f32 1.0, %v3302
        %v3431 = vsub.f32 1.0, %v3303
        %v3432 = vsub.f32 1.0, %v3304
        %v3433 = vsub.f32 1.0, %v3305
        %v3434 = vsub.f32 1.0, %v3306
        %v3435 = vsub.f32 1.0, %v3307
        %v3436 = vsub.f32 1.0, %v3308
        %v3437 = vsub.f32 1.0, %v3309
        %v3438 = vsub.f32 1.0, %v3310
        %v3439 = vsub.f32 1.0, %v3311
        %v3440 = vsub.f32 1.0, %v3312
        %v3441 = vsub.f32 1.0, %v3313
        %v3442 = vsub.f32 1.0, %v3314
        %v3443 = vsub.f32 1.0, %v3315
        %v3444 = vsub.f32 1.0, %v3316
        %v3445 = vsub.f32 1.0, %v3317
        %v3446 = vsub.f32 1.0, %v3318
        %v3447 = vsub.f32 1.0, %v3319
        %v3448 = vsub.f32 1.0, %v3320
        %v3449 = vsub.f32 1.0, %v3321
        %v3450 = vsub.f32 1.0, %v3322
        %v3451 = vsub.f32 1.0, %v3323
        %v3452 = vsub.f32 1.0, %v3324
        %v3453 = vsub.f32 1.0, %v3325
        %v3454 = vsub.f32 1.0, %v3326
        %v3455 = vsub.f32 1.0, %v3327
        %v3456 = vsub.f32 1.0, %v3328
        %v3457 = vsub.f32 1.0, %v3329
        %v3458 = vsub.f32 1.0, %v3330
        %v3459 = vsub.f32 1.0, %v3331
        %v3460 = vsub.f32 1.0, %v3332
        %v3461 = vsub.f32 1.0, %v3333
        %v3462 = vsub.f32 1.0, %v3334
        %v3463 = vsub.f32 1.0, %v3335
        %v3464 = vsub.f32 1.0, %v3336
        %v3465 = vsub.f32 1.0, %v3337
        %v3466 = vsub.f32 1.0, %v3338
        %v3467 = vsub.f32 1.0, %v3339
        %v3468 = vsub.f32 1.0, %v3340
        %v3469 = vsub.f32 1.0, %v3341
        %v3470 = vsub.f32 1.0, %v3342
        %v3471 = vsub.f32 1.0, %v3343
        %v3472 = vsub.f32 1.0, %v3344
        %v3473 = vsub.f32 1.0, %v3345
        %v3474 = vsub.f32 1.0, %v3346
        %v3475 = vsub.f32 1.0, %v3347
        %v3476 = vsub.f32 1.0, %v3348
        %v3477 = vsub.f32 1.0, %v3349
        %v3478 = vsub.f32 1.0, %v3350
        %v3479 = vsub.f32 1.0, %v3351
        %v3480 = vsub.f32 1.0, %v3352
        %v3481 = vsub.f32 1.0, %v3353
        %v3482 = vsub.f32 1.0, %v3354
        %v3483 = vsub.f32 1.0, %v3355
        %v3484 = vmax.f32 %v3356, 0.0
        %v3485 = vmax.f32 %v3357, 0.0
        %v3486 = vmax.f32 %v3358, 0.0
        %v3487 = vmax.f32 %v3359, 0.0
        %v3488 = vmax.f32 %v3360, 0.0
        %v3489 = vmax.f32 %v3361, 0.0
        %v3490 = vmax.f32 %v3362, 0.0
        %v3491 = vmax.f32 %v3363, 0.0
        %v3492 = vmax.f32 %v3364, 0.0
        %v3493 = vmax.f32 %v3365, 0.0
        %v3494 = vmax.f32 %v3366, 0.0
        %v3495 = vmax.f32 %v3367, 0.0
        %v3496 = vmax.f32 %v3368, 0.0
        %v3497 = vmax.f32 %v3369, 0.0
        %v3498 = vmax.f32 %v3370, 0.0
        %v3499 = vmax.f32 %v3371, 0.0
        %v3500 = vmax.f32 %v3372, 0.0
        %v3501 = vmax.f32 %v3373, 0.0
        %v3502 = vmax.f32 %v3374, 0.0
        %v3503 = vmax.f32 %v3375, 0.0
        %v3504 = vmax.f32 %v3376, 0.0
        %v3505 = vmax.f32 %v3377, 0.0
        %v3506 = vmax.f32 %v3378, 0.0
        %v3507 = vmax.f32 %v3379, 0.0
        %v3508 = vmax.f32 %v3380, 0.0
        %v3509 = vmax.f32 %v3381, 0.0
        %v3510 = vmax.f32 %v3382, 0.0
        %v3511 = vmax.f32 %v3383, 0.0
        %v3512 = vmax.f32 %v3384, 0.0
        %v3513 = vmax.f32 %v3385, 0.0
        %v3514 = vmax.f32 %v3386, 0.0
        %v3515 = vmax.f32 %v3387, 0.0
        %v3516 = vmax.f32 %v3388, 0.0
        %v3517 = vmax.f32 %v3389, 0.0
        %v3518 = vmax.f32 %v3390, 0.0
        %v3519 = vmax.f32 %v3391, 0.0
        %v3520 = vmax.f32 %v3392, 0.0
        %v3521 = vmax.f32 %v3393, 0.0
        %v3522 = vmax.f32 %v3394, 0.0
        %v3523 = vmax.f32 %v3395, 0.0
        %v3524 = vmax.f32 %v3396, 0.0
        %v3525 = vmax.f32 %v3397, 0.0
        %v3526 = vmax.f32 %v3398, 0.0
        %v3527 = vmax.f32 %v3399, 0.0
        %v3528 = vmax.f32 %v3400, 0.0
        %v3529 = vmax.f32 %v3401, 0.0
        %v3530 = vmax.f32 %v3402, 0.0
        %v3531 = vmax.f32 %v3403, 0.0
        %v3532 = vmax.f32 %v3404, 0.0
        %v3533 = vmax.f32 %v3405, 0.0
        %v3534 = vmax.f32 %v3406, 0.0
        %v3535 = vmax.f32 %v3407, 0.0
        %v3536 = vmax.f32 %v3408, 0.0
        %v3537 = vmax.f32 %v3409, 0.0
        %v3538 = vmax.f32 %v3410, 0.0
        %v3539 = vmax.f32 %v3411, 0.0
        %v3540 = vmax.f32 %v3412, 0.0
        %v3541 = vmax.f32 %v3413, 0.0
        %v3542 = vmax.f32 %v3414, 0.0
        %v3543 = vmax.f32 %v3415, 0.0
        %v3544 = vmax.f32 %v3416, 0.0
        %v3545 = vmax.f32 %v3417, 0.0
        %v3546 = vmax.f32 %v3418, 0.0
        %v3547 = vmax.f32 %v3419, 0.0
        %v3548 = vmax.f32 %v3420, 0.0
        %v3549 = vmax.f32 %v3421, 0.0
        %v3550 = vmax.f32 %v3422, 0.0
        %v3551 = vmax.f32 %v3423, 0.0
        %v3552 = vmax.f32 %v3424, 0.0
        %v3553 = vmax.f32 %v3425, 0.0
        %v3554 = vmax.f32 %v3426, 0.0
        %v3555 = vmax.f32 %v3427, 0.0
        %v3556 = vmax.f32 %v3428, 0.0
        %v3557 = vmax.f32 %v3429, 0.0
        %v3558 = vmax.f32 %v3430, 0.0
        %v3559 = vmax.f32 %v3431, 0.0
        %v3560 = vmax.f32 %v3432, 0.0
        %v3561 = vmax.f32 %v3433, 0.0
        %v3562 = vmax.f32 %v3434, 0.0
        %v3563 = vmax.f32 %v3435, 0.0
        %v3564 = vmax.f32 %v3436, 0.0
        %v3565 = vmax.f32 %v3437, 0.0
        %v3566 = vmax.f32 %v3438, 0.0
        %v3567 = vmax.f32 %v3439, 0.0
        %v3568 = vmax.f32 %v3440, 0.0
        %v3569 = vmax.f32 %v3441, 0.0
        %v3570 = vmax.f32 %v3442, 0.0
        %v3571 = vmax.f32 %v3443, 0.0
        %v3572 = vmax.f32 %v3444, 0.0
        %v3573 = vmax.f32 %v3445, 0.0
        %v3574 = vmax.f32 %v3446, 0.0
        %v3575 = vmax.f32 %v3447, 0.0
        %v3576 = vmax.f32 %v3448, 0.0
        %v3577 = vmax.f32 %v3449, 0.0
        %v3578 = vmax.f32 %v3450, 0.0
        %v3579 = vmax.f32 %v3451, 0.0
        %v3580 = vmax.f32 %v3452, 0.0
        %v3581 = vmax.f32 %v3453, 0.0
        %v3582 = vmax.f32 %v3454, 0.0
        %v3583 = vmax.f32 %v3455, 0.0
        %v3584 = vmax.f32 %v3456, 0.0
        %v3585 = vmax.f32 %v3457, 0.0
        %v3586 = vmax.f32 %v3458, 0.0
        %v3587 = vmax.f32 %v3459, 0.0
        %v3588 = vmax.f32 %v3460, 0.0
        %v3589 = vmax.f32 %v3461, 0.0
        %v3590 = vmax.f32 %v3462, 0.0
        %v3591 = vmax.f32 %v3463, 0.0
        %v3592 = vmax.f32 %v3464, 0.0
        %v3593 = vmax.f32 %v3465, 0.0
        %v3594 = vmax.f32 %v3466, 0.0
        %v3595 = vmax.f32 %v3467, 0.0
        %v3596 = vmax.f32 %v3468, 0.0
        %v3597 = vmax.f32 %v3469, 0.0
        %v3598 = vmax.f32 %v3470, 0.0
        %v3599 = vmax.f32 %v3471, 0.0
        %v3600 = vmax.f32 %v3472, 0.0
        %v3601 = vmax.f32 %v3473, 0.0
        %v3602 = vmax.f32 %v3474, 0.0
        %v3603 = vmax.f32 %v3475, 0.0
        %v3604 = vmax.f32 %v3476, 0.0
        %v3605 = vmax.f32 %v3477, 0.0
        %v3606 = vmax.f32 %v3478, 0.0
        %v3607 = vmax.f32 %v3479, 0.0
        %v3608 = vmax.f32 %v3480, 0.0
        %v3609 = vmax.f32 %v3481, 0.0
        %v3610 = vmax.f32 %v3482, 0.0
        %v3611 = vmax.f32 %v3483, 0.0
        %v3612 = vmul.f32 %v2828, %v3484
        %v3613 = vmul.f32 %v2829, %v3485
        %v3614 = vmul.f32 %v2830, %v3486
        %v3615 = vmul.f32 %v2831, %v3487
        %v3616 = vmul.f32 %v2832, %v3488
        %v3617 = vmul.f32 %v2833, %v3489
        %v3618 = vmul.f32 %v2834, %v3490
        %v3619 = vmul.f32 %v2835, %v3491
        %v3620 = vmul.f32 %v2836, %v3492
        %v3621 = vmul.f32 %v2837, %v3493
        %v3622 = vmul.f32 %v2838, %v3494
        %v3623 = vmul.f32 %v2839, %v3495
        %v3624 = vmul.f32 %v2840, %v3496
        %v3625 = vmul.f32 %v2841, %v3497
        %v3626 = vmul.f32 %v2842, %v3498
        %v3627 = vmul.f32 %v2843, %v3499
        %v3628 = vmul.f32 %v2844, %v3500
        %v3629 = vmul.f32 %v2845, %v3501
        %v3630 = vmul.f32 %v2846, %v3502
        %v3631 = vmul.f32 %v2847, %v3503
        %v3632 = vmul.f32 %v2848, %v3504
        %v3633 = vmul.f32 %v2849, %v3505
        %v3634 = vmul.f32 %v2850, %v3506
        %v3635 = vmul.f32 %v2851, %v3507
        %v3636 = vmul.f32 %v2852, %v3508
        %v3637 = vmul.f32 %v2853, %v3509
        %v3638 = vmul.f32 %v2854, %v3510
        %v3639 = vmul.f32 %v2855, %v3511
        %v3640 = vmul.f32 %v2856, %v3512
        %v3641 = vmul.f32 %v2857, %v3513
        %v3642 = vmul.f32 %v2858, %v3514
        %v3643 = vmul.f32 %v2859, %v3515
        %v3644 = vmul.f32 %v2860, %v3516
        %v3645 = vmul.f32 %v2861, %v3517
        %v3646 = vmul.f32 %v2862, %v3518
        %v3647 = vmul.f32 %v2863, %v3519
        %v3648 = vmul.f32 %v2864, %v3520
        %v3649 = vmul.f32 %v2865, %v3521
        %v3650 = vmul.f32 %v2866, %v3522
        %v3651 = vmul.f32 %v2867, %v3523
        %v3652 = vmul.f32 %v2868, %v3524
        %v3653 = vmul.f32 %v2869, %v3525
        %v3654 = vmul.f32 %v2870, %v3526
        %v3655 = vmul.f32 %v2871, %v3527
        %v3656 = vmul.f32 %v2872, %v3528
        %v3657 = vmul.f32 %v2873, %v3529
        %v3658 = vmul.f32 %v2874, %v3530
        %v3659 = vmul.f32 %v2875, %v3531
        %v3660 = vmul.f32 %v2876, %v3532
        %v3661 = vmul.f32 %v2877, %v3533
        %v3662 = vmul.f32 %v2878, %v3534
        %v3663 = vmul.f32 %v2879, %v3535
        %v3664 = vmul.f32 %v2880, %v3536
        %v3665 = vmul.f32 %v2881, %v3537
        %v3666 = vmul.f32 %v2882, %v3538
        %v3667 = vmul.f32 %v2883, %v3539
        %v3668 = vmul.f32 %v2884, %v3540
        %v3669 = vmul.f32 %v2885, %v3541
        %v3670 = vmul.f32 %v2886, %v3542
        %v3671 = vmul.f32 %v2887, %v3543
        %v3672 = vmul.f32 %v2888, %v3544
        %v3673 = vmul.f32 %v2889, %v3545
        %v3674 = vmul.f32 %v2890, %v3546
        %v3675 = vmul.f32 %v2891, %v3547
        %v3676 = vmul.f32 %v2892, %v3548
        %v3677 = vmul.f32 %v2893, %v3549
        %v3678 = vmul.f32 %v2894, %v3550
        %v3679 = vmul.f32 %v2895, %v3551
        %v3680 = vmul.f32 %v2896, %v3552
        %v3681 = vmul.f32 %v2897, %v3553
        %v3682 = vmul.f32 %v2898, %v3554
        %v3683 = vmul.f32 %v2899, %v3555
        %v3684 = vmul.f32 %v2900, %v3556
        %v3685 = vmul.f32 %v2901, %v3557
        %v3686 = vmul.f32 %v2902, %v3558
        %v3687 = vmul.f32 %v2903, %v3559
        %v3688 = vmul.f32 %v2904, %v3560
        %v3689 = vmul.f32 %v2905, %v3561
        %v3690 = vmul.f32 %v2906, %v3562
        %v3691 = vmul.f32 %v2907, %v3563
        %v3692 = vmul.f32 %v2908, %v3564
        %v3693 = vmul.f32 %v2909, %v3565
        %v3694 = vmul.f32 %v2910, %v3566
        %v3695 = vmul.f32 %v2911, %v3567
        %v3696 = vmul.f32 %v2912, %v3568
        %v3697 = vmul.f32 %v2913, %v3569
        %v3698 = vmul.f32 %v2914, %v3570
        %v3699 = vmul.f32 %v2915, %v3571
        %v3700 = vmul.f32 %v2916, %v3572
        %v3701 = vmul.f32 %v2917, %v3573
        %v3702 = vmul.f32 %v2918, %v3574
        %v3703 = vmul.f32 %v2919, %v3575
        %v3704 = vmul.f32 %v2920, %v3576
        %v3705 = vmul.f32 %v2921, %v3577
        %v3706 = vmul.f32 %v2922, %v3578
        %v3707 = vmul.f32 %v2923, %v3579
        %v3708 = vmul.f32 %v2924, %v3580
        %v3709 = vmul.f32 %v2925, %v3581
        %v3710 = vmul.f32 %v2926, %v3582
        %v3711 = vmul.f32 %v2927, %v3583
        %v3712 = vmul.f32 %v2928, %v3584
        %v3713 = vmul.f32 %v2929, %v3585
        %v3714 = vmul.f32 %v2930, %v3586
        %v3715 = vmul.f32 %v2931, %v3587
        %v3716 = vmul.f32 %v2932, %v3588
        %v3717 = vmul.f32 %v2933, %v3589
        %v3718 = vmul.f32 %v2934, %v3590
        %v3719 = vmul.f32 %v2935, %v3591
        %v3720 = vmul.f32 %v2936, %v3592
        %v3721 = vmul.f32 %v2937, %v3593
        %v3722 = vmul.f32 %v2938, %v3594
        %v3723 = vmul.f32 %v2939, %v3595
        %v3724 = vmul.f32 %v2940, %v3596
        %v3725 = vmul.f32 %v2941, %v3597
        %v3726 = vmul.f32 %v2942, %v3598
        %v3727 = vmul.f32 %v2943, %v3599
        %v3728 = vmul.f32 %v2944, %v3600
        %v3729 = vmul.f32 %v2945, %v3601
        %v3730 = vmul.f32 %v2946, %v3602
        %v3731 = vmul.f32 %v2947, %v3603
        %v3732 = vmul.f32 %v2948, %v3604
        %v3733 = vmul.f32 %v2949, %v3605
        %v3734 = vmul.f32 %v2950, %v3606
        %v3735 = vmul.f32 %v2951, %v3607
        %v3736 = vmul.f32 %v2952, %v3608
        %v3737 = vmul.f32 %v2953, %v3609
        %v3738 = vmul.f32 %v2954, %v3610
        %v3739 = vmul.f32 %v2955, %v3611
        %v3740 = vld [vmem:[%s235] sm:$0xff]
        %v3741 = vld [vmem:[%s235 + $0x8] sm:$0xff]
        %vm3742 = vcmask 523264
        %v3744 = vsel %vm3742, %v3740, 0
        %v3747 = vsel %vm3742, %v3741, 0
        %3749 = vmatprep.subr.mxu0 %v3613
        %3750 = vmatpush1.msra.mxu0 %v3612
        %3751 = vmatprep.subr.mxu0 %v3629
        %3752 = vmatpush1.msra.mxu0 %v3628
        %3753 = vmatprep.subr.mxu0 %v3645
        %3754 = vmatpush1.msra.mxu0 %v3644
        %3755 = vmatprep.subr.mxu0 %v3661
        %3756 = vmatpush1.msra.mxu0 %v3660
        %3757 = vmatprep.subr.mxu0 %v3677
        %3758 = vmatpush1.msra.mxu0 %v3676
        %3759 = vmatprep.subr.mxu0 %v3693
        %3760 = vmatpush1.msra.mxu0 %v3692
        %3761 = vmatprep.subr.mxu0 %v3709
        %3762 = vmatpush1.msra.mxu0 %v3708
        %3763 = vmatprep.subr.mxu0 %v3725
        %3764 = vmatpush1.msra.mxu0 %v3724
        %3765 = vmatprep.subr.mxu0 0.0
        %3766 = vmatpush1.msra.mxu0 0.0
        %3767 = vmatprep.subr.mxu0 0.0
        %3768 = vmatpush1.msra.mxu0 0.0
        %3769 = vmatprep.subr.mxu0 0.0
        %3770 = vmatpush1.msra.mxu0 0.0
        %3771 = vmatprep.subr.mxu0 0.0
        %3772 = vmatpush1.msra.mxu0 0.0
        %3773 = vmatprep.subr.mxu0 0.0
        %3774 = vmatpush1.msra.mxu0 0.0
        %3775 = vmatprep.subr.mxu0 0.0
        %3776 = vmatpush1.msra.mxu0 0.0
        %3777 = vmatprep.subr.mxu0 0.0
        %3778 = vmatpush1.msra.mxu0 0.0
        %3779 = vmatprep.subr.mxu0 0.0
        %3780 = vmatpush1.msra.mxu0 0.0
        %3781 = vmatprep.subr.mxu0 0.0
        %3782 = vmatpush1.msra.mxu0 0.0
        %3783 = vmatprep.subr.mxu0 0.0
        %3784 = vmatpush1.msra.mxu0 0.0
        %3785 = vmatprep.subr.mxu0 0.0
        %3786 = vmatpush1.msra.mxu0 0.0
        %3787 = vmatprep.subr.mxu0 0.0
        %3788 = vmatpush1.msra.mxu0 0.0
        %3789 = vmatprep.subr.mxu0 0.0
        %3790 = vmatpush1.msra.mxu0 0.0
        %3791 = vmatprep.subr.mxu0 0.0
        %3792 = vmatpush1.msra.mxu0 0.0
        %3793 = vmatprep.subr.mxu0 0.0
        %3794 = vmatpush1.msra.mxu0 0.0
        %3795 = vmatprep.subr.mxu0 0.0
        %3796 = vmatpush1.msra.mxu0 0.0
        %3797 = vmatprep.subr.mxu0 0.0
        %3798 = vmatpush1.msra.mxu0 0.0
        %3799 = vmatprep.subr.mxu0 0.0
        %3800 = vmatpush1.msra.mxu0 0.0
        %3801 = vmatprep.subr.mxu0 0.0
        %3802 = vmatpush1.msra.mxu0 0.0
        %3803 = vmatprep.subr.mxu0 0.0
        %3804 = vmatpush1.msra.mxu0 0.0
        %3805 = vmatprep.subr.mxu0 0.0
        %3806 = vmatpush1.msra.mxu0 0.0
        %3807 = vmatprep.subr.mxu0 0.0
        %3808 = vmatpush1.msra.mxu0 0.0
        %3809 = vmatprep.subr.mxu0 0.0
        %3810 = vmatpush1.msra.mxu0 0.0
        %3811 = vmatprep.subr.mxu0 0.0
        %3812 = vmatpush1.msra.mxu0 0.0
        %3813 = vmatprep.mubr.f32.mxu0 0.0
        %3814 = vmatmul.mubr.f32.gmra.mrb[0].mxu0 %v3744
        %v3815 = vpop.f32.mrb[0].mxu0
        %v3816 = vadd.f32 0.0, %v3815
        %v3817 = vpop.f32.mrb[0].mxu0
        %v3818 = vadd.f32 0.0, %v3817
        %3819 = vmatprep.mubr.f32.mxu0 0.0
        %3820 = vmatmul.mubr.f32.gmra.mrb[0].mxu0 %v3747
        %v3821 = vpop.f32.mrb[0].mxu0
        %v3822 = vadd.f32 0.0, %v3821
        %v3823 = vpop.f32.mrb[0].mxu0
        %v3824 = vadd.f32 0.0, %v3823
        %3825 = vdwg.mxu0
        %3826 = vmatprep.subr.mxu0 %v3615
        %3827 = vmatpush1.msra.mxu0 %v3614
        %3828 = vmatprep.subr.mxu0 %v3631
        %3829 = vmatpush1.msra.mxu0 %v3630
        %3830 = vmatprep.subr.mxu0 %v3647
        %3831 = vmatpush1.msra.mxu0 %v3646
        %3832 = vmatprep.subr.mxu0 %v3663
        %3833 = vmatpush1.msra.mxu0 %v3662
        %3834 = vmatprep.subr.mxu0 %v3679
        %3835 = vmatpush1.msra.mxu0 %v3678
        %3836 = vmatprep.subr.mxu0 %v3695
        %3837 = vmatpush1.msra.mxu0 %v3694
        %3838 = vmatprep.subr.mxu0 %v3711
        %3839 = vmatpush1.msra.mxu0 %v3710
        %3840 = vmatprep.subr.mxu0 %v3727
        %3841 = vmatpush1.msra.mxu0 %v3726
        %3842 = vmatprep.subr.mxu0 0.0
        %3843 = vmatpush1.msra.mxu0 0.0
        %3844 = vmatprep.subr.mxu0 0.0
        %3845 = vmatpush1.msra.mxu0 0.0
        %3846 = vmatprep.subr.mxu0 0.0
        %3847 = vmatpush1.msra.mxu0 0.0
        %3848 = vmatprep.subr.mxu0 0.0
        %3849 = vmatpush1.msra.mxu0 0.0
        %3850 = vmatprep.subr.mxu0 0.0
        %3851 = vmatpush1.msra.mxu0 0.0
        %3852 = vmatprep.subr.mxu0 0.0
        %3853 = vmatpush1.msra.mxu0 0.0
        %3854 = vmatprep.subr.mxu0 0.0
        %3855 = vmatpush1.msra.mxu0 0.0
        %3856 = vmatprep.subr.mxu0 0.0
        %3857 = vmatpush1.msra.mxu0 0.0
        %3858 = vmatprep.subr.mxu0 0.0
        %3859 = vmatpush1.msra.mxu0 0.0
        %3860 = vmatprep.subr.mxu0 0.0
        %3861 = vmatpush1.msra.mxu0 0.0
        %3862 = vmatprep.subr.mxu0 0.0
        %3863 = vmatpush1.msra.mxu0 0.0
        %3864 = vmatprep.subr.mxu0 0.0
        %3865 = vmatpush1.msra.mxu0 0.0
        %3866 = vmatprep.subr.mxu0 0.0
        %3867 = vmatpush1.msra.mxu0 0.0
        %3868 = vmatprep.subr.mxu0 0.0
        %3869 = vmatpush1.msra.mxu0 0.0
        %3870 = vmatprep.subr.mxu0 0.0
        %3871 = vmatpush1.msra.mxu0 0.0
        %3872 = vmatprep.subr.mxu0 0.0
        %3873 = vmatpush1.msra.mxu0 0.0
        %3874 = vmatprep.subr.mxu0 0.0
        %3875 = vmatpush1.msra.mxu0 0.0
        %3876 = vmatprep.subr.mxu0 0.0
        %3877 = vmatpush1.msra.mxu0 0.0
        %3878 = vmatprep.subr.mxu0 0.0
        %3879 = vmatpush1.msra.mxu0 0.0
        %3880 = vmatprep.subr.mxu0 0.0
        %3881 = vmatpush1.msra.mxu0 0.0
        %3882 = vmatprep.subr.mxu0 0.0
        %3883 = vmatpush1.msra.mxu0 0.0
        %3884 = vmatprep.subr.mxu0 0.0
        %3885 = vmatpush1.msra.mxu0 0.0
        %3886 = vmatprep.subr.mxu0 0.0
        %3887 = vmatpush1.msra.mxu0 0.0
        %3888 = vmatprep.subr.mxu0 0.0
        %3889 = vmatpush1.msra.mxu0 0.0
        %3890 = vmatprep.mubr.f32.mxu0 0.0
        %3891 = vmatmul.mubr.f32.gmra.mrb[0].mxu0 %v3744
        %v3892 = vpop.f32.mrb[0].mxu0
        %v3893 = vadd.f32 0.0, %v3892
        %v3894 = vpop.f32.mrb[0].mxu0
        %v3895 = vadd.f32 0.0, %v3894
        %3896 = vmatprep.mubr.f32.mxu0 0.0
        %3897 = vmatmul.mubr.f32.gmra.mrb[0].mxu0 %v3747
        %v3898 = vpop.f32.mrb[0].mxu0
        %v3899 = vadd.f32 0.0, %v3898
        %v3900 = vpop.f32.mrb[0].mxu0
        %v3901 = vadd.f32 0.0, %v3900
        %3902 = vdwg.mxu0
        %3903 = vmatprep.subr.mxu0 %v3617
        %3904 = vmatpush1.msra.mxu0 %v3616
        %3905 = vmatprep.subr.mxu0 %v3633
        %3906 = vmatpush1.msra.mxu0 %v3632
        %3907 = vmatprep.subr.mxu0 %v3649
        %3908 = vmatpush1.msra.mxu0 %v3648
        %3909 = vmatprep.subr.mxu0 %v3665
        %3910 = vmatpush1.msra.mxu0 %v3664
        %3911 = vmatprep.subr.mxu0 %v3681
        %3912 = vmatpush1.msra.mxu0 %v3680
        %3913 = vmatprep.subr.mxu0 %v3697
        %3914 = vmatpush1.msra.mxu0 %v3696
        %3915 = vmatprep.subr.mxu0 %v3713
        %3916 = vmatpush1.msra.mxu0 %v3712
        %3917 = vmatprep.subr.mxu0 %v3729
        %3918 = vmatpush1.msra.mxu0 %v3728
        %3919 = vmatprep.subr.mxu0 0.0
        %3920 = vmatpush1.msra.mxu0 0.0
        %3921 = vmatprep.subr.mxu0 0.0
        %3922 = vmatpush1.msra.mxu0 0.0
        %3923 = vmatprep.subr.mxu0 0.0
        %3924 = vmatpush1.msra.mxu0 0.0
        %3925 = vmatprep.subr.mxu0 0.0
        %3926 = vmatpush1.msra.mxu0 0.0
        %3927 = vmatprep.subr.mxu0 0.0
        %3928 = vmatpush1.msra.mxu0 0.0
        %3929 = vmatprep.subr.mxu0 0.0
        %3930 = vmatpush1.msra.mxu0 0.0
        %3931 = vmatprep.subr.mxu0 0.0
        %3932 = vmatpush1.msra.mxu0 0.0
        %3933 = vmatprep.subr.mxu0 0.0
        %3934 = vmatpush1.msra.mxu0 0.0
        %3935 = vmatprep.subr.mxu0 0.0
        %3936 = vmatpush1.msra.mxu0 0.0
        %3937 = vmatprep.subr.mxu0 0.0
        %3938 = vmatpush1.msra.mxu0 0.0
        %3939 = vmatprep.subr.mxu0 0.0
        %3940 = vmatpush1.msra.mxu0 0.0
        %3941 = vmatprep.subr.mxu0 0.0
        %3942 = vmatpush1.msra.mxu0 0.0
        %3943 = vmatprep.subr.mxu0 0.0
        %3944 = vmatpush1.msra.mxu0 0.0
        %3945 = vmatprep.subr.mxu0 0.0
        %3946 = vmatpush1.msra.mxu0 0.0
        %3947 = vmatprep.subr.mxu0 0.0
        %3948 = vmatpush1.msra.mxu0 0.0
        %3949 = vmatprep.subr.mxu0 0.0
        %3950 = vmatpush1.msra.mxu0 0.0
        %3951 = vmatprep.subr.mxu0 0.0
        %3952 = vmatpush1.msra.mxu0 0.0
        %3953 = vmatprep.subr.mxu0 0.0
        %3954 = vmatpush1.msra.mxu0 0.0
        %3955 = vmatprep.subr.mxu0 0.0
        %3956 = vmatpush1.msra.mxu0 0.0
        %3957 = vmatprep.subr.mxu0 0.0
        %3958 = vmatpush1.msra.mxu0 0.0
        %3959 = vmatprep.subr.mxu0 0.0
        %3960 = vmatpush1.msra.mxu0 0.0
        %3961 = vmatprep.subr.mxu0 0.0
        %3962 = vmatpush1.msra.mxu0 0.0
        %3963 = vmatprep.subr.mxu0 0.0
        %3964 = vmatpush1.msra.mxu0 0.0
        %3965 = vmatprep.subr.mxu0 0.0
        %3966 = vmatpush1.msra.mxu0 0.0
        %3967 = vmatprep.mubr.f32.mxu0 0.0
        %3968 = vmatmul.mubr.f32.gmra.mrb[0].mxu0 %v3744
        %v3969 = vpop.f32.mrb[0].mxu0
        %v3970 = vadd.f32 0.0, %v3969
        %v3971 = vpop.f32.mrb[0].mxu0
        %v3972 = vadd.f32 0.0, %v3971
        %3973 = vmatprep.mubr.f32.mxu0 0.0
        %3974 = vmatmul.mubr.f32.gmra.mrb[0].mxu0 %v3747
        %v3975 = vpop.f32.mrb[0].mxu0
        %v3976 = vadd.f32 0.0, %v3975
        %v3977 = vpop.f32.mrb[0].mxu0
        %v3978 = vadd.f32 0.0, %v3977
        %3979 = vdwg.mxu0
        %3980 = vmatprep.subr.mxu0 %v3619
        %3981 = vmatpush1.msra.mxu0 %v3618
        %3982 = vmatprep.subr.mxu0 %v3635
        %3983 = vmatpush1.msra.mxu0 %v3634
        %3984 = vmatprep.subr.mxu0 %v3651
        %3985 = vmatpush1.msra.mxu0 %v3650
        %3986 = vmatprep.subr.mxu0 %v3667
        %3987 = vmatpush1.msra.mxu0 %v3666
        %3988 = vmatprep.subr.mxu0 %v3683
        %3989 = vmatpush1.msra.mxu0 %v3682
        %3990 = vmatprep.subr.mxu0 %v3699
        %3991 = vmatpush1.msra.mxu0 %v3698
        %3992 = vmatprep.subr.mxu0 %v3715
        %3993 = vmatpush1.msra.mxu0 %v3714
        %3994 = vmatprep.subr.mxu0 %v3731
        %3995 = vmatpush1.msra.mxu0 %v3730
        %3996 = vmatprep.subr.mxu0 0.0
        %3997 = vmatpush1.msra.mxu0 0.0
        %3998 = vmatprep.subr.mxu0 0.0
        %3999 = vmatpush1.msra.mxu0 0.0
        %4000 = vmatprep.subr.mxu0 0.0
        %4001 = vmatpush1.msra.mxu0 0.0
        %4002 = vmatprep.subr.mxu0 0.0
        %4003 = vmatpush1.msra.mxu0 0.0
        %4004 = vmatprep.subr.mxu0 0.0
        %4005 = vmatpush1.msra.mxu0 0.0
        %4006 = vmatprep.subr.mxu0 0.0
        %4007 = vmatpush1.msra.mxu0 0.0
        %4008 = vmatprep.subr.mxu0 0.0
        %4009 = vmatpush1.msra.mxu0 0.0
        %4010 = vmatprep.subr.mxu0 0.0
        %4011 = vmatpush1.msra.mxu0 0.0
        %4012 = vmatprep.subr.mxu0 0.0
        %4013 = vmatpush1.msra.mxu0 0.0
        %4014 = vmatprep.subr.mxu0 0.0
        %4015 = vmatpush1.msra.mxu0 0.0
        %4016 = vmatprep.subr.mxu0 0.0
        %4017 = vmatpush1.msra.mxu0 0.0
        %4018 = vmatprep.subr.mxu0 0.0
        %4019 = vmatpush1.msra.mxu0 0.0
        %4020 = vmatprep.subr.mxu0 0.0
        %4021 = vmatpush1.msra.mxu0 0.0
        %4022 = vmatprep.subr.mxu0 0.0
        %4023 = vmatpush1.msra.mxu0 0.0
        %4024 = vmatprep.subr.mxu0 0.0
        %4025 = vmatpush1.msra.mxu0 0.0
        %4026 = vmatprep.subr.mxu0 0.0
        %4027 = vmatpush1.msra.mxu0 0.0
        %4028 = vmatprep.subr.mxu0 0.0
        %4029 = vmatpush1.msra.mxu0 0.0
        %4030 = vmatprep.subr.mxu0 0.0
        %4031 = vmatpush1.msra.mxu0 0.0
        %4032 = vmatprep.subr.mxu0 0.0
        %4033 = vmatpush1.msra.mxu0 0.0
        %4034 = vmatprep.subr.mxu0 0.0
        %4035 = vmatpush1.msra.mxu0 0.0
        %4036 = vmatprep.subr.mxu0 0.0
        %4037 = vmatpush1.msra.mxu0 0.0
        %4038 = vmatprep.subr.mxu0 0.0
        %4039 = vmatpush1.msra.mxu0 0.0
        %4040 = vmatprep.subr.mxu0 0.0
        %4041 = vmatpush1.msra.mxu0 0.0
        %4042 = vmatprep.subr.mxu0 0.0
        %4043 = vmatpush1.msra.mxu0 0.0
        %4044 = vmatprep.mubr.f32.mxu0 0.0
        %4045 = vmatmul.mubr.f32.gmra.mrb[0].mxu0 %v3744
        %v4046 = vpop.f32.mrb[0].mxu0
        %v4047 = vadd.f32 0.0, %v4046
        %v4048 = vpop.f32.mrb[0].mxu0
        %v4049 = vadd.f32 0.0, %v4048
        %4050 = vmatprep.mubr.f32.mxu0 0.0
        %4051 = vmatmul.mubr.f32.gmra.mrb[0].mxu0 %v3747
        %v4052 = vpop.f32.mrb[0].mxu0
        %v4053 = vadd.f32 0.0, %v4052
        %v4054 = vpop.f32.mrb[0].mxu0
        %v4055 = vadd.f32 0.0, %v4054
        %4056 = vdwg.mxu0
        %4057 = vmatprep.subr.mxu0 %v3621
        %4058 = vmatpush1.msra.mxu0 %v3620
        %4059 = vmatprep.subr.mxu0 %v3637
        %4060 = vmatpush1.msra.mxu0 %v3636
        %4061 = vmatprep.subr.mxu0 %v3653
        %4062 = vmatpush1.msra.mxu0 %v3652
        %4063 = vmatprep.subr.mxu0 %v3669
        %4064 = vmatpush1.msra.mxu0 %v3668
        %4065 = vmatprep.subr.mxu0 %v3685
        %4066 = vmatpush1.msra.mxu0 %v3684
        %4067 = vmatprep.subr.mxu0 %v3701
        %4068 = vmatpush1.msra.mxu0 %v3700
        %4069 = vmatprep.subr.mxu0 %v3717
        %4070 = vmatpush1.msra.mxu0 %v3716
        %4071 = vmatprep.subr.mxu0 %v3733
        %4072 = vmatpush1.msra.mxu0 %v3732
        %4073 = vmatprep.subr.mxu0 0.0
        %4074 = vmatpush1.msra.mxu0 0.0
        %4075 = vmatprep.subr.mxu0 0.0
        %4076 = vmatpush1.msra.mxu0 0.0
        %4077 = vmatprep.subr.mxu0 0.0
        %4078 = vmatpush1.msra.mxu0 0.0
        %4079 = vmatprep.subr.mxu0 0.0
        %4080 = vmatpush1.msra.mxu0 0.0
        %4081 = vmatprep.subr.mxu0 0.0
        %4082 = vmatpush1.msra.mxu0 0.0
        %4083 = vmatprep.subr.mxu0 0.0
        %4084 = vmatpush1.msra.mxu0 0.0
        %4085 = vmatprep.subr.mxu0 0.0
        %4086 = vmatpush1.msra.mxu0 0.0
        %4087 = vmatprep.subr.mxu0 0.0
        %4088 = vmatpush1.msra.mxu0 0.0
        %4089 = vmatprep.subr.mxu0 0.0
        %4090 = vmatpush1.msra.mxu0 0.0
        %4091 = vmatprep.subr.mxu0 0.0
        %4092 = vmatpush1.msra.mxu0 0.0
        %4093 = vmatprep.subr.mxu0 0.0
        %4094 = vmatpush1.msra.mxu0 0.0
        %4095 = vmatprep.subr.mxu0 0.0
        %4096 = vmatpush1.msra.mxu0 0.0
        %4097 = vmatprep.subr.mxu0 0.0
        %4098 = vmatpush1.msra.mxu0 0.0
        %4099 = vmatprep.subr.mxu0 0.0
        %4100 = vmatpush1.msra.mxu0 0.0
        %4101 = vmatprep.subr.mxu0 0.0
        %4102 = vmatpush1.msra.mxu0 0.0
        %4103 = vmatprep.subr.mxu0 0.0
        %4104 = vmatpush1.msra.mxu0 0.0
        %4105 = vmatprep.subr.mxu0 0.0
        %4106 = vmatpush1.msra.mxu0 0.0
        %4107 = vmatprep.subr.mxu0 0.0
        %4108 = vmatpush1.msra.mxu0 0.0
        %4109 = vmatprep.subr.mxu0 0.0
        %4110 = vmatpush1.msra.mxu0 0.0
        %4111 = vmatprep.subr.mxu0 0.0
        %4112 = vmatpush1.msra.mxu0 0.0
        %4113 = vmatprep.subr.mxu0 0.0
        %4114 = vmatpush1.msra.mxu0 0.0
        %4115 = vmatprep.subr.mxu0 0.0
        %4116 = vmatpush1.msra.mxu0 0.0
        %4117 = vmatprep.subr.mxu0 0.0
        %4118 = vmatpush1.msra.mxu0 0.0
        %4119 = vmatprep.subr.mxu0 0.0
        %4120 = vmatpush1.msra.mxu0 0.0
        %4121 = vmatprep.mubr.f32.mxu0 0.0
        %4122 = vmatmul.mubr.f32.gmra.mrb[0].mxu0 %v3744
        %v4123 = vpop.f32.mrb[0].mxu0
        %v4124 = vadd.f32 0.0, %v4123
        %v4125 = vpop.f32.mrb[0].mxu0
        %v4126 = vadd.f32 0.0, %v4125
        %4127 = vmatprep.mubr.f32.mxu0 0.0
        %4128 = vmatmul.mubr.f32.gmra.mrb[0].mxu0 %v3747
        %v4129 = vpop.f32.mrb[0].mxu0
        %v4130 = vadd.f32 0.0, %v4129
        %v4131 = vpop.f32.mrb[0].mxu0
        %v4132 = vadd.f32 0.0, %v4131
        %4133 = vdwg.mxu0
        %4134 = vmatprep.subr.mxu0 %v3623
        %4135 = vmatpush1.msra.mxu0 %v3622
        %4136 = vmatprep.subr.mxu0 %v3639
        %4137 = vmatpush1.msra.mxu0 %v3638
        %4138 = vmatprep.subr.mxu0 %v3655
        %4139 = vmatpush1.msra.mxu0 %v3654
        %4140 = vmatprep.subr.mxu0 %v3671
        %4141 = vmatpush1.msra.mxu0 %v3670
        %4142 = vmatprep.subr.mxu0 %v3687
        %4143 = vmatpush1.msra.mxu0 %v3686
        %4144 = vmatprep.subr.mxu0 %v3703
        %4145 = vmatpush1.msra.mxu0 %v3702
        %4146 = vmatprep.subr.mxu0 %v3719
        %4147 = vmatpush1.msra.mxu0 %v3718
        %4148 = vmatprep.subr.mxu0 %v3735
        %4149 = vmatpush1.msra.mxu0 %v3734
        %4150 = vmatprep.subr.mxu0 0.0
        %4151 = vmatpush1.msra.mxu0 0.0
        %4152 = vmatprep.subr.mxu0 0.0
        %4153 = vmatpush1.msra.mxu0 0.0
        %4154 = vmatprep.subr.mxu0 0.0
        %4155 = vmatpush1.msra.mxu0 0.0
        %4156 = vmatprep.subr.mxu0 0.0
        %4157 = vmatpush1.msra.mxu0 0.0
        %4158 = vmatprep.subr.mxu0 0.0
        %4159 = vmatpush1.msra.mxu0 0.0
        %4160 = vmatprep.subr.mxu0 0.0
        %4161 = vmatpush1.msra.mxu0 0.0
        %4162 = vmatprep.subr.mxu0 0.0
        %4163 = vmatpush1.msra.mxu0 0.0
        %4164 = vmatprep.subr.mxu0 0.0
        %4165 = vmatpush1.msra.mxu0 0.0
        %4166 = vmatprep.subr.mxu0 0.0
        %4167 = vmatpush1.msra.mxu0 0.0
        %4168 = vmatprep.subr.mxu0 0.0
        %4169 = vmatpush1.msra.mxu0 0.0
        %4170 = vmatprep.subr.mxu0 0.0
        %4171 = vmatpush1.msra.mxu0 0.0
        %4172 = vmatprep.subr.mxu0 0.0
        %4173 = vmatpush1.msra.mxu0 0.0
        %4174 = vmatprep.subr.mxu0 0.0
        %4175 = vmatpush1.msra.mxu0 0.0
        %4176 = vmatprep.subr.mxu0 0.0
        %4177 = vmatpush1.msra.mxu0 0.0
        %4178 = vmatprep.subr.mxu0 0.0
        %4179 = vmatpush1.msra.mxu0 0.0
        %4180 = vmatprep.subr.mxu0 0.0
        %4181 = vmatpush1.msra.mxu0 0.0
        %4182 = vmatprep.subr.mxu0 0.0
        %4183 = vmatpush1.msra.mxu0 0.0
        %4184 = vmatprep.subr.mxu0 0.0
        %4185 = vmatpush1.msra.mxu0 0.0
        %4186 = vmatprep.subr.mxu0 0.0
        %4187 = vmatpush1.msra.mxu0 0.0
        %4188 = vmatprep.subr.mxu0 0.0
        %4189 = vmatpush1.msra.mxu0 0.0
        %4190 = vmatprep.subr.mxu0 0.0
        %4191 = vmatpush1.msra.mxu0 0.0
        %4192 = vmatprep.subr.mxu0 0.0
        %4193 = vmatpush1.msra.mxu0 0.0
        %4194 = vmatprep.subr.mxu0 0.0
        %4195 = vmatpush1.msra.mxu0 0.0
        %4196 = vmatprep.subr.mxu0 0.0
        %4197 = vmatpush1.msra.mxu0 0.0
        %4198 = vmatprep.mubr.f32.mxu0 0.0
        %4199 = vmatmul.mubr.f32.gmra.mrb[0].mxu0 %v3744
        %v4200 = vpop.f32.mrb[0].mxu0
        %v4201 = vadd.f32 0.0, %v4200
        %v4202 = vpop.f32.mrb[0].mxu0
        %v4203 = vadd.f32 0.0, %v4202
        %4204 = vmatprep.mubr.f32.mxu0 0.0
        %4205 = vmatmul.mubr.f32.gmra.mrb[0].mxu0 %v3747
        %v4206 = vpop.f32.mrb[0].mxu0
        %v4207 = vadd.f32 0.0, %v4206
        %v4208 = vpop.f32.mrb[0].mxu0
        %v4209 = vadd.f32 0.0, %v4208
        %4210 = vdwg.mxu0
        %4211 = vmatprep.subr.mxu0 %v3625
        %4212 = vmatpush1.msra.mxu0 %v3624
        %4213 = vmatprep.subr.mxu0 %v3641
        %4214 = vmatpush1.msra.mxu0 %v3640
        %4215 = vmatprep.subr.mxu0 %v3657
        %4216 = vmatpush1.msra.mxu0 %v3656
        %4217 = vmatprep.subr.mxu0 %v3673
        %4218 = vmatpush1.msra.mxu0 %v3672
        %4219 = vmatprep.subr.mxu0 %v3689
        %4220 = vmatpush1.msra.mxu0 %v3688
        %4221 = vmatprep.subr.mxu0 %v3705
        %4222 = vmatpush1.msra.mxu0 %v3704
        %4223 = vmatprep.subr.mxu0 %v3721
        %4224 = vmatpush1.msra.mxu0 %v3720
        %4225 = vmatprep.subr.mxu0 %v3737
        %4226 = vmatpush1.msra.mxu0 %v3736
        %4227 = vmatprep.subr.mxu0 0.0
        %4228 = vmatpush1.msra.mxu0 0.0
        %4229 = vmatprep.subr.mxu0 0.0
        %4230 = vmatpush1.msra.mxu0 0.0
        %4231 = vmatprep.subr.mxu0 0.0
        %4232 = vmatpush1.msra.mxu0 0.0
        %4233 = vmatprep.subr.mxu0 0.0
        %4234 = vmatpush1.msra.mxu0 0.0
        %4235 = vmatprep.subr.mxu0 0.0
        %4236 = vmatpush1.msra.mxu0 0.0
        %4237 = vmatprep.subr.mxu0 0.0
        %4238 = vmatpush1.msra.mxu0 0.0
        %4239 = vmatprep.subr.mxu0 0.0
        %4240 = vmatpush1.msra.mxu0 0.0
        %4241 = vmatprep.subr.mxu0 0.0
        %4242 = vmatpush1.msra.mxu0 0.0
        %4243 = vmatprep.subr.mxu0 0.0
        %4244 = vmatpush1.msra.mxu0 0.0
        %4245 = vmatprep.subr.mxu0 0.0
        %4246 = vmatpush1.msra.mxu0 0.0
        %4247 = vmatprep.subr.mxu0 0.0
        %4248 = vmatpush1.msra.mxu0 0.0
        %4249 = vmatprep.subr.mxu0 0.0
        %4250 = vmatpush1.msra.mxu0 0.0
        %4251 = vmatprep.subr.mxu0 0.0
        %4252 = vmatpush1.msra.mxu0 0.0
        %4253 = vmatprep.subr.mxu0 0.0
        %4254 = vmatpush1.msra.mxu0 0.0
        %4255 = vmatprep.subr.mxu0 0.0
        %4256 = vmatpush1.msra.mxu0 0.0
        %4257 = vmatprep.subr.mxu0 0.0
        %4258 = vmatpush1.msra.mxu0 0.0
        %4259 = vmatprep.subr.mxu0 0.0
        %4260 = vmatpush1.msra.mxu0 0.0
        %4261 = vmatprep.subr.mxu0 0.0
        %4262 = vmatpush1.msra.mxu0 0.0
        %4263 = vmatprep.subr.mxu0 0.0
        %4264 = vmatpush1.msra.mxu0 0.0
        %4265 = vmatprep.subr.mxu0 0.0
        %4266 = vmatpush1.msra.mxu0 0.0
        %4267 = vmatprep.subr.mxu0 0.0
        %4268 = vmatpush1.msra.mxu0 0.0
        %4269 = vmatprep.subr.mxu0 0.0
        %4270 = vmatpush1.msra.mxu0 0.0
        %4271 = vmatprep.subr.mxu0 0.0
        %4272 = vmatpush1.msra.mxu0 0.0
        %4273 = vmatprep.subr.mxu0 0.0
        %4274 = vmatpush1.msra.mxu0 0.0
        %4275 = vmatprep.mubr.f32.mxu0 0.0
        %4276 = vmatmul.mubr.f32.gmra.mrb[0].mxu0 %v3744
        %v4277 = vpop.f32.mrb[0].mxu0
        %v4278 = vadd.f32 0.0, %v4277
        %v4279 = vpop.f32.mrb[0].mxu0
        %v4280 = vadd.f32 0.0, %v4279
        %4281 = vmatprep.mubr.f32.mxu0 0.0
        %4282 = vmatmul.mubr.f32.gmra.mrb[0].mxu0 %v3747
        %v4283 = vpop.f32.mrb[0].mxu0
        %v4284 = vadd.f32 0.0, %v4283
        %v4285 = vpop.f32.mrb[0].mxu0
        %v4286 = vadd.f32 0.0, %v4285
        %4287 = vdwg.mxu0
        %4288 = vmatprep.subr.mxu0 %v3627
        %4289 = vmatpush1.msra.mxu0 %v3626
        %4290 = vmatprep.subr.mxu0 %v3643
        %4291 = vmatpush1.msra.mxu0 %v3642
        %4292 = vmatprep.subr.mxu0 %v3659
        %4293 = vmatpush1.msra.mxu0 %v3658
        %4294 = vmatprep.subr.mxu0 %v3675
        %4295 = vmatpush1.msra.mxu0 %v3674
        %4296 = vmatprep.subr.mxu0 %v3691
        %4297 = vmatpush1.msra.mxu0 %v3690
        %4298 = vmatprep.subr.mxu0 %v3707
        %4299 = vmatpush1.msra.mxu0 %v3706
        %4300 = vmatprep.subr.mxu0 %v3723
        %4301 = vmatpush1.msra.mxu0 %v3722
        %4302 = vmatprep.subr.mxu0 %v3739
        %4303 = vmatpush1.msra.mxu0 %v3738
        %4304 = vmatprep.subr.mxu0 0.0
        %4305 = vmatpush1.msra.mxu0 0.0
        %4306 = vmatprep.subr.mxu0 0.0
        %4307 = vmatpush1.msra.mxu0 0.0
        %4308 = vmatprep.subr.mxu0 0.0
        %4309 = vmatpush1.msra.mxu0 0.0
        %4310 = vmatprep.subr.mxu0 0.0
        %4311 = vmatpush1.msra.mxu0 0.0
        %4312 = vmatprep.subr.mxu0 0.0
        %4313 = vmatpush1.msra.mxu0 0.0
        %4314 = vmatprep.subr.mxu0 0.0
        %4315 = vmatpush1.msra.mxu0 0.0
        %4316 = vmatprep.subr.mxu0 0.0
        %4317 = vmatpush1.msra.mxu0 0.0
        %4318 = vmatprep.subr.mxu0 0.0
        %4319 = vmatpush1.msra.mxu0 0.0
        %4320 = vmatprep.subr.mxu0 0.0
        %4321 = vmatpush1.msra.mxu0 0.0
        %4322 = vmatprep.subr.mxu0 0.0
        %4323 = vmatpush1.msra.mxu0 0.0
        %4324 = vmatprep.subr.mxu0 0.0
        %4325 = vmatpush1.msra.mxu0 0.0
        %4326 = vmatprep.subr.mxu0 0.0
        %4327 = vmatpush1.msra.mxu0 0.0
        %4328 = vmatprep.subr.mxu0 0.0
        %4329 = vmatpush1.msra.mxu0 0.0
        %4330 = vmatprep.subr.mxu0 0.0
        %4331 = vmatpush1.msra.mxu0 0.0
        %4332 = vmatprep.subr.mxu0 0.0
        %4333 = vmatpush1.msra.mxu0 0.0
        %4334 = vmatprep.subr.mxu0 0.0
        %4335 = vmatpush1.msra.mxu0 0.0
        %4336 = vmatprep.subr.mxu0 0.0
        %4337 = vmatpush1.msra.mxu0 0.0
        %4338 = vmatprep.subr.mxu0 0.0
        %4339 = vmatpush1.msra.mxu0 0.0
        %4340 = vmatprep.subr.mxu0 0.0
        %4341 = vmatpush1.msra.mxu0 0.0
        %4342 = vmatprep.subr.mxu0 0.0
        %4343 = vmatpush1.msra.mxu0 0.0
        %4344 = vmatprep.subr.mxu0 0.0
        %4345 = vmatpush1.msra.mxu0 0.0
        %4346 = vmatprep.subr.mxu0 0.0
        %4347 = vmatpush1.msra.mxu0 0.0
        %4348 = vmatprep.subr.mxu0 0.0
        %4349 = vmatpush1.msra.mxu0 0.0
        %4350 = vmatprep.subr.mxu0 0.0
        %4351 = vmatpush1.msra.mxu0 0.0
        %4352 = vmatprep.mubr.f32.mxu0 0.0
        %4353 = vmatmul.mubr.f32.gmra.mrb[0].mxu0 %v3744
        %v4354 = vpop.f32.mrb[0].mxu0
        %v4355 = vadd.f32 0.0, %v4354
        %v4356 = vpop.f32.mrb[0].mxu0
        %v4357 = vadd.f32 0.0, %v4356
        %4358 = vmatprep.mubr.f32.mxu0 0.0
        %4359 = vmatmul.mubr.f32.gmra.mrb[0].mxu0 %v3747
        %v4360 = vpop.f32.mrb[0].mxu0
        %v4361 = vadd.f32 0.0, %v4360
        %v4362 = vpop.f32.mrb[0].mxu0
        %v4363 = vadd.f32 0.0, %v4362
        %4364 = vdwg.mxu0
        %v4365 = vmul.f32 %v3816, %v2284
        %v4366 = vmul.f32 %v3818, %v2285
        %v4367 = vmul.f32 %v3893, %v2286
        %v4368 = vmul.f32 %v3895, %v2287
        %v4369 = vmul.f32 %v3970, %v2288
        %v4370 = vmul.f32 %v3972, %v2289
        %v4371 = vmul.f32 %v4047, %v2290
        %v4372 = vmul.f32 %v4049, %v2291
        %v4373 = vmul.f32 %v4124, %v2292
        %v4374 = vmul.f32 %v4126, %v2293
        %v4375 = vmul.f32 %v4201, %v2294
        %v4376 = vmul.f32 %v4203, %v2295
        %v4377 = vmul.f32 %v4278, %v2296
        %v4378 = vmul.f32 %v4280, %v2297
        %v4379 = vmul.f32 %v4355, %v2298
        %v4380 = vmul.f32 %v4357, %v2299
        %v4381 = vrot.slane %v4365, 4
        %v4382 = vadd.f32 %v4365, %v4381
        %v4383 = vrot.slane %v4382, 2
        %v4384 = vadd.f32 %v4382, %v4383
        %v4385 = vrot.slane %v4384, 1
        %v4386 = vadd.f32 %v4384, %v4385
        %v4387 = vrot.slane %v4366, 4
        %v4388 = vadd.f32 %v4366, %v4387
        %v4389 = vrot.slane %v4388, 2
        %v4390 = vadd.f32 %v4388, %v4389
        %v4391 = vrot.slane %v4390, 1
        %v4392 = vadd.f32 %v4390, %v4391
        %v4393 = vrot.slane %v4367, 4
        %v4394 = vadd.f32 %v4367, %v4393
        %v4395 = vrot.slane %v4394, 2
        %v4396 = vadd.f32 %v4394, %v4395
        %v4397 = vrot.slane %v4396, 1
        %v4398 = vadd.f32 %v4396, %v4397
        %v4399 = vrot.slane %v4368, 4
        %v4400 = vadd.f32 %v4368, %v4399
        %v4401 = vrot.slane %v4400, 2
        %v4402 = vadd.f32 %v4400, %v4401
        %v4403 = vrot.slane %v4402, 1
        %v4404 = vadd.f32 %v4402, %v4403
        %v4405 = vrot.slane %v4369, 4
        %v4406 = vadd.f32 %v4369, %v4405
        %v4407 = vrot.slane %v4406, 2
        %v4408 = vadd.f32 %v4406, %v4407
        %v4409 = vrot.slane %v4408, 1
        %v4410 = vadd.f32 %v4408, %v4409
        %v4411 = vrot.slane %v4370, 4
        %v4412 = vadd.f32 %v4370, %v4411
        %v4413 = vrot.slane %v4412, 2
        %v4414 = vadd.f32 %v4412, %v4413
        %v4415 = vrot.slane %v4414, 1
        %v4416 = vadd.f32 %v4414, %v4415
        %v4417 = vrot.slane %v4371, 4
        %v4418 = vadd.f32 %v4371, %v4417
        %v4419 = vrot.slane %v4418, 2
        %v4420 = vadd.f32 %v4418, %v4419
        %v4421 = vrot.slane %v4420, 1
        %v4422 = vadd.f32 %v4420, %v4421
        %v4423 = vrot.slane %v4372, 4
        %v4424 = vadd.f32 %v4372, %v4423
        %v4425 = vrot.slane %v4424, 2
        %v4426 = vadd.f32 %v4424, %v4425
        %v4427 = vrot.slane %v4426, 1
        %v4428 = vadd.f32 %v4426, %v4427
        %v4429 = vrot.slane %v4373, 4
        %v4430 = vadd.f32 %v4373, %v4429
        %v4431 = vrot.slane %v4430, 2
        %v4432 = vadd.f32 %v4430, %v4431
        %v4433 = vrot.slane %v4432, 1
        %v4434 = vadd.f32 %v4432, %v4433
        %v4435 = vrot.slane %v4374, 4
        %v4436 = vadd.f32 %v4374, %v4435
        %v4437 = vrot.slane %v4436, 2
        %v4438 = vadd.f32 %v4436, %v4437
        %v4439 = vrot.slane %v4438, 1
        %v4440 = vadd.f32 %v4438, %v4439
        %v4441 = vrot.slane %v4375, 4
        %v4442 = vadd.f32 %v4375, %v4441
        %v4443 = vrot.slane %v4442, 2
        %v4444 = vadd.f32 %v4442, %v4443
        %v4445 = vrot.slane %v4444, 1
        %v4446 = vadd.f32 %v4444, %v4445
        %v4447 = vrot.slane %v4376, 4
        %v4448 = vadd.f32 %v4376, %v4447
        %v4449 = vrot.slane %v4448, 2
        %v4450 = vadd.f32 %v4448, %v4449
        %v4451 = vrot.slane %v4450, 1
        %v4452 = vadd.f32 %v4450, %v4451
        %v4453 = vrot.slane %v4377, 4
        %v4454 = vadd.f32 %v4377, %v4453
        %v4455 = vrot.slane %v4454, 2
        %v4456 = vadd.f32 %v4454, %v4455
        %v4457 = vrot.slane %v4456, 1
        %v4458 = vadd.f32 %v4456, %v4457
        %v4459 = vrot.slane %v4378, 4
        %v4460 = vadd.f32 %v4378, %v4459
        %v4461 = vrot.slane %v4460, 2
        %v4462 = vadd.f32 %v4460, %v4461
        %v4463 = vrot.slane %v4462, 1
        %v4464 = vadd.f32 %v4462, %v4463
        %v4465 = vrot.slane %v4379, 4
        %v4466 = vadd.f32 %v4379, %v4465
        %v4467 = vrot.slane %v4466, 2
        %v4468 = vadd.f32 %v4466, %v4467
        %v4469 = vrot.slane %v4468, 1
        %v4470 = vadd.f32 %v4468, %v4469
        %v4471 = vrot.slane %v4380, 4
        %v4472 = vadd.f32 %v4380, %v4471
        %v4473 = vrot.slane %v4472, 2
        %v4474 = vadd.f32 %v4472, %v4473
        %v4475 = vrot.slane %v4474, 1
        %v4476 = vadd.f32 %v4474, %v4475
        %v4477 = vmul.f32 %v3822, %v2284
        %v4478 = vmul.f32 %v3824, %v2285
        %v4479 = vmul.f32 %v3899, %v2286
        %v4480 = vmul.f32 %v3901, %v2287
        %v4481 = vmul.f32 %v3976, %v2288
        %v4482 = vmul.f32 %v3978, %v2289
        %v4483 = vmul.f32 %v4053, %v2290
        %v4484 = vmul.f32 %v4055, %v2291
        %v4485 = vmul.f32 %v4130, %v2292
        %v4486 = vmul.f32 %v4132, %v2293
        %v4487 = vmul.f32 %v4207, %v2294
        %v4488 = vmul.f32 %v4209, %v2295
        %v4489 = vmul.f32 %v4284, %v2296
        %v4490 = vmul.f32 %v4286, %v2297
        %v4491 = vmul.f32 %v4361, %v2298
        %v4492 = vmul.f32 %v4363, %v2299
        %v4493 = vrot.slane %v4477, 4
        %v4494 = vadd.f32 %v4477, %v4493
        %v4495 = vrot.slane %v4494, 2
        %v4496 = vadd.f32 %v4494, %v4495
        %v4497 = vrot.slane %v4496, 1
        %v4498 = vadd.f32 %v4496, %v4497
        %v4499 = vrot.slane %v4478, 4
        %v4500 = vadd.f32 %v4478, %v4499
        %v4501 = vrot.slane %v4500, 2
        %v4502 = vadd.f32 %v4500, %v4501
        %v4503 = vrot.slane %v4502, 1
        %v4504 = vadd.f32 %v4502, %v4503
        %v4505 = vrot.slane %v4479, 4
        %v4506 = vadd.f32 %v4479, %v4505
        %v4507 = vrot.slane %v4506, 2
        %v4508 = vadd.f32 %v4506, %v4507
        %v4509 = vrot.slane %v4508, 1
        %v4510 = vadd.f32 %v4508, %v4509
        %v4511 = vrot.slane %v4480, 4
        %v4512 = vadd.f32 %v4480, %v4511
        %v4513 = vrot.slane %v4512, 2
        %v4514 = vadd.f32 %v4512, %v4513
        %v4515 = vrot.slane %v4514, 1
        %v4516 = vadd.f32 %v4514, %v4515
        %v4517 = vrot.slane %v4481, 4
        %v4518 = vadd.f32 %v4481, %v4517
        %v4519 = vrot.slane %v4518, 2
        %v4520 = vadd.f32 %v4518, %v4519
        %v4521 = vrot.slane %v4520, 1
        %v4522 = vadd.f32 %v4520, %v4521
        %v4523 = vrot.slane %v4482, 4
        %v4524 = vadd.f32 %v4482, %v4523
        %v4525 = vrot.slane %v4524, 2
        %v4526 = vadd.f32 %v4524, %v4525
        %v4527 = vrot.slane %v4526, 1
        %v4528 = vadd.f32 %v4526, %v4527
        %v4529 = vrot.slane %v4483, 4
        %v4530 = vadd.f32 %v4483, %v4529
        %v4531 = vrot.slane %v4530, 2
        %v4532 = vadd.f32 %v4530, %v4531
        %v4533 = vrot.slane %v4532, 1
        %v4534 = vadd.f32 %v4532, %v4533
        %v4535 = vrot.slane %v4484, 4
        %v4536 = vadd.f32 %v4484, %v4535
        %v4537 = vrot.slane %v4536, 2
        %v4538 = vadd.f32 %v4536, %v4537
        %v4539 = vrot.slane %v4538, 1
        %v4540 = vadd.f32 %v4538, %v4539
        %v4541 = vrot.slane %v4485, 4
        %v4542 = vadd.f32 %v4485, %v4541
        %v4543 = vrot.slane %v4542, 2
        %v4544 = vadd.f32 %v4542, %v4543
        %v4545 = vrot.slane %v4544, 1
        %v4546 = vadd.f32 %v4544, %v4545
        %v4547 = vrot.slane %v4486, 4
        %v4548 = vadd.f32 %v4486, %v4547
        %v4549 = vrot.slane %v4548, 2
        %v4550 = vadd.f32 %v4548, %v4549
        %v4551 = vrot.slane %v4550, 1
        %v4552 = vadd.f32 %v4550, %v4551
        %v4553 = vrot.slane %v4487, 4
        %v4554 = vadd.f32 %v4487, %v4553
        %v4555 = vrot.slane %v4554, 2
        %v4556 = vadd.f32 %v4554, %v4555
        %v4557 = vrot.slane %v4556, 1
        %v4558 = vadd.f32 %v4556, %v4557
        %v4559 = vrot.slane %v4488, 4
        %v4560 = vadd.f32 %v4488, %v4559
        %v4561 = vrot.slane %v4560, 2
        %v4562 = vadd.f32 %v4560, %v4561
        %v4563 = vrot.slane %v4562, 1
        %v4564 = vadd.f32 %v4562, %v4563
        %v4565 = vrot.slane %v4489, 4
        %v4566 = vadd.f32 %v4489, %v4565
        %v4567 = vrot.slane %v4566, 2
        %v4568 = vadd.f32 %v4566, %v4567
        %v4569 = vrot.slane %v4568, 1
        %v4570 = vadd.f32 %v4568, %v4569
        %v4571 = vrot.slane %v4490, 4
        %v4572 = vadd.f32 %v4490, %v4571
        %v4573 = vrot.slane %v4572, 2
        %v4574 = vadd.f32 %v4572, %v4573
        %v4575 = vrot.slane %v4574, 1
        %v4576 = vadd.f32 %v4574, %v4575
        %v4577 = vrot.slane %v4491, 4
        %v4578 = vadd.f32 %v4491, %v4577
        %v4579 = vrot.slane %v4578, 2
        %v4580 = vadd.f32 %v4578, %v4579
        %v4581 = vrot.slane %v4580, 1
        %v4582 = vadd.f32 %v4580, %v4581
        %v4583 = vrot.slane %v4492, 4
        %v4584 = vadd.f32 %v4492, %v4583
        %v4585 = vrot.slane %v4584, 2
        %v4586 = vadd.f32 %v4584, %v4585
        %v4587 = vrot.slane %v4586, 1
        %v4588 = vadd.f32 %v4586, %v4587
        %vm4589 = vcmask 1040384
        %v4590 = vsel %vm4589, %v1692, %v1916
        %v4591 = vsel %vm4589, %v1699, %v1923
        %v4592 = vsel %vm4589, %v1706, %v1930
        %v4593 = vsel %vm4589, %v1713, %v1937
        %v4594 = vsel %vm4589, %v1720, %v1944
        %v4595 = vsel %vm4589, %v1727, %v1951
        %v4596 = vsel %vm4589, %v1734, %v1958
        %v4597 = vsel %vm4589, %v1741, %v1965
        %v4598 = vsel %vm4589, %v1748, %v1972
        %v4599 = vsel %vm4589, %v1755, %v1979
        %v4600 = vsel %vm4589, %v1762, %v1986
        %v4601 = vsel %vm4589, %v1769, %v1993
        %v4602 = vsel %vm4589, %v1776, %v2000
        %v4603 = vsel %vm4589, %v1783, %v2007
        %v4604 = vsel %vm4589, %v1790, %v2014
        %v4605 = vsel %vm4589, %v1797, %v2021
        %vm4606 = vcmask 1041408
        %v4607 = vsel %vm4606, %v4590, %v4386
        %v4608 = vsel %vm4606, %v4591, %v4392
        %v4609 = vsel %vm4606, %v4592, %v4398
        %v4610 = vsel %vm4606, %v4593, %v4404
        %v4611 = vsel %vm4606, %v4594, %v4410
        %v4612 = vsel %vm4606, %v4595, %v4416
        %v4613 = vsel %vm4606, %v4596, %v4422
        %v4614 = vsel %vm4606, %v4597, %v4428
        %v4615 = vsel %vm4606, %v4598, %v4434
        %v4616 = vsel %vm4606, %v4599, %v4440
        %v4617 = vsel %vm4606, %v4600, %v4446
        %v4618 = vsel %vm4606, %v4601, %v4452
        %v4619 = vsel %vm4606, %v4602, %v4458
        %v4620 = vsel %vm4606, %v4603, %v4464
        %v4621 = vsel %vm4606, %v4604, %v4470
        %v4622 = vsel %vm4606, %v4605, %v4476
        %vm4623 = vcmask 1042432
        %v4624 = vsel %vm4623, %v4607, %v4498
        %v4625 = vsel %vm4623, %v4608, %v4504
        %v4626 = vsel %vm4623, %v4609, %v4510
        %v4627 = vsel %vm4623, %v4610, %v4516
        %v4628 = vsel %vm4623, %v4611, %v4522
        %v4629 = vsel %vm4623, %v4612, %v4528
        %v4630 = vsel %vm4623, %v4613, %v4534
        %v4631 = vsel %vm4623, %v4614, %v4540
        %v4632 = vsel %vm4623, %v4615, %v4546
        %v4633 = vsel %vm4623, %v4616, %v4552
        %v4634 = vsel %vm4623, %v4617, %v4558
        %v4635 = vsel %vm4623, %v4618, %v4564
        %v4636 = vsel %vm4623, %v4619, %v4570
        %v4637 = vsel %vm4623, %v4620, %v4576
        %v4638 = vsel %vm4623, %v4621, %v4582
        %v4639 = vsel %vm4623, %v4622, %v4588
        %v4656 = vcombine.low %v4624, %v4625
        %v4657 = vcombine.low %v4626, %v4627
        %v4658 = vcombine.low %v4628, %v4629
        %v4659 = vcombine.low %v4630, %v4631
        %v4660 = vcombine.low %v4632, %v4633
        %v4661 = vcombine.low %v4634, %v4635
        %v4662 = vcombine.low %v4636, %v4637
        %v4663 = vcombine.low %v4638, %v4639
        %4672 = vst [vmem:[%s216] sm:$0xff] %v4656
        %4673 = vst [vmem:[%s216 + $0x8] sm:$0xff] %v4657
        %4674 = vst [vmem:[%s216 + $0x10] sm:$0xff] %v4658
        %4675 = vst [vmem:[%s216 + $0x18] sm:$0xff] %v4659
        %4676 = vst [vmem:[%s216 + $0x20] sm:$0xff] %v4660
        %4677 = vst [vmem:[%s216 + $0x28] sm:$0xff] %v4661
        %4678 = vst [vmem:[%s216 + $0x30] sm:$0xff] %v4662
        %4679 = vst [vmem:[%s216 + $0x38] sm:$0xff] %v4663
        %s4680 = sand.u32 %s119, 1
        %s4681 = scalar_lea.sflag [#allocation3], %s4680
        %s4682 = sand.u32 %s119, 1
        %s4683 = smul.addr %s4682, 64
        %s4684 = scalar_lea.vmem [#allocation2], %s4683
        // Predicated region
        $region33: #{tpu_custom_call.1} parent=31 // pred_check
          %p4685 = pneg %p129
        $region34: #{tpu_custom_call.1} parent=31 // pred_check_branch
          %4687 = sbr.rel (%p4685) target = $region36
        $region35: #{tpu_custom_call.1} parent=31 // pred_region
          %s4688 = smul.u32 16, %s22
          %s4690 = ssub.s32 1024, 1024
          %4691 = vsyncadd %s4681, %s4690
          %s4692 = smul.addr %s21, 16
          %s4693 = sadd.s32 %s4688, %s4692
          %s4694 = smul.addr %s4693, 64
          %s4695 = scalar_lea.hbm %s3, %s4694
          %s4697 = sshll.u32 %s4684, 4
          %s4698 = int_to_ptr.vmem [resolvable:$true] %s4697
          %4700 = dma.vmem_to_hbm [thread:$0]  %s4698, 1024, %s4695, %s4681
        $region36: #{tpu_custom_call.1} parent=31 // pred_fallthru
          _
      $region32: #{tpu_custom_call.1} parent=5 // pred_fallthru
        _
      %p4701 = scmp.le.s32.totalorder 2, %s12
      // Predicated region
      $region37: #{tpu_custom_call.1} parent=5 // pred_check
        %p4702 = pneg %p4701
      $region38: #{tpu_custom_call.1} parent=5 // pred_check_branch
        %4704 = sbr.rel (%p4702) target = $region40
      $region39: #{tpu_custom_call.1} parent=5 // pred_region
        %s4705 = ssub.s32 %s12, 2
        // Predicated region
        $region41: #{tpu_custom_call.1} parent=39 // pred_check
          %p4706 = pneg %p135
        $region42: #{tpu_custom_call.1} parent=39 // pred_check_branch
          %4708 = sbr.rel (%p4706) target = $region44
        $region43: #{tpu_custom_call.1} parent=39 // pred_region
          %s4709 = sand.u32 %s120, 1
          %s4710 = scalar_lea.sflag [#allocation3], %s4709
          %s4711 = sand.u32 %s120, 1
          %s4712 = smul.addr %s4711, 64
          %s4713 = scalar_lea.vmem [#allocation2], %s4712
          %4714 = dma.done %s4710, 1024
        $region44: #{tpu_custom_call.1} parent=39 // pred_fallthru
          _
      $region40: #{tpu_custom_call.1} parent=5 // pred_fallthru
        _
    $region6: #{tpu_custom_call.1} parent=1 // loop_footer
      %s16 = sadd.s32 1, %s12
    $region7: #{tpu_custom_call.1} parent=1 // loop_footer_branch
      %11 = sbr.rel target = $region3
    $region8: #{tpu_custom_call.1} parent=1 // loop_exit
      _
    %4715 = vsyncpa [#allocation3], 1
    %s4716 = scalar_lea.sflag [#allocation3], 1
    %4717 = vsyncpa %s4716, 1

</llo_original>
